<compile_context>
chip_gen: v6e
topology: v6e:2x2x1
jax: 0.10.0
libtpu: 0.0.40
codegen_flags: <defaults>
</compile_context>

<pallas_src>
import functools

import jax
import jax.numpy as jnp
from jax import lax
from jax.experimental import pallas as pl
from jax.experimental.pallas import tpu as pltpu

LRELU_SLOPE = 0.1
BN_EPS = 1e-5


def _leaky(y):
    return jnp.where(y >= 0, y, LRELU_SLOPE * y)


def _round_up(x, m):
    return ((x + m - 1) // m) * m


# ----------------------------- Pallas kernel -----------------------------

def _resblock_kernel(H, TH, W, cin, cout, cpad, convskip, *refs):
    """Fused ResidualBlock for one (batch, row-tile) grid cell.

    refs (convskip): xb, xh, w1, b1, w2, b2, wsk, bsk, out
    refs (identity): xb, xh, w1, b1, w2, b2, out
      xb:  (1, TH, W+2, cin)   bf16  padded-image rows [i*TH,    i*TH+TH)
      xh:  (1, 4,  W+2, cin)   bf16  padded-image rows [i*TH+TH, i*TH+TH+4)  (halo)
      w1:  (3, 3*cin,  cpad)   bf16  conv1 weights, BN1 scale folded, grouped by ky
      w2:  (3, 3*cpad, cpad)   bf16  conv2 weights, BN2 scale folded, grouped by ky
      wsk: (cin, cpad)         bf16  1x1 skip weights, BN_skip scale folded
      b*:  (1, cpad)           f32
      out: (1, TH, W, cpad)
    """
    if convskip:
        xb_ref, xh_ref, w1_ref, b1_ref, w2_ref, b2_ref, wsk_ref, bsk_ref, o_ref = refs
    else:
        xb_ref, xh_ref, w1_ref, b1_ref, w2_ref, b2_ref, o_ref = refs

    i = pl.program_id(1)
    n1 = TH + 2                                    # conv1 rows (1-row halo each side of the tile)

    # Halo slab: padded-image rows [i*TH, i*TH + TH + 4), already bf16.
    slab = jnp.concatenate([xb_ref[0], xh_ref[0]], axis=0)           # (TH+4, W+2, cin)

    # ---- conv1 + BN1 + LeakyReLU on TH+2 rows: 3 accumulating MXU matmuls (one per ky) ----
    acc1 = jnp.zeros((n1 * W, cpad), jnp.float32)
    for dy in range(3):
        taps = jnp.concatenate(
            [slab[dy:dy + n1, dx:dx + W, :] for dx in range(3)], axis=-1)   # (n1, W, 3*cin)
        acc1 = acc1 + jnp.dot(taps.reshape(n1 * W, 3 * cin), w1_ref[dy],
                              preferred_element_type=jnp.float32)
    h1 = _leaky(acc1 + b1_ref[...])                                  # (n1*W, cpad) f32
    # TODO(synk): Dropout2d is identity in eval mode; training-mode channel dropout not implemented.

    # h1 rows outside the (unpadded) image must be zero: they are conv2's zero padding.  This
    # also neutralizes the rows added when H was rounded up to a multiple of TH.
    row = i * TH - 1 + lax.broadcasted_iota(jnp.int32, (n1, 1), 0)   # image row of each h1 row
    valid = ((row >= 0) & (row < H)).reshape(n1, 1, 1)
    h1 = jnp.where(valid, h1.reshape(n1, W, cpad), 0.0).astype(jnp.bfloat16)

    # Zero frame columns (conv2's width padding) built as a value -> no scratch, no zero-fill,
    # no misaligned staging stores.
    zc = jnp.zeros((n1, 1, cpad), jnp.bfloat16)
    h1p = jnp.concatenate([zc, h1, zc], axis=1)                      # (TH+2, W+2, cpad) bf16

    # ---- conv2 + BN2 + LeakyReLU ----
    acc2 = jnp.zeros((TH * W, cpad), jnp.float32)
    for dy in range(3):
        taps = jnp.concatenate(
            [h1p[dy:dy + TH, dx:dx + W, :] for dx in range(3)], axis=-1)    # (TH, W, 3*cpad)
        acc2 = acc2 + jnp.dot(taps.reshape(TH * W, 3 * cpad), w2_ref[dy],
                              preferred_element_type=jnp.float32)
    y = _leaky(acc2 + b2_ref[...])                                   # (TH*W, cpad) f32

    # ---- skip branch + residual add ----
    xc = slab[2:TH + 2, 1:W + 1, :].reshape(TH * W, cin)             # x tile, bf16
    if convskip:
        sk = jnp.dot(xc, wsk_ref[...], preferred_element_type=jnp.float32)
        sk = _leaky(sk + bsk_ref[...])
    else:
        sk = xc.astype(jnp.float32)                                  # identity (cin == cout)
        if cpad > cout:                                              # lane-pad in-register
            sk = jnp.concatenate(
                [sk, jnp.zeros((TH * W, cpad - cout), jnp.float32)], axis=-1)

    o_ref[0] = (y + sk).reshape(TH, W, cpad).astype(o_ref.dtype)


# ----------------------------- host-side param prep -----------------------------

def prepare_folded_params(params, cin, cout):
    """Fold eval-mode BN scale into the conv weights (bf16); keep biases in f32."""
    def fold(g, b, m, v):
        s = g / jnp.sqrt(v + BN_EPS)
        return s, (b - m * s).astype(jnp.float32)

    s1, b1 = fold(params["g1"], params["b1"], params["m1"], params["v1"])
    s2, b2 = fold(params["g2"], params["b2"], params["m2"], params["v2"])
    folded = {
        "w1": (params["w1"] * s1[None, None, :]).astype(jnp.bfloat16),   # (9, cin, cout)
        "b1": b1,
        "w2": (params["w2"] * s2[None, None, :]).astype(jnp.bfloat16),   # (9, cout, cout)
        "b2": b2,
    }
    if cin != cout:
        ssk, bsk = fold(params["gsk"], params["bsk"], params["msk"], params["vsk"])
        folded["wsk"] = (params["wsk"] * ssk[None, :]).astype(jnp.bfloat16)  # (cin, cout)
        folded["bsk"] = bsk
    return folded


def _pack_w3x3(w, ci_p, co_p):
    """(9, ci, co) -> (3, 3*ci_p, co_p) bf16, grouped by ky; channel padding is zero."""
    k, ci, co = w.shape
    wp = jnp.zeros((k, ci_p, co_p), jnp.bfloat16).at[:, :ci, :co].set(w.astype(jnp.bfloat16))
    return wp.reshape(3, 3 * ci_p, co_p)


def _pad_bias(b, co_p):
    return jnp.zeros((1, co_p), jnp.float32).at[0, :b.shape[0]].set(b)


# ----------------------------- wrapper -----------------------------

def residual_block_pallas(x_nchw, folded, cin, cout, *, tile_h=None, out_dtype=jnp.float32):
    """Forward pass of ResidualBlock (eval mode).  Input/output are NCHW (PyTorch layout)."""
    convskip = "wsk" in folded
    x = jnp.transpose(x_nchw, (0, 2, 3, 1)).astype(jnp.bfloat16)      # NCHW -> NHWC, bf16 storage
    B, H, W, _ = x.shape
    cpad = _round_up(cout, 128)                                       # lane-dense output channels

    # ---- tile height: multiple of 8, >= ~512 matmul rows / step, bounded by a VMEM budget ----
    if tile_h is None:
        tile_h = min(128, max(8, -(-512 // W)))
    TH = min(_round_up(tile_h, 8), _round_up(H, 8))

    def vmem_est(th):
        sub = lambda v: _round_up(v, 8)
        x_blk = (sub(th) + 8) * sub(W + 2) * _round_up(cin, 128) * 2        # body + halo (bf16)
        o_blk = th * sub(W) * cpad * 4
        w_tot = (sub(3 * cin) + sub(3 * cpad)) * 3 * cpad * 2 \
                + (sub(cin) * cpad * 2 if convskip else 0) + 3 * 8 * cpad * 4
        tmp = (th + 4) * sub(W + 2) * cpad * 14                             # h1 / taps / acc (rough)
        return 2 * (x_blk + o_blk) + 2 * w_tot + tmp

    VMEM_BUDGET = 24 << 20        # conservative: fits v7x's 64 MiB physical VMEM with headroom
    while TH > 8 and vmem_est(TH) > VMEM_BUDGET:
        TH -= 8
    Hp = _round_up(H, TH)         # pad H up; extra rows masked in-kernel, sliced off below
    nH = Hp // TH

    # 2 halo rows top/bottom (+ H padding), 1 halo col left/right; channels stay at true cin.
    xp = jnp.pad(x, ((0, 0), (2, Hp - H + 2), (1, 1), (0, 0)))        # (B, Hp+4, W+2, cin) bf16

    w1 = _pack_w3x3(folded["w1"], cin, cpad)       # (3, 3*cin,  cpad) bf16, BN1 scale folded
    b1 = _pad_bias(folded["b1"], cpad)
    w2 = _pack_w3x3(folded["w2"], cpad, cpad)      # (3, 3*cpad, cpad) bf16, BN2 scale folded
    b2 = _pad_bias(folded["b2"], cpad)

    const2 = lambda b, i: (0, 0)
    const3 = lambda b, i: (0, 0, 0)
    inputs = [xp, xp, w1, b1, w2, b2]
    in_specs = [
        # body rows [i*TH, i*TH+TH) of the padded image (non-overlapping, auto double-buffered)
        pl.BlockSpec((1, TH, W + 2, cin), lambda b, i: (b, i, 0, 0)),
        # trailing 4 halo rows [(i+1)*TH, (i+1)*TH+4) of the SAME padded array
        pl.BlockSpec((1, 4, W + 2, cin), lambda b, i: (b, (i + 1) * (TH // 4), 0, 0)),
        pl.BlockSpec((3, 3 * cin, cpad), const3),
        pl.BlockSpec((1, cpad), const2),
        pl.BlockSpec((3, 3 * cpad, cpad), const3),
        pl.BlockSpec((1, cpad), const2),
    ]
    if convskip:
        wsk = jnp.zeros((cin, cpad), jnp.bfloat16).at[:, :cout].set(folded["wsk"])
        bsk = _pad_bias(folded["bsk"], cpad)
        inputs += [wsk, bsk]
        in_specs += [pl.BlockSpec((cin, cpad), const2), pl.BlockSpec((1, cpad), const2)]

    kernel = functools.partial(_resblock_kernel, H, TH, W, cin, cout, cpad, convskip)
    out = pl.pallas_call(
        kernel,
        out_shape=jax.ShapeDtypeStruct((B, Hp, W, cpad), out_dtype),
        grid=(B, nH),
        in_specs=in_specs,
        out_specs=pl.BlockSpec((1, TH, W, cpad), lambda b, i: (b, i, 0, 0)),
        compiler_params=pltpu.CompilerParams(
            dimension_semantics=("parallel", "parallel"),
            vmem_limit_bytes=int(min(56 << 20, max(32 << 20, 2 * vmem_est(TH)))),
        ),
    )(*inputs)

    out = out[:, :H, :, :cout]                                        # drop row / channel padding
    return jnp.transpose(out, (0, 3, 1, 2))                           # NHWC -> NCHW


# ----------------------------- pure-JAX reference -----------------------------

def _conv3x3_ref(x_nhwc, w_taps_bf16):
    w_hwio = w_taps_bf16.reshape(3, 3, w_taps_bf16.shape[1], w_taps_bf16.shape[2])
    return lax.conv_general_dilated(
        x_nhwc.astype(jnp.bfloat16), w_hwio,
        window_strides=(1, 1), padding="SAME",
        dimension_numbers=("NHWC", "HWIO", "NHWC"),
        preferred_element_type=jnp.float32)


def residual_block_ref(x_nchw, folded, cin, cout):
    x = jnp.transpose(x_nchw, (0, 2, 3, 1)).astype(jnp.float32)
    xb = x.astype(jnp.bfloat16)                 # mirrors the kernel's bf16 activation storage
    h = _leaky(_conv3x3_ref(xb, folded["w1"]) + folded["b1"])
    h = _leaky(_conv3x3_ref(h, folded["w2"]) + folded["b2"])
    if "wsk" in folded:
        sk = jnp.einsum("bhwc,co->bhwo", xb, folded["wsk"],
                        preferred_element_type=jnp.float32)
        sk = _leaky(sk + folded["bsk"])
    else:
        sk = xb.astype(jnp.float32)
    return jnp.transpose(h + sk, (0, 3, 1, 2))


# ----------------------------- params -----------------------------

def init_params(key, cin, cout):
    ks = jax.random.split(key, 12)
    p = {
        # 3x3 conv weights stored as (9, Cin, Cout): tap k = 3*ky + kx, w[k, ci, co]
        "w1": 0.1 * jax.random.normal(ks[0], (9, cin, cout), jnp.float32),
        "g1": 1.0 + 0.1 * jax.random.normal(ks[1], (cout,), jnp.float32),
        "b1": 0.1 * jax.random.normal(ks[2], (cout,), jnp.float32),
        "m1": 0.1 * jax.random.normal(ks[3], (cout,), jnp.float32),
        "v1": jnp.abs(jax.random.normal(ks[4], (cout,), jnp.float32)) + 0.5,
        "w2": 0.1 * jax.random.normal(ks[5], (9, cout, cout), jnp.float32),
        "g2": 1.0 + 0.1 * jax.random.normal(ks[6], (cout,), jnp.float32),
        "b2": 0.1 * jax.random.normal(ks[7], (cout,), jnp.float32),
        "m2": 0.1 * jax.random.normal(ks[8], (cout,), jnp.float32),
        "v2": jnp.abs(jax.random.normal(ks[9], (cout,), jnp.float32)) + 0.5,
    }
    if cin != cout:
        kk = jax.random.split(ks[10], 5)
        p.update({
            "wsk": 0.1 * jax.random.normal(kk[0], (cin, cout), jnp.float32),
            "gsk": 1.0 + 0.1 * jax.random.normal(kk[1], (cout,), jnp.float32),
            "bsk": 0.1 * jax.random.normal(kk[2], (cout,), jnp.float32),
            "msk": 0.1 * jax.random.normal(kk[3], (cout,), jnp.float32),
            "vsk": jnp.abs(jax.random.normal(kk[4], (cout,), jnp.float32)) + 0.5,
        })
    return p


# ----------------------------- main -----------------------------

if __name__ == "__main__":
    key = jax.random.PRNGKey(0)
    kx1, kp1, kx2, kp2 = jax.random.split(key, 4)

    # Case 1: input_dim != output_dim  -> 1x1-conv + BN + LeakyReLU skip branch
    B, CIN, COUT, H, W = 2, 4, 8, 16, 16
    x1 = jax.random.normal(kx1, (B, CIN, H, W), jnp.float32)          # NCHW, like PyTorch
    folded1 = prepare_folded_params(init_params(kp1, CIN, COUT), CIN, COUT)
    out1 = jax.block_until_ready(residual_block_pallas(x1, folded1, CIN, COUT))
    ref1 = jax.block_until_ready(residual_block_ref(x1, folded1, CIN, COUT))
    assert out1.shape == (B, COUT, H, W), out1.shape
    err1 = float(jnp.max(jnp.abs(out1 - ref1)))
    assert err1 < 1e-2, err1

    # Case 2: input_dim == output_dim -> identity skip
    x2 = jax.random.normal(kx2, (B, COUT, H, W), jnp.float32)
    folded2 = prepare_folded_params(init_params(kp2, COUT, COUT), COUT, COUT)
    out2 = jax.block_until_ready(residual_block_pallas(x2, folded2, COUT, COUT))
    ref2 = jax.block_until_ready(residual_block_ref(x2, folded2, COUT, COUT))
    assert out2.shape == (B, COUT, H, W), out2.shape
    err2 = float(jnp.max(jnp.abs(out2 - ref2)))
    assert err2 < 1e-2, err2

    print("KERNEL_OK")
</pallas_src>

<mosaic_0001>
module attributes {stable_mosaic.version = 11 : i64} {
  func.func @_resblock_kernel(%arg0: i32, %arg1: i32, %arg2: memref<1x16x18x4xbf16, #tpu.memory_space<vmem>>, %arg3: memref<1x4x18x4xbf16, #tpu.memory_space<vmem>>, %arg4: memref<3x12x128xbf16, #tpu.memory_space<vmem>>, %arg5: memref<1x128xf32, #tpu.memory_space<vmem>>, %arg6: memref<3x384x128xbf16, #tpu.memory_space<vmem>>, %arg7: memref<1x128xf32, #tpu.memory_space<vmem>>, %arg8: memref<4x128xbf16, #tpu.memory_space<vmem>>, %arg9: memref<1x128xf32, #tpu.memory_space<vmem>>, %arg10: memref<1x16x16x128xf32, #tpu.memory_space<vmem>>) attributes {dimension_semantics = [#tpu.dimension_semantics<parallel>, #tpu.dimension_semantics<parallel>], iteration_bounds = array<i64: 2, 1>, scalar_prefetch = 0 : i64, scratch_operands = 0 : i64, tpu.core_type = #tpu.core_type<tc>, window_params = [{transform_indices = @transform_0, window_bounds = array<i64: 1, 16, 18, 4>}, {transform_indices = @transform_1, window_bounds = array<i64: 1, 4, 18, 4>}, {pipeline_mode = #tpu.pipeline_mode<synchronous>, transform_indices = @transform_2, window_bounds = array<i64: 3, 12, 128>}, {pipeline_mode = #tpu.pipeline_mode<synchronous>, transform_indices = @transform_3, window_bounds = array<i64: 1, 128>}, {pipeline_mode = #tpu.pipeline_mode<synchronous>, transform_indices = @transform_4, window_bounds = array<i64: 3, 384, 128>}, {pipeline_mode = #tpu.pipeline_mode<synchronous>, transform_indices = @transform_5, window_bounds = array<i64: 1, 128>}, {pipeline_mode = #tpu.pipeline_mode<synchronous>, transform_indices = @transform_6, window_bounds = array<i64: 4, 128>}, {pipeline_mode = #tpu.pipeline_mode<synchronous>, transform_indices = @transform_7, window_bounds = array<i64: 1, 128>}, {transform_indices = @transform_8, window_bounds = array<i64: 1, 16, 16, 128>}]} {
    %c0 = arith.constant 0 : index
    %c0_0 = arith.constant 0 : index
    %c0_1 = arith.constant 0 : index
    %c0_2 = arith.constant 0 : index
    %0 = vector.load %arg2[%c0, %c0_0, %c0_1, %c0_2] : memref<1x16x18x4xbf16, #tpu.memory_space<vmem>>, vector<1x16x18x4xbf16>
    %1 = vector.shape_cast %0 : vector<1x16x18x4xbf16> to vector<16x18x4xbf16>
    %c0_3 = arith.constant 0 : index
    %c0_4 = arith.constant 0 : index
    %c0_5 = arith.constant 0 : index
    %c0_6 = arith.constant 0 : index
    %2 = vector.load %arg3[%c0_3, %c0_4, %c0_5, %c0_6] : memref<1x4x18x4xbf16, #tpu.memory_space<vmem>>, vector<1x4x18x4xbf16>
    %3 = vector.shape_cast %2 : vector<1x4x18x4xbf16> to vector<4x18x4xbf16>
    %4 = tpu.concatenate %1, %3 in 0 : vector<16x18x4xbf16>, vector<4x18x4xbf16> -> vector<20x18x4xbf16>
    %cst = arith.constant 0.000000e+00 : f32
    %5 = vector.broadcast %cst : f32 to vector<288x128xf32>
    %6 = vector.extract_strided_slice %4 {offsets = [0, 0, 0], sizes = [18, 16, 4], strides = [1, 1, 1]} : vector<20x18x4xbf16> to vector<18x16x4xbf16>
    %7 = vector.extract_strided_slice %4 {offsets = [0, 1, 0], sizes = [18, 16, 4], strides = [1, 1, 1]} : vector<20x18x4xbf16> to vector<18x16x4xbf16>
    %8 = vector.extract_strided_slice %4 {offsets = [0, 2, 0], sizes = [18, 16, 4], strides = [1, 1, 1]} : vector<20x18x4xbf16> to vector<18x16x4xbf16>
    %9 = tpu.concatenate %6, %7, %8 in 2 : vector<18x16x4xbf16>, vector<18x16x4xbf16>, vector<18x16x4xbf16> -> vector<18x16x12xbf16>
    %10 = vector.shape_cast %9 : vector<18x16x12xbf16> to vector<288x12xbf16>
    %c0_7 = arith.constant 0 : index
    %c0_8 = arith.constant 0 : index
    %c0_9 = arith.constant 0 : index
    %11 = vector.load %arg4[%c0_7, %c0_8, %c0_9] : memref<3x12x128xbf16, #tpu.memory_space<vmem>>, vector<1x12x128xbf16>
    %12 = vector.shape_cast %11 : vector<1x12x128xbf16> to vector<12x128xbf16>
    %cst_10 = arith.constant dense<0.000000e+00> : vector<288x128xf32>
    %13 = tpu.matmul %10, %12, %cst_10 {dimension_numbers = #tpu.dot_dimension_numbers<[1], [0], [0], [1], [0, 0, 1, 1], [], []>} : vector<288x12xbf16>, vector<12x128xbf16>, vector<288x128xf32> -> vector<288x128xf32>
    %14 = arith.addf %5, %13 : vector<288x128xf32>
    %15 = vector.extract_strided_slice %4 {offsets = [1, 0, 0], sizes = [18, 16, 4], strides = [1, 1, 1]} : vector<20x18x4xbf16> to vector<18x16x4xbf16>
    %16 = vector.extract_strided_slice %4 {offsets = [1, 1, 0], sizes = [18, 16, 4], strides = [1, 1, 1]} : vector<20x18x4xbf16> to vector<18x16x4xbf16>
    %17 = vector.extract_strided_slice %4 {offsets = [1, 2, 0], sizes = [18, 16, 4], strides = [1, 1, 1]} : vector<20x18x4xbf16> to vector<18x16x4xbf16>
    %18 = tpu.concatenate %15, %16, %17 in 2 : vector<18x16x4xbf16>, vector<18x16x4xbf16>, vector<18x16x4xbf16> -> vector<18x16x12xbf16>
    %19 = vector.shape_cast %18 : vector<18x16x12xbf16> to vector<288x12xbf16>
    %c1 = arith.constant 1 : index
    %c0_11 = arith.constant 0 : index
    %c0_12 = arith.constant 0 : index
    %20 = vector.load %arg4[%c1, %c0_11, %c0_12] : memref<3x12x128xbf16, #tpu.memory_space<vmem>>, vector<1x12x128xbf16>
    %21 = vector.shape_cast %20 : vector<1x12x128xbf16> to vector<12x128xbf16>
    %cst_13 = arith.constant dense<0.000000e+00> : vector<288x128xf32>
    %22 = tpu.matmul %19, %21, %cst_13 {dimension_numbers = #tpu.dot_dimension_numbers<[1], [0], [0], [1], [0, 0, 1, 1], [], []>} : vector<288x12xbf16>, vector<12x128xbf16>, vector<288x128xf32> -> vector<288x128xf32>
    %23 = arith.addf %14, %22 : vector<288x128xf32>
    %24 = vector.extract_strided_slice %4 {offsets = [2, 0, 0], sizes = [18, 16, 4], strides = [1, 1, 1]} : vector<20x18x4xbf16> to vector<18x16x4xbf16>
    %25 = vector.extract_strided_slice %4 {offsets = [2, 1, 0], sizes = [18, 16, 4], strides = [1, 1, 1]} : vector<20x18x4xbf16> to vector<18x16x4xbf16>
    %26 = vector.extract_strided_slice %4 {offsets = [2, 2, 0], sizes = [18, 16, 4], strides = [1, 1, 1]} : vector<20x18x4xbf16> to vector<18x16x4xbf16>
    %27 = tpu.concatenate %24, %25, %26 in 2 : vector<18x16x4xbf16>, vector<18x16x4xbf16>, vector<18x16x4xbf16> -> vector<18x16x12xbf16>
    %28 = vector.shape_cast %27 : vector<18x16x12xbf16> to vector<288x12xbf16>
    %c2 = arith.constant 2 : index
    %c0_14 = arith.constant 0 : index
    %c0_15 = arith.constant 0 : index
    %29 = vector.load %arg4[%c2, %c0_14, %c0_15] : memref<3x12x128xbf16, #tpu.memory_space<vmem>>, vector<1x12x128xbf16>
    %30 = vector.shape_cast %29 : vector<1x12x128xbf16> to vector<12x128xbf16>
    %cst_16 = arith.constant dense<0.000000e+00> : vector<288x128xf32>
    %31 = tpu.matmul %28, %30, %cst_16 {dimension_numbers = #tpu.dot_dimension_numbers<[1], [0], [0], [1], [0, 0, 1, 1], [], []>} : vector<288x12xbf16>, vector<12x128xbf16>, vector<288x128xf32> -> vector<288x128xf32>
    %32 = arith.addf %23, %31 : vector<288x128xf32>
    %c0_17 = arith.constant 0 : index
    %c0_18 = arith.constant 0 : index
    %33 = vector.load %arg5[%c0_17, %c0_18] : memref<1x128xf32, #tpu.memory_space<vmem>>, vector<1x128xf32>
    %34 = vector.broadcast %33 : vector<1x128xf32> to vector<288x128xf32>
    %35 = arith.addf %32, %34 : vector<288x128xf32>
    %cst_19 = arith.constant 0.000000e+00 : f32
    %36 = vector.broadcast %cst_19 : f32 to vector<288x128xf32>
    %37 = arith.cmpf oge, %35, %36 : vector<288x128xf32>
    %cst_20 = arith.constant 1.000000e-01 : f32
    %38 = vector.broadcast %cst_20 : f32 to vector<288x128xf32>
    %39 = arith.mulf %38, %35 : vector<288x128xf32>
    %40 = arith.select %37, %35, %39 : vector<288x128xi1>, vector<288x128xf32>
    %c16_i32 = arith.constant 16 : i32
    %41 = arith.muli %arg1, %c16_i32 : i32
    %c1_i32 = arith.constant 1 : i32
    %42 = arith.subi %41, %c1_i32 : i32
    %43 = tpu.iota {dimensions = array<i32: 0>} : vector<18x1xi32>
    %44 = vector.broadcast %42 : i32 to vector<18x1xi32>
    %45 = arith.addi %44, %43 : vector<18x1xi32>
    %c0_i32 = arith.constant 0 : i32
    %46 = vector.broadcast %c0_i32 : i32 to vector<18x1xi32>
    %47 = arith.cmpi sge, %45, %46 : vector<18x1xi32>
    %c16_i32_21 = arith.constant 16 : i32
    %48 = vector.broadcast %c16_i32_21 : i32 to vector<18x1xi32>
    %49 = arith.cmpi slt, %45, %48 : vector<18x1xi32>
    %50 = arith.andi %47, %49 : vector<18x1xi1>
    %51 = vector.shape_cast %50 : vector<18x1xi1> to vector<18x1x1xi1>
    %52 = vector.shape_cast %40 : vector<288x128xf32> to vector<18x16x128xf32>
    %cst_22 = arith.constant 0.000000e+00 : f32
    %53 = vector.shape_cast %51 : vector<18x1x1xi1> to vector<18x1x1xi1>
    %54 = vector.broadcast %53 : vector<18x1x1xi1> to vector<18x16x128xi1>
    %55 = vector.broadcast %cst_22 : f32 to vector<18x16x128xf32>
    %56 = arith.select %54, %52, %55 : vector<18x16x128xi1>, vector<18x16x128xf32>
    %57 = arith.truncf %56 : vector<18x16x128xf32> to vector<18x16x128xbf16>
    %cst_23 = arith.constant 0.000000e+00 : bf16
    %58 = vector.broadcast %cst_23 : bf16 to vector<18x1x128xbf16>
    %59 = tpu.concatenate %58, %57, %58 in 1 : vector<18x1x128xbf16>, vector<18x16x128xbf16>, vector<18x1x128xbf16> -> vector<18x18x128xbf16>
    %cst_24 = arith.constant 0.000000e+00 : f32
    %60 = vector.broadcast %cst_24 : f32 to vector<256x128xf32>
    %61 = vector.extract_strided_slice %59 {offsets = [0, 0, 0], sizes = [16, 16, 128], strides = [1, 1, 1]} : vector<18x18x128xbf16> to vector<16x16x128xbf16>
    %62 = vector.extract_strided_slice %59 {offsets = [0, 1, 0], sizes = [16, 16, 128], strides = [1, 1, 1]} : vector<18x18x128xbf16> to vector<16x16x128xbf16>
    %63 = vector.extract_strided_slice %59 {offsets = [0, 2, 0], sizes = [16, 16, 128], strides = [1, 1, 1]} : vector<18x18x128xbf16> to vector<16x16x128xbf16>
    %64 = tpu.concatenate %61, %62, %63 in 2 : vector<16x16x128xbf16>, vector<16x16x128xbf16>, vector<16x16x128xbf16> -> vector<16x16x384xbf16>
    %65 = vector.shape_cast %64 : vector<16x16x384xbf16> to vector<256x384xbf16>
    %c0_25 = arith.constant 0 : index
    %c0_26 = arith.constant 0 : index
    %c0_27 = arith.constant 0 : index
    %66 = vector.load %arg6[%c0_25, %c0_26, %c0_27] : memref<3x384x128xbf16, #tpu.memory_space<vmem>>, vector<1x384x128xbf16>
    %67 = vector.shape_cast %66 : vector<1x384x128xbf16> to vector<384x128xbf16>
    %cst_28 = arith.constant dense<0.000000e+00> : vector<256x128xf32>
    %68 = tpu.matmul %65, %67, %cst_28 {dimension_numbers = #tpu.dot_dimension_numbers<[1], [0], [0], [1], [0, 0, 1, 1], [], []>} : vector<256x384xbf16>, vector<384x128xbf16>, vector<256x128xf32> -> vector<256x128xf32>
    %69 = arith.addf %60, %68 : vector<256x128xf32>
    %70 = vector.extract_strided_slice %59 {offsets = [1, 0, 0], sizes = [16, 16, 128], strides = [1, 1, 1]} : vector<18x18x128xbf16> to vector<16x16x128xbf16>
    %71 = vector.extract_strided_slice %59 {offsets = [1, 1, 0], sizes = [16, 16, 128], strides = [1, 1, 1]} : vector<18x18x128xbf16> to vector<16x16x128xbf16>
    %72 = vector.extract_strided_slice %59 {offsets = [1, 2, 0], sizes = [16, 16, 128], strides = [1, 1, 1]} : vector<18x18x128xbf16> to vector<16x16x128xbf16>
    %73 = tpu.concatenate %70, %71, %72 in 2 : vector<16x16x128xbf16>, vector<16x16x128xbf16>, vector<16x16x128xbf16> -> vector<16x16x384xbf16>
    %74 = vector.shape_cast %73 : vector<16x16x384xbf16> to vector<256x384xbf16>
    %c1_29 = arith.constant 1 : index
    %c0_30 = arith.constant 0 : index
    %c0_31 = arith.constant 0 : index
    %75 = vector.load %arg6[%c1_29, %c0_30, %c0_31] : memref<3x384x128xbf16, #tpu.memory_space<vmem>>, vector<1x384x128xbf16>
    %76 = vector.shape_cast %75 : vector<1x384x128xbf16> to vector<384x128xbf16>
    %cst_32 = arith.constant dense<0.000000e+00> : vector<256x128xf32>
    %77 = tpu.matmul %74, %76, %cst_32 {dimension_numbers = #tpu.dot_dimension_numbers<[1], [0], [0], [1], [0, 0, 1, 1], [], []>} : vector<256x384xbf16>, vector<384x128xbf16>, vector<256x128xf32> -> vector<256x128xf32>
    %78 = arith.addf %69, %77 : vector<256x128xf32>
    %79 = vector.extract_strided_slice %59 {offsets = [2, 0, 0], sizes = [16, 16, 128], strides = [1, 1, 1]} : vector<18x18x128xbf16> to vector<16x16x128xbf16>
    %80 = vector.extract_strided_slice %59 {offsets = [2, 1, 0], sizes = [16, 16, 128], strides = [1, 1, 1]} : vector<18x18x128xbf16> to vector<16x16x128xbf16>
    %81 = vector.extract_strided_slice %59 {offsets = [2, 2, 0], sizes = [16, 16, 128], strides = [1, 1, 1]} : vector<18x18x128xbf16> to vector<16x16x128xbf16>
    %82 = tpu.concatenate %79, %80, %81 in 2 : vector<16x16x128xbf16>, vector<16x16x128xbf16>, vector<16x16x128xbf16> -> vector<16x16x384xbf16>
    %83 = vector.shape_cast %82 : vector<16x16x384xbf16> to vector<256x384xbf16>
    %c2_33 = arith.constant 2 : index
    %c0_34 = arith.constant 0 : index
    %c0_35 = arith.constant 0 : index
    %84 = vector.load %arg6[%c2_33, %c0_34, %c0_35] : memref<3x384x128xbf16, #tpu.memory_space<vmem>>, vector<1x384x128xbf16>
    %85 = vector.shape_cast %84 : vector<1x384x128xbf16> to vector<384x128xbf16>
    %cst_36 = arith.constant dense<0.000000e+00> : vector<256x128xf32>
    %86 = tpu.matmul %83, %85, %cst_36 {dimension_numbers = #tpu.dot_dimension_numbers<[1], [0], [0], [1], [0, 0, 1, 1], [], []>} : vector<256x384xbf16>, vector<384x128xbf16>, vector<256x128xf32> -> vector<256x128xf32>
    %87 = arith.addf %78, %86 : vector<256x128xf32>
    %c0_37 = arith.constant 0 : index
    %c0_38 = arith.constant 0 : index
    %88 = vector.load %arg7[%c0_37, %c0_38] : memref<1x128xf32, #tpu.memory_space<vmem>>, vector<1x128xf32>
    %89 = vector.broadcast %88 : vector<1x128xf32> to vector<256x128xf32>
    %90 = arith.addf %87, %89 : vector<256x128xf32>
    %cst_39 = arith.constant 0.000000e+00 : f32
    %91 = vector.broadcast %cst_39 : f32 to vector<256x128xf32>
    %92 = arith.cmpf oge, %90, %91 : vector<256x128xf32>
    %cst_40 = arith.constant 1.000000e-01 : f32
    %93 = vector.broadcast %cst_40 : f32 to vector<256x128xf32>
    %94 = arith.mulf %93, %90 : vector<256x128xf32>
    %95 = arith.select %92, %90, %94 : vector<256x128xi1>, vector<256x128xf32>
    %96 = vector.extract_strided_slice %4 {offsets = [2, 1, 0], sizes = [16, 16, 4], strides = [1, 1, 1]} : vector<20x18x4xbf16> to vector<16x16x4xbf16>
    %97 = vector.shape_cast %96 : vector<16x16x4xbf16> to vector<256x4xbf16>
    %c0_41 = arith.constant 0 : index
    %c0_42 = arith.constant 0 : index
    %98 = vector.load %arg8[%c0_41, %c0_42] : memref<4x128xbf16, #tpu.memory_space<vmem>>, vector<4x128xbf16>
    %cst_43 = arith.constant dense<0.000000e+00> : vector<256x128xf32>
    %99 = tpu.matmul %97, %98, %cst_43 {dimension_numbers = #tpu.dot_dimension_numbers<[1], [0], [0], [1], [0, 0, 1, 1], [], []>} : vector<256x4xbf16>, vector<4x128xbf16>, vector<256x128xf32> -> vector<256x128xf32>
    %c0_44 = arith.constant 0 : index
    %c0_45 = arith.constant 0 : index
    %100 = vector.load %arg9[%c0_44, %c0_45] : memref<1x128xf32, #tpu.memory_space<vmem>>, vector<1x128xf32>
    %101 = vector.broadcast %100 : vector<1x128xf32> to vector<256x128xf32>
    %102 = arith.addf %99, %101 : vector<256x128xf32>
    %cst_46 = arith.constant 0.000000e+00 : f32
    %103 = vector.broadcast %cst_46 : f32 to vector<256x128xf32>
    %104 = arith.cmpf oge, %102, %103 : vector<256x128xf32>
    %cst_47 = arith.constant 1.000000e-01 : f32
    %105 = vector.broadcast %cst_47 : f32 to vector<256x128xf32>
    %106 = arith.mulf %105, %102 : vector<256x128xf32>
    %107 = arith.select %104, %102, %106 : vector<256x128xi1>, vector<256x128xf32>
    %108 = arith.addf %95, %107 : vector<256x128xf32>
    %109 = vector.shape_cast %108 : vector<256x128xf32> to vector<16x16x128xf32>
    %c0_48 = arith.constant 0 : index
    %c0_49 = arith.constant 0 : index
    %c0_50 = arith.constant 0 : index
    %c0_51 = arith.constant 0 : index
    %110 = vector.load %arg10[%c0_48, %c0_49, %c0_50, %c0_51] : memref<1x16x16x128xf32, #tpu.memory_space<vmem>>, vector<1x16x16x128xf32>
    %111 = vector.shape_cast %110 : vector<1x16x16x128xf32> to vector<16x16x128xf32>
    %112 = vector.shape_cast %109 : vector<16x16x128xf32> to vector<1x16x16x128xf32>
    tpu.vector_store %arg10[%c0_48, %c0_49, %c0_50, %c0_51], %112 {strides = array<i32>} : memref<1x16x16x128xf32, #tpu.memory_space<vmem>>, vector<1x16x16x128xf32>,
    return
  }
  func.func @transform_0(%arg0: i32, %arg1: i32) -> (i32, i32, i32, i32) {
    %c0_i32 = arith.constant 0 : i32
    %c0_i32_0 = arith.constant 0 : i32
    %c0_i32_1 = arith.constant 0 : i32
    return %arg0, %arg1, %c0_i32, %c0_i32_0 : i32, i32, i32, i32
  }
  func.func @transform_1(%arg0: i32, %arg1: i32) -> (i32, i32, i32, i32) {
    %c1_i32 = arith.constant 1 : i32
    %0 = arith.addi %arg1, %c1_i32 : i32
    %c4_i32 = arith.constant 4 : i32
    %1 = arith.muli %0, %c4_i32 : i32
    %c0_i32 = arith.constant 0 : i32
    %c0_i32_0 = arith.constant 0 : i32
    %c0_i32_1 = arith.constant 0 : i32
    return %arg0, %1, %c0_i32, %c0_i32_0 : i32, i32, i32, i32
  }
  func.func @transform_2(%arg0: i32, %arg1: i32) -> (i32, i32, i32) {
    %c0_i32 = arith.constant 0 : i32
    %c0_i32_0 = arith.constant 0 : i32
    %c0_i32_1 = arith.constant 0 : i32
    %c0_i32_2 = arith.constant 0 : i32
    return %c0_i32, %c0_i32_0, %c0_i32_1 : i32, i32, i32
  }
  func.func @transform_3(%arg0: i32, %arg1: i32) -> (i32, i32) {
    %c0_i32 = arith.constant 0 : i32
    %c0_i32_0 = arith.constant 0 : i32
    %c0_i32_1 = arith.constant 0 : i32
    return %c0_i32, %c0_i32_0 : i32, i32
  }
  func.func @transform_4(%arg0: i32, %arg1: i32) -> (i32, i32, i32) {
    %c0_i32 = arith.constant 0 : i32
    %c0_i32_0 = arith.constant 0 : i32
    %c0_i32_1 = arith.constant 0 : i32
    %c0_i32_2 = arith.constant 0 : i32
    return %c0_i32, %c0_i32_0, %c0_i32_1 : i32, i32, i32
  }
  func.func @transform_5(%arg0: i32, %arg1: i32) -> (i32, i32) {
    %c0_i32 = arith.constant 0 : i32
    %c0_i32_0 = arith.constant 0 : i32
    %c0_i32_1 = arith.constant 0 : i32
    return %c0_i32, %c0_i32_0 : i32, i32
  }
  func.func @transform_6(%arg0: i32, %arg1: i32) -> (i32, i32) {
    %c0_i32 = arith.constant 0 : i32
    %c0_i32_0 = arith.constant 0 : i32
    %c0_i32_1 = arith.constant 0 : i32
    return %c0_i32, %c0_i32_0 : i32, i32
  }
  func.func @transform_7(%arg0: i32, %arg1: i32) -> (i32, i32) {
    %c0_i32 = arith.constant 0 : i32
    %c0_i32_0 = arith.constant 0 : i32
    %c0_i32_1 = arith.constant 0 : i32
    return %c0_i32, %c0_i32_0 : i32, i32
  }
  func.func @transform_8(%arg0: i32, %arg1: i32) -> (i32, i32, i32, i32) {
    %c0_i32 = arith.constant 0 : i32
    %c0_i32_0 = arith.constant 0 : i32
    %c0_i32_1 = arith.constant 0 : i32
    return %arg0, %arg1, %c0_i32, %c0_i32_0 : i32, i32, i32, i32
  }
}

</mosaic_0001>

<llo_original>
// kernel: tpu_custom_call.1
$region0: #{tpu_custom_call.1}
  #allocation0 [shape = 'u32[]', space=smem, size = 0x4, offset = 0x4, fixed_abs, tag = 'smem constant byte address 0x4 - core index']
  #allocation1 [shape = 'u32[144,128]{1,0:T(1,128)}', space=vmem, size = 0x12000, scoped, tag = 'internal scratch']
  %s0 = inlined_call_operand.vmem [shape: bf16[2,20,18,4], index: 0, kind: input, shape index: {}]
  %s1 = inlined_call_operand.vmem [shape: bf16[2,20,18,4], index: 1, kind: input, shape index: {}]
  %s2 = inlined_call_operand.vmem [shape: bf16[3,12,128], index: 2, kind: input, shape index: {}]
  %s3 = inlined_call_operand.vmem [shape: f32[1,128], index: 3, kind: input, shape index: {}]
  %s4 = inlined_call_operand.vmem [shape: bf16[3,384,128], index: 4, kind: input, shape index: {}]
  %s5 = inlined_call_operand.vmem [shape: f32[1,128], index: 5, kind: input, shape index: {}]
  %s6 = inlined_call_operand.vmem [shape: bf16[4,128], index: 6, kind: input, shape index: {}]
  %s7 = inlined_call_operand.vmem [shape: f32[1,128], index: 7, kind: input, shape index: {}]
  %s8 = inlined_call_operand.hbm [shape: f32[2,16,16,128], index: 8, kind: output, shape index: {}]
  %s9 = sld [smem:[#allocation0]]
  $region65: #{tpu_custom_call.1} parent=0
    _
  %s11 = ssub.s32 1, %s9
  %s12 = scalar_select 0, %s11, %s9
  $region1: #{tpu_custom_call.1} parent=0
    #allocation2 [shape = 'u8[262144]{0}', space=vmem, size = 0x40000, scoped, tag = 'output window, operand 0']
    #allocation3 [shape = 's32[2]{0}', space=sflag, size = 0x8, scoped, tag = 'scoped memory for tpu_custom_call.1']
    %13 = vsyncpa [#allocation3], 0
    %s14 = scalar_lea.sflag [#allocation3], 1
    %15 = vsyncpa %s14, 0
    loop: start=0, step=1, limit=4
    $region2: #{tpu_custom_call.1} parent=1 // loop_pre_header
      _
    $region3: #{tpu_custom_call.1} parent=1 // loop_header
      %s17 = sphi 0, %s21
      %p18 = scmp.ge.s32.totalorder %s17, 4
      %s24 = sphi 0, %s36
      %s25 = sphi 0, %s32
      %s26 = sphi 0, %s24
      %s27 = sphi 0, %s25
      %s28 = sphi 0, %s26
      %s29 = sphi 0, %s27
      %s41 = sphi 0, %s43
      %s44 = sphi 0, %s41
      %s45 = sphi 0, %s44
      %s61 = sphi 0, %s45
      %s73 = sphi 0, %s75
      %s76 = sphi 0, %s73
      %s77 = sphi 0, %s76
      %s93 = sphi 0, %s77
      %s97 = sphi 0, %s97
      %s99 = sphi 0, %s97
      %s100 = sphi 0, %s99
      %s114 = sphi 0, %s100
      %s118 = sphi 0, %s118
      %s120 = sphi 0, %s118
      %s121 = sphi 0, %s120
      %s135 = sphi 0, %s121
      %s139 = sphi 0, %s139
      %s141 = sphi 0, %s139
      %s142 = sphi 0, %s141
      %s156 = sphi 0, %s142
      %s160 = sphi 0, %s160
      %s162 = sphi 0, %s160
      %s163 = sphi 0, %s162
      %s177 = sphi 0, %s163
      %s181 = sphi 0, %s181
      %s183 = sphi 0, %s181
      %s184 = sphi 0, %s183
      %s198 = sphi 0, %s184
      %s202 = sphi 0, %s202
      %s204 = sphi 0, %s202
      %s205 = sphi 0, %s204
      %s219 = sphi 0, %s205
      %s227 = sphi 0, %s229
      %s230 = sphi 0, %s227
      %s231 = sphi 0, %s230
      %s247 = sphi 0, %s231
    $region4: #{tpu_custom_call.1} parent=1 // loop_header_branch
      %20 = sbr.rel (%p18) target = $region8
    $region5: #{tpu_custom_call.1} parent=1 // loop_body
      %s22 = ssub.s32 %s17, 1
      %s23 = ssub.s32 %s17, 2
      %s30 = sadd.s32 1, %s25
      %p31 = scmp.ge.s32.totalorder %s30, 1
      %s32 = scalar_select %p31, 0, %s30
      %s33 = sadd.s32 1, %s24
      %s34 = scalar_select %p31, %s33, %s24
      %p35 = scmp.ge.s32.totalorder %s34, 2
      %s36 = scalar_select %p35, 0, %s34
      %s37 = ssub.s32 %s24, %s36
      %s38 = ssub.s32 %s25, %s32
      %s39 = sor.u32 %s37, %s38
      %p40 = scmp.eq.s32.totalorder %s39, 0
      %s42 = sadd.s32 %s41, 1
      %s43 = scalar_select %p40, %s41, %s42
      %p46 = pneg %p40
      %p47 = scmp.eq.s32.totalorder %s17, 1
      %p48 = por %p46, %p47
      %p49 = scmp.ne.s32.totalorder %s41, %s44
      %p50 = scmp.eq.s32.totalorder %s17, 0
      %p51 = por %p49, %p50
      %p52 = scmp.ne.s32.totalorder %s41, %s44
      %p53 = scmp.eq.s32.totalorder %s22, 1
      %p54 = por %p52, %p53
      %p55 = scmp.ne.s32.totalorder %s44, %s45
      %p56 = scmp.eq.s32.totalorder %s22, 0
      %p57 = por %p55, %p56
      %p58 = scmp.ne.s32.totalorder %s44, %s45
      %p59 = scmp.eq.s32.totalorder %s23, 1
      %p60 = por %p58, %p59
      %p62 = scmp.ne.s32.totalorder %s45, %s61
      %p63 = scmp.eq.s32.totalorder %s23, 0
      %p64 = por %p62, %p63
      %s65 = sadd.s32 %s25, 1
      %s66 = smul.u32 %s65, 4
      %s67 = sadd.s32 %s32, 1
      %s68 = smul.u32 %s67, 4
      %s69 = ssub.s32 %s24, %s36
      %s70 = ssub.s32 %s66, %s68
      %s71 = sor.u32 %s69, %s70
      %p72 = scmp.eq.s32.totalorder %s71, 0
      %s74 = sadd.s32 %s73, 1
      %s75 = scalar_select %p72, %s73, %s74
      %p78 = pneg %p72
      %p79 = scmp.eq.s32.totalorder %s17, 1
      %p80 = por %p78, %p79
      %p81 = scmp.ne.s32.totalorder %s73, %s76
      %p82 = scmp.eq.s32.totalorder %s17, 0
      %p83 = por %p81, %p82
      %p84 = scmp.ne.s32.totalorder %s73, %s76
      %p85 = scmp.eq.s32.totalorder %s22, 1
      %p86 = por %p84, %p85
      %p87 = scmp.ne.s32.totalorder %s76, %s77
      %p88 = scmp.eq.s32.totalorder %s22, 0
      %p89 = por %p87, %p88
      %p90 = scmp.ne.s32.totalorder %s76, %s77
      %p91 = scmp.eq.s32.totalorder %s23, 1
      %p92 = por %p90, %p91
      %p94 = scmp.ne.s32.totalorder %s77, %s93
      %p95 = scmp.eq.s32.totalorder %s23, 0
      %p96 = por %p94, %p95
      %s98 = sadd.s32 %s97, 1
      %p101 = scmp.eq.s32.totalorder %s17, 1
      %p102 = scmp.ne.s32.totalorder %s97, %s99
      %p103 = scmp.eq.s32.totalorder %s17, 0
      %p104 = por %p102, %p103
      %p105 = scmp.ne.s32.totalorder %s97, %s99
      %p106 = scmp.eq.s32.totalorder %s22, 1
      %p107 = por %p105, %p106
      %p108 = scmp.ne.s32.totalorder %s99, %s100
      %p109 = scmp.eq.s32.totalorder %s22, 0
      %p110 = por %p108, %p109
      %p111 = scmp.ne.s32.totalorder %s99, %s100
      %p112 = scmp.eq.s32.totalorder %s23, 1
      %p113 = por %p111, %p112
      %p115 = scmp.ne.s32.totalorder %s100, %s114
      %p116 = scmp.eq.s32.totalorder %s23, 0
      %p117 = por %p115, %p116
      %s119 = sadd.s32 %s118, 1
      %p122 = scmp.eq.s32.totalorder %s17, 1
      %p123 = scmp.ne.s32.totalorder %s118, %s120
      %p124 = scmp.eq.s32.totalorder %s17, 0
      %p125 = por %p123, %p124
      %p126 = scmp.ne.s32.totalorder %s118, %s120
      %p127 = scmp.eq.s32.totalorder %s22, 1
      %p128 = por %p126, %p127
      %p129 = scmp.ne.s32.totalorder %s120, %s121
      %p130 = scmp.eq.s32.totalorder %s22, 0
      %p131 = por %p129, %p130
      %p132 = scmp.ne.s32.totalorder %s120, %s121
      %p133 = scmp.eq.s32.totalorder %s23, 1
      %p134 = por %p132, %p133
      %p136 = scmp.ne.s32.totalorder %s121, %s135
      %p137 = scmp.eq.s32.totalorder %s23, 0
      %p138 = por %p136, %p137
      %s140 = sadd.s32 %s139, 1
      %p143 = scmp.eq.s32.totalorder %s17, 1
      %p144 = scmp.ne.s32.totalorder %s139, %s141
      %p145 = scmp.eq.s32.totalorder %s17, 0
      %p146 = por %p144, %p145
      %p147 = scmp.ne.s32.totalorder %s139, %s141
      %p148 = scmp.eq.s32.totalorder %s22, 1
      %p149 = por %p147, %p148
      %p150 = scmp.ne.s32.totalorder %s141, %s142
      %p151 = scmp.eq.s32.totalorder %s22, 0
      %p152 = por %p150, %p151
      %p153 = scmp.ne.s32.totalorder %s141, %s142
      %p154 = scmp.eq.s32.totalorder %s23, 1
      %p155 = por %p153, %p154
      %p157 = scmp.ne.s32.totalorder %s142, %s156
      %p158 = scmp.eq.s32.totalorder %s23, 0
      %p159 = por %p157, %p158
      %s161 = sadd.s32 %s160, 1
      %p164 = scmp.eq.s32.totalorder %s17, 1
      %p165 = scmp.ne.s32.totalorder %s160, %s162
      %p166 = scmp.eq.s32.totalorder %s17, 0
      %p167 = por %p165, %p166
      %p168 = scmp.ne.s32.totalorder %s160, %s162
      %p169 = scmp.eq.s32.totalorder %s22, 1
      %p170 = por %p168, %p169
      %p171 = scmp.ne.s32.totalorder %s162, %s163
      %p172 = scmp.eq.s32.totalorder %s22, 0
      %p173 = por %p171, %p172
      %p174 = scmp.ne.s32.totalorder %s162, %s163
      %p175 = scmp.eq.s32.totalorder %s23, 1
      %p176 = por %p174, %p175
      %p178 = scmp.ne.s32.totalorder %s163, %s177
      %p179 = scmp.eq.s32.totalorder %s23, 0
      %p180 = por %p178, %p179
      %s182 = sadd.s32 %s181, 1
      %p185 = scmp.eq.s32.totalorder %s17, 1
      %p186 = scmp.ne.s32.totalorder %s181, %s183
      %p187 = scmp.eq.s32.totalorder %s17, 0
      %p188 = por %p186, %p187
      %p189 = scmp.ne.s32.totalorder %s181, %s183
      %p190 = scmp.eq.s32.totalorder %s22, 1
      %p191 = por %p189, %p190
      %p192 = scmp.ne.s32.totalorder %s183, %s184
      %p193 = scmp.eq.s32.totalorder %s22, 0
      %p194 = por %p192, %p193
      %p195 = scmp.ne.s32.totalorder %s183, %s184
      %p196 = scmp.eq.s32.totalorder %s23, 1
      %p197 = por %p195, %p196
      %p199 = scmp.ne.s32.totalorder %s184, %s198
      %p200 = scmp.eq.s32.totalorder %s23, 0
      %p201 = por %p199, %p200
      %s203 = sadd.s32 %s202, 1
      %p206 = scmp.eq.s32.totalorder %s17, 1
      %p207 = scmp.ne.s32.totalorder %s202, %s204
      %p208 = scmp.eq.s32.totalorder %s17, 0
      %p209 = por %p207, %p208
      %p210 = scmp.ne.s32.totalorder %s202, %s204
      %p211 = scmp.eq.s32.totalorder %s22, 1
      %p212 = por %p210, %p211
      %p213 = scmp.ne.s32.totalorder %s204, %s205
      %p214 = scmp.eq.s32.totalorder %s22, 0
      %p215 = por %p213, %p214
      %p216 = scmp.ne.s32.totalorder %s204, %s205
      %p217 = scmp.eq.s32.totalorder %s23, 1
      %p218 = por %p216, %p217
      %p220 = scmp.ne.s32.totalorder %s205, %s219
      %p221 = scmp.eq.s32.totalorder %s23, 0
      %p222 = por %p220, %p221
      %s223 = ssub.s32 %s24, %s36
      %s224 = ssub.s32 %s25, %s32
      %s225 = sor.u32 %s223, %s224
      %p226 = scmp.eq.s32.totalorder %s225, 0
      %s228 = sadd.s32 %s227, 1
      %s229 = scalar_select %p226, %s227, %s228
      %p232 = pneg %p226
      %p233 = scmp.eq.s32.totalorder %s17, 1
      %p234 = por %p232, %p233
      %p235 = scmp.ne.s32.totalorder %s227, %s230
      %p236 = scmp.eq.s32.totalorder %s17, 0
      %p237 = por %p235, %p236
      %p238 = scmp.ne.s32.totalorder %s227, %s230
      %p239 = scmp.eq.s32.totalorder %s22, 1
      %p240 = por %p238, %p239
      %p241 = scmp.ne.s32.totalorder %s230, %s231
      %p242 = scmp.eq.s32.totalorder %s22, 0
      %p243 = por %p241, %p242
      %p244 = scmp.ne.s32.totalorder %s230, %s231
      %p245 = scmp.eq.s32.totalorder %s23, 1
      %p246 = por %p244, %p245
      %p248 = scmp.ne.s32.totalorder %s231, %s247
      %p249 = scmp.eq.s32.totalorder %s23, 0
      %p250 = por %p248, %p249
      %p251 = scmp.le.s32.totalorder 1, %s17
      %p252 = scmp.lt.s32.totalorder %s17, 3
      %p253 = pnand %p251, %p252
      %p254 = pneg %p253
      // Predicated region
      $region9: #{tpu_custom_call.1} parent=5 // pred_check
        _
      $region10: #{tpu_custom_call.1} parent=5 // pred_check_branch
        %256 = sbr.rel (%p253) target = $region12
      $region11: #{tpu_custom_call.1} parent=5 // pred_region
        %s257 = ssub.s32 %s17, 1
        // Predicated region
        $region13: #{tpu_custom_call.1} parent=11 // pred_check
          %p258 = pneg %p110
        $region14: #{tpu_custom_call.1} parent=11 // pred_check_branch
          %260 = sbr.rel (%p258) target = $region16
        $region15: #{tpu_custom_call.1} parent=11 // pred_region
          _
        $region16: #{tpu_custom_call.1} parent=11 // pred_fallthru
          _
        // Predicated region
        $region17: #{tpu_custom_call.1} parent=11 // pred_check
          %p261 = pneg %p131
        $region18: #{tpu_custom_call.1} parent=11 // pred_check_branch
          %263 = sbr.rel (%p261) target = $region20
        $region19: #{tpu_custom_call.1} parent=11 // pred_region
          _
        $region20: #{tpu_custom_call.1} parent=11 // pred_fallthru
          _
        // Predicated region
        $region21: #{tpu_custom_call.1} parent=11 // pred_check
          %p264 = pneg %p152
        $region22: #{tpu_custom_call.1} parent=11 // pred_check_branch
          %266 = sbr.rel (%p264) target = $region24
        $region23: #{tpu_custom_call.1} parent=11 // pred_region
          _
        $region24: #{tpu_custom_call.1} parent=11 // pred_fallthru
          _
        // Predicated region
        $region25: #{tpu_custom_call.1} parent=11 // pred_check
          %p267 = pneg %p173
        $region26: #{tpu_custom_call.1} parent=11 // pred_check_branch
          %269 = sbr.rel (%p267) target = $region28
        $region27: #{tpu_custom_call.1} parent=11 // pred_region
          _
        $region28: #{tpu_custom_call.1} parent=11 // pred_fallthru
          _
        // Predicated region
        $region29: #{tpu_custom_call.1} parent=11 // pred_check
          %p270 = pneg %p194
        $region30: #{tpu_custom_call.1} parent=11 // pred_check_branch
          %272 = sbr.rel (%p270) target = $region32
        $region31: #{tpu_custom_call.1} parent=11 // pred_region
          _
        $region32: #{tpu_custom_call.1} parent=11 // pred_fallthru
          _
        // Predicated region
        $region33: #{tpu_custom_call.1} parent=11 // pred_check
          %p273 = pneg %p215
        $region34: #{tpu_custom_call.1} parent=11 // pred_check_branch
          %275 = sbr.rel (%p273) target = $region36
        $region35: #{tpu_custom_call.1} parent=11 // pred_region
          _
        $region36: #{tpu_custom_call.1} parent=11 // pred_fallthru
          _
      $region12: #{tpu_custom_call.1} parent=5 // pred_fallthru
        _
      %p276 = scmp.lt.s32.totalorder %s17, 2
      // Predicated region
      $region37: #{tpu_custom_call.1} parent=5 // pred_check
        %p277 = pneg %p276
      $region38: #{tpu_custom_call.1} parent=5 // pred_check_branch
        %279 = sbr.rel (%p277) target = $region40
      $region39: #{tpu_custom_call.1} parent=5 // pred_region
        // Predicated region
        $region41: #{tpu_custom_call.1} parent=39 // pred_check
          %p280 = pneg %p51
        $region42: #{tpu_custom_call.1} parent=39 // pred_check_branch
          %282 = sbr.rel (%p280) target = $region44
        $region43: #{tpu_custom_call.1} parent=39 // pred_region
          %s283 = smul.u32 16, %s25
          %s284 = ssub.s32 20, %s283
          %p285 = scmp.lt.s32.totalorder %s284, 16
          %s286 = scalar_select %p285, %s284, 16
          %s287 = smul.u32 64, %s286
          %s288 = smul.u32 %s287, 3
          %p289 = scmp.lt.s32.totalorder %s24, 1
          %s290 = scalar_select %p289, %s24, 1
          %p291 = scmp.lt.s32.totalorder %s283, 19
          %s292 = scalar_select %p291, %s283, 19
          %s293 = smul.addr %s292, 3
          %s294 = smul.addr %s290, 60
          %s295 = sadd.s32 %s293, %s294
          %s296 = smul.addr %s295, 4
          %s297 = scalar_lea.vmem %s0, %s296
          %s298 = smul.u32 16, %s25
          %s299 = ssub.s32 20, %s298
          %p300 = scmp.lt.s32.totalorder %s299, 16
          %s301 = scalar_select %p300, %s299, 16
          %s302 = smul.u32 64, %s301
          %s303 = smul.u32 %s302, 3
        $region44: #{tpu_custom_call.1} parent=39 // pred_fallthru
          _
        // Predicated region
        $region45: #{tpu_custom_call.1} parent=39 // pred_check
          %p304 = pneg %p83
        $region46: #{tpu_custom_call.1} parent=39 // pred_check_branch
          %306 = sbr.rel (%p304) target = $region48
        $region47: #{tpu_custom_call.1} parent=39 // pred_region
          %s307 = sadd.s32 %s25, 1
          %s308 = smul.u32 %s307, 4
          %s309 = smul.u32 4, %s308
          %p310 = scmp.lt.s32.totalorder %s24, 1
          %s311 = scalar_select %p310, %s24, 1
          %p312 = scmp.lt.s32.totalorder %s309, 19
          %s313 = scalar_select %p312, %s309, 19
          %s314 = smul.addr %s313, 3
          %s315 = smul.addr %s311, 60
          %s316 = sadd.s32 %s314, %s315
          %s317 = smul.addr %s316, 4
          %s318 = scalar_lea.vmem %s1, %s317
          %s319 = sadd.s32 %s25, 1
          %s320 = smul.u32 %s319, 4
          %s321 = smul.u32 4, %s320
        $region48: #{tpu_custom_call.1} parent=39 // pred_fallthru
          _
      $region40: #{tpu_custom_call.1} parent=5 // pred_fallthru
        _
      %p322 = scmp.le.s32.totalorder 1, %s17
      %p323 = scmp.lt.s32.totalorder %s17, 3
      %p324 = pnand %p322, %p323
      %p325 = pneg %p324
      // Predicated region
      $region49: #{tpu_custom_call.1} parent=5 // pred_check
        _
      $region50: #{tpu_custom_call.1} parent=5 // pred_check_branch
        %327 = sbr.rel (%p324) target = $region52
      $region51: #{tpu_custom_call.1} parent=5 // pred_region
        %s328 = ssub.s32 %s17, 1
        %s329 = smul.u32 16, %s27
        %s330 = ssub.s32 20, %s329
        %p331 = scmp.lt.s32.totalorder %s330, 16
        %s332 = scalar_select %p331, %s330, 16
        %s333 = smul.u32 64, %s332
        %s334 = smul.u32 %s333, 3
        %p335 = scmp.lt.s32.totalorder %s26, 1
        %s336 = scalar_select %p335, %s26, 1
        %p337 = scmp.lt.s32.totalorder %s329, 19
        %s338 = scalar_select %p337, %s329, 19
        %s339 = smul.addr %s338, 3
        %s340 = smul.addr %s336, 60
        %s341 = sadd.s32 %s339, %s340
        %s342 = smul.addr %s341, 4
        %s343 = scalar_lea.vmem %s0, %s342
        %p344 = pneg %p57
        %p345 = pneg %p54
        %s346 = sadd.s32 %s27, 1
        %s347 = smul.u32 %s346, 4
        %s348 = smul.u32 4, %s347
        %p349 = scmp.lt.s32.totalorder %s26, 1
        %s350 = scalar_select %p349, %s26, 1
        %p351 = scmp.lt.s32.totalorder %s348, 19
        %s352 = scalar_select %p351, %s348, 19
        %s353 = smul.addr %s352, 3
        %s354 = smul.addr %s350, 60
        %s355 = sadd.s32 %s353, %s354
        %s356 = smul.addr %s355, 4
        %s357 = scalar_lea.vmem %s1, %s356
        %p358 = pneg %p89
        %p359 = pneg %p86
        %p360 = pneg %p110
        %p361 = pneg %p107
        %p362 = pneg %p131
        %p363 = pneg %p128
        %p364 = pneg %p152
        %p365 = pneg %p149
        %p366 = pneg %p173
        %p367 = pneg %p170
        %p368 = pneg %p194
        %p369 = pneg %p191
        %p370 = pneg %p215
        %p371 = pneg %p212
        %p372 = pneg %p243
        %p373 = pneg %p240
        %s374 = sand.u32 %s230, 1
        %s375 = scalar_lea.sflag [#allocation3], %s374
        %s376 = sand.u32 %s230, 1
        %s377 = smul.addr %s376, 256
        %s378 = scalar_lea.vmem [#allocation2], %s377
        %s379 = smul.u32 16, %s27
        %s380 = ssub.s32 20, %s379
        %p381 = scmp.lt.s32.totalorder %s380, 16
        %s382 = scalar_select %p381, %s380, 16
        %s383 = smul.u32 64, %s382
        %s384 = smul.u32 %s383, 3
        %p385 = scmp.lt.s32.totalorder %s26, 1
        %s386 = scalar_select %p385, %s26, 1
        %p387 = scmp.lt.s32.totalorder %s379, 19
        %s388 = scalar_select %p387, %s379, 19
        %s389 = smul.addr %s388, 3
        %s390 = smul.addr %s386, 60
        %s391 = sadd.s32 %s389, %s390
        %s392 = smul.addr %s391, 4
        %s393 = scalar_lea.vmem %s0, %s392
        %s394 = smul.u32 16, %s27
        %s395 = ssub.s32 20, %s394
        %p396 = scmp.lt.s32.totalorder %s395, 16
        %s397 = scalar_select %p396, %s395, 16
        %s398 = smul.u32 64, %s397
        %s399 = smul.u32 %s398, 3
        %s400 = sadd.s32 %s27, 1
        %s401 = smul.u32 %s400, 4
        %s402 = smul.u32 4, %s401
        %p403 = scmp.lt.s32.totalorder %s26, 1
        %s404 = scalar_select %p403, %s26, 1
        %p405 = scmp.lt.s32.totalorder %s402, 19
        %s406 = scalar_select %p405, %s402, 19
        %s407 = smul.addr %s406, 3
        %s408 = smul.addr %s404, 60
        %s409 = sadd.s32 %s407, %s408
        %s410 = smul.addr %s409, 4
        %s411 = scalar_lea.vmem %s1, %s410
        %s412 = sadd.s32 %s27, 1
        %s413 = smul.u32 %s412, 4
        %s414 = smul.u32 4, %s413
        %s415 = smul.u32 16, %s27
        %v417 = vld [vmem:[%s393] sm:$0xf]
        %v418 = vld [vmem:[%s393 + $0x4] sm:$0xf]
        %v419 = vld [vmem:[%s393 + $0x8] sm:$0x1]
        %v420 = vld [vmem:[%s393 + $0xc] sm:$0xf]
        %v421 = vld [vmem:[%s393 + $0x10] sm:$0xf]
        %v422 = vld [vmem:[%s393 + $0x14] sm:$0x1]
        %v423 = vld [vmem:[%s393 + $0x18] sm:$0xf]
        %v424 = vld [vmem:[%s393 + $0x1c] sm:$0xf]
        %v425 = vld [vmem:[%s393 + $0x20] sm:$0x1]
        %v426 = vld [vmem:[%s393 + $0x24] sm:$0xf]
        %v427 = vld [vmem:[%s393 + $0x28] sm:$0xf]
        %v428 = vld [vmem:[%s393 + $0x2c] sm:$0x1]
        %v429 = vld [vmem:[%s393 + $0x30] sm:$0xf]
        %v430 = vld [vmem:[%s393 + $0x34] sm:$0xf]
        %v431 = vld [vmem:[%s393 + $0x38] sm:$0x1]
        %v432 = vld [vmem:[%s393 + $0x3c] sm:$0xf]
        %v433 = vld [vmem:[%s393 + $0x40] sm:$0xf]
        %v434 = vld [vmem:[%s393 + $0x44] sm:$0x1]
        %v435 = vld [vmem:[%s393 + $0x48] sm:$0xf]
        %v436 = vld [vmem:[%s393 + $0x4c] sm:$0xf]
        %v437 = vld [vmem:[%s393 + $0x50] sm:$0x1]
        %v438 = vld [vmem:[%s393 + $0x54] sm:$0xf]
        %v439 = vld [vmem:[%s393 + $0x58] sm:$0xf]
        %v440 = vld [vmem:[%s393 + $0x5c] sm:$0x1]
        %v441 = vld [vmem:[%s393 + $0x60] sm:$0xf]
        %v442 = vld [vmem:[%s393 + $0x64] sm:$0xf]
        %v443 = vld [vmem:[%s393 + $0x68] sm:$0x1]
        %v444 = vld [vmem:[%s393 + $0x6c] sm:$0xf]
        %v445 = vld [vmem:[%s393 + $0x70] sm:$0xf]
        %v446 = vld [vmem:[%s393 + $0x74] sm:$0x1]
        %v447 = vld [vmem:[%s393 + $0x78] sm:$0xf]
        %v448 = vld [vmem:[%s393 + $0x7c] sm:$0xf]
        %v449 = vld [vmem:[%s393 + $0x80] sm:$0x1]
        %v450 = vld [vmem:[%s393 + $0x84] sm:$0xf]
        %v451 = vld [vmem:[%s393 + $0x88] sm:$0xf]
        %v452 = vld [vmem:[%s393 + $0x8c] sm:$0x1]
        %v453 = vld [vmem:[%s393 + $0x90] sm:$0xf]
        %v454 = vld [vmem:[%s393 + $0x94] sm:$0xf]
        %v455 = vld [vmem:[%s393 + $0x98] sm:$0x1]
        %v456 = vld [vmem:[%s393 + $0x9c] sm:$0xf]
        %v457 = vld [vmem:[%s393 + $0xa0] sm:$0xf]
        %v458 = vld [vmem:[%s393 + $0xa4] sm:$0x1]
        %v459 = vld [vmem:[%s393 + $0xa8] sm:$0xf]
        %v460 = vld [vmem:[%s393 + $0xac] sm:$0xf]
        %v461 = vld [vmem:[%s393 + $0xb0] sm:$0x1]
        %v462 = vld [vmem:[%s393 + $0xb4] sm:$0xf]
        %v463 = vld [vmem:[%s393 + $0xb8] sm:$0xf]
        %v464 = vld [vmem:[%s393 + $0xbc] sm:$0x1]
        %v465 = vld [vmem:[%s411] sm:$0xf]
        %v466 = vld [vmem:[%s411 + $0x4] sm:$0xf]
        %v467 = vld [vmem:[%s411 + $0x8] sm:$0x1]
        %v468 = vld [vmem:[%s411 + $0xc] sm:$0xf]
        %v469 = vld [vmem:[%s411 + $0x10] sm:$0xf]
        %v470 = vld [vmem:[%s411 + $0x14] sm:$0x1]
        %v471 = vld [vmem:[%s411 + $0x18] sm:$0xf]
        %v472 = vld [vmem:[%s411 + $0x1c] sm:$0xf]
        %v473 = vld [vmem:[%s411 + $0x20] sm:$0x1]
        %v474 = vld [vmem:[%s411 + $0x24] sm:$0xf]
        %v475 = vld [vmem:[%s411 + $0x28] sm:$0xf]
        %v476 = vld [vmem:[%s411 + $0x2c] sm:$0x1]
        %v513 = vunpack.c.l.b16 %v417
        %v514 = vunpack.c.l.b16 %v418
        %v515 = vunpack.c.l.b16 %v420
        %v516 = vunpack.c.l.b16 %v421
        %v517 = vunpack.c.l.b16 %v423
        %v518 = vunpack.c.l.b16 %v424
        %v519 = vunpack.c.l.b16 %v426
        %v520 = vunpack.c.l.b16 %v427
        %v521 = vunpack.c.l.b16 %v429
        %v522 = vunpack.c.l.b16 %v430
        %v523 = vunpack.c.l.b16 %v432
        %v524 = vunpack.c.l.b16 %v433
        %v525 = vunpack.c.l.b16 %v435
        %v526 = vunpack.c.l.b16 %v436
        %v527 = vunpack.c.l.b16 %v438
        %v528 = vunpack.c.l.b16 %v439
        %v529 = vunpack.c.l.b16 %v441
        %v530 = vunpack.c.l.b16 %v442
        %v531 = vunpack.c.l.b16 %v444
        %v532 = vunpack.c.l.b16 %v445
        %v533 = vunpack.c.l.b16 %v447
        %v534 = vunpack.c.l.b16 %v448
        %v535 = vunpack.c.l.b16 %v450
        %v536 = vunpack.c.l.b16 %v451
        %v537 = vunpack.c.l.b16 %v453
        %v538 = vunpack.c.l.b16 %v454
        %v539 = vunpack.c.l.b16 %v456
        %v540 = vunpack.c.l.b16 %v457
        %v541 = vunpack.c.l.b16 %v459
        %v542 = vunpack.c.l.b16 %v460
        %v543 = vunpack.c.l.b16 %v462
        %v544 = vunpack.c.l.b16 %v463
        %v545 = vunpack.c.l.b16 %v465
        %v546 = vunpack.c.l.b16 %v466
        %v547 = vunpack.c.l.b16 %v468
        %v548 = vunpack.c.l.b16 %v469
        %v549 = vpack.c.b16 %v514, %v513
        %v550 = vpack.c.b16 %v516, %v515
        %v551 = vpack.c.b16 %v518, %v517
        %v552 = vpack.c.b16 %v520, %v519
        %v553 = vpack.c.b16 %v522, %v521
        %v554 = vpack.c.b16 %v524, %v523
        %v555 = vpack.c.b16 %v526, %v525
        %v556 = vpack.c.b16 %v528, %v527
        %v557 = vpack.c.b16 %v530, %v529
        %v558 = vpack.c.b16 %v532, %v531
        %v559 = vpack.c.b16 %v534, %v533
        %v560 = vpack.c.b16 %v536, %v535
        %v561 = vpack.c.b16 %v538, %v537
        %v562 = vpack.c.b16 %v540, %v539
        %v563 = vpack.c.b16 %v542, %v541
        %v564 = vpack.c.b16 %v544, %v543
        %v565 = vpack.c.b16 %v546, %v545
        %v566 = vpack.c.b16 %v548, %v547
        %v585 = vunpack.c.l.b16 %v419
        %v586 = vunpack.c.l.b16 %v422
        %v587 = vunpack.c.l.b16 %v425
        %v588 = vunpack.c.l.b16 %v428
        %v589 = vunpack.c.l.b16 %v431
        %v590 = vunpack.c.l.b16 %v434
        %v591 = vunpack.c.l.b16 %v437
        %v592 = vunpack.c.l.b16 %v440
        %v593 = vunpack.c.l.b16 %v443
        %v594 = vunpack.c.l.b16 %v446
        %v595 = vunpack.c.l.b16 %v449
        %v596 = vunpack.c.l.b16 %v452
        %v597 = vunpack.c.l.b16 %v455
        %v598 = vunpack.c.l.b16 %v458
        %v599 = vunpack.c.l.b16 %v461
        %v600 = vunpack.c.l.b16 %v464
        %v601 = vunpack.c.l.b16 %v467
        %v602 = vunpack.c.l.b16 %v470
        %v603 = vpack.c.b16 %v585, %v585
        %v604 = vpack.c.b16 %v586, %v586
        %v605 = vpack.c.b16 %v587, %v587
        %v606 = vpack.c.b16 %v588, %v588
        %v607 = vpack.c.b16 %v589, %v589
        %v608 = vpack.c.b16 %v590, %v590
        %v609 = vpack.c.b16 %v591, %v591
        %v610 = vpack.c.b16 %v592, %v592
        %v611 = vpack.c.b16 %v593, %v593
        %v612 = vpack.c.b16 %v594, %v594
        %v613 = vpack.c.b16 %v595, %v595
        %v614 = vpack.c.b16 %v596, %v596
        %v615 = vpack.c.b16 %v597, %v597
        %v616 = vpack.c.b16 %v598, %v598
        %v617 = vpack.c.b16 %v599, %v599
        %v618 = vpack.c.b16 %v600, %v600
        %v619 = vpack.c.b16 %v601, %v601
        %v620 = vpack.c.b16 %v602, %v602
        %vm621 = vsmask.f32 7424
        %v623 = vshrl.u32 %v549, 16
        %v625 = vshll.u32 %v549, 16
        %v627 = vrot.slane %v625, 1
        %v628 = vor.u32 %v623, %v627
        %v630 = vshll.u32 %v603, 16
        %v632 = vrot.slane %v630, 1
        %v633 = vsel %vm621, %v628, %v632
        %v635 = vshrl.u32 %v550, 16
        %v637 = vshll.u32 %v550, 16
        %v639 = vrot.slane %v637, 1
        %v640 = vor.u32 %v635, %v639
        %v642 = vshll.u32 %v604, 16
        %v644 = vrot.slane %v642, 1
        %v645 = vsel %vm621, %v640, %v644
        %v647 = vshrl.u32 %v551, 16
        %v649 = vshll.u32 %v551, 16
        %v651 = vrot.slane %v649, 1
        %v652 = vor.u32 %v647, %v651
        %v654 = vshll.u32 %v605, 16
        %v656 = vrot.slane %v654, 1
        %v657 = vsel %vm621, %v652, %v656
        %v659 = vshrl.u32 %v552, 16
        %v661 = vshll.u32 %v552, 16
        %v663 = vrot.slane %v661, 1
        %v664 = vor.u32 %v659, %v663
        %v666 = vshll.u32 %v606, 16
        %v668 = vrot.slane %v666, 1
        %v669 = vsel %vm621, %v664, %v668
        %v671 = vshrl.u32 %v553, 16
        %v673 = vshll.u32 %v553, 16
        %v675 = vrot.slane %v673, 1
        %v676 = vor.u32 %v671, %v675
        %v678 = vshll.u32 %v607, 16
        %v680 = vrot.slane %v678, 1
        %v681 = vsel %vm621, %v676, %v680
        %v683 = vshrl.u32 %v554, 16
        %v685 = vshll.u32 %v554, 16
        %v687 = vrot.slane %v685, 1
        %v688 = vor.u32 %v683, %v687
        %v690 = vshll.u32 %v608, 16
        %v692 = vrot.slane %v690, 1
        %v693 = vsel %vm621, %v688, %v692
        %v695 = vshrl.u32 %v555, 16
        %v697 = vshll.u32 %v555, 16
        %v699 = vrot.slane %v697, 1
        %v700 = vor.u32 %v695, %v699
        %v702 = vshll.u32 %v609, 16
        %v704 = vrot.slane %v702, 1
        %v705 = vsel %vm621, %v700, %v704
        %v707 = vshrl.u32 %v556, 16
        %v709 = vshll.u32 %v556, 16
        %v711 = vrot.slane %v709, 1
        %v712 = vor.u32 %v707, %v711
        %v714 = vshll.u32 %v610, 16
        %v716 = vrot.slane %v714, 1
        %v717 = vsel %vm621, %v712, %v716
        %v719 = vshrl.u32 %v557, 16
        %v721 = vshll.u32 %v557, 16
        %v723 = vrot.slane %v721, 1
        %v724 = vor.u32 %v719, %v723
        %v726 = vshll.u32 %v611, 16
        %v728 = vrot.slane %v726, 1
        %v729 = vsel %vm621, %v724, %v728
        %v731 = vshrl.u32 %v558, 16
        %v733 = vshll.u32 %v558, 16
        %v735 = vrot.slane %v733, 1
        %v736 = vor.u32 %v731, %v735
        %v738 = vshll.u32 %v612, 16
        %v740 = vrot.slane %v738, 1
        %v741 = vsel %vm621, %v736, %v740
        %v743 = vshrl.u32 %v559, 16
        %v745 = vshll.u32 %v559, 16
        %v747 = vrot.slane %v745, 1
        %v748 = vor.u32 %v743, %v747
        %v750 = vshll.u32 %v613, 16
        %v752 = vrot.slane %v750, 1
        %v753 = vsel %vm621, %v748, %v752
        %v755 = vshrl.u32 %v560, 16
        %v757 = vshll.u32 %v560, 16
        %v759 = vrot.slane %v757, 1
        %v760 = vor.u32 %v755, %v759
        %v762 = vshll.u32 %v614, 16
        %v764 = vrot.slane %v762, 1
        %v765 = vsel %vm621, %v760, %v764
        %v767 = vshrl.u32 %v561, 16
        %v769 = vshll.u32 %v561, 16
        %v771 = vrot.slane %v769, 1
        %v772 = vor.u32 %v767, %v771
        %v774 = vshll.u32 %v615, 16
        %v776 = vrot.slane %v774, 1
        %v777 = vsel %vm621, %v772, %v776
        %v779 = vshrl.u32 %v562, 16
        %v781 = vshll.u32 %v562, 16
        %v783 = vrot.slane %v781, 1
        %v784 = vor.u32 %v779, %v783
        %v786 = vshll.u32 %v616, 16
        %v788 = vrot.slane %v786, 1
        %v789 = vsel %vm621, %v784, %v788
        %v791 = vshrl.u32 %v563, 16
        %v793 = vshll.u32 %v563, 16
        %v795 = vrot.slane %v793, 1
        %v796 = vor.u32 %v791, %v795
        %v798 = vshll.u32 %v617, 16
        %v800 = vrot.slane %v798, 1
        %v801 = vsel %vm621, %v796, %v800
        %v803 = vshrl.u32 %v564, 16
        %v805 = vshll.u32 %v564, 16
        %v807 = vrot.slane %v805, 1
        %v808 = vor.u32 %v803, %v807
        %v810 = vshll.u32 %v618, 16
        %v812 = vrot.slane %v810, 1
        %v813 = vsel %vm621, %v808, %v812
        %v815 = vshrl.u32 %v565, 16
        %v817 = vshll.u32 %v565, 16
        %v819 = vrot.slane %v817, 1
        %v820 = vor.u32 %v815, %v819
        %v822 = vshll.u32 %v619, 16
        %v824 = vrot.slane %v822, 1
        %v825 = vsel %vm621, %v820, %v824
        %v827 = vshrl.u32 %v566, 16
        %v829 = vshll.u32 %v566, 16
        %v831 = vrot.slane %v829, 1
        %v832 = vor.u32 %v827, %v831
        %v834 = vshll.u32 %v620, 16
        %v836 = vrot.slane %v834, 1
        %v837 = vsel %vm621, %v832, %v836
        %838 = vrot.lane.b32.xlu0 %v633, 4
        %v839 = vpop.permute.xlu0 %838
        %840 = vrot.lane.b32.xlu0 %v645, 4
        %v841 = vpop.permute.xlu0 %840
        %842 = vrot.lane.b32.xlu0 %v657, 4
        %v843 = vpop.permute.xlu0 %842
        %844 = vrot.lane.b32.xlu0 %v669, 4
        %v845 = vpop.permute.xlu0 %844
        %846 = vrot.lane.b32.xlu0 %v681, 4
        %v847 = vpop.permute.xlu0 %846
        %848 = vrot.lane.b32.xlu0 %v693, 4
        %v849 = vpop.permute.xlu0 %848
        %850 = vrot.lane.b32.xlu0 %v705, 4
        %v851 = vpop.permute.xlu0 %850
        %852 = vrot.lane.b32.xlu0 %v717, 4
        %v853 = vpop.permute.xlu0 %852
        %854 = vrot.lane.b32.xlu0 %v729, 4
        %v855 = vpop.permute.xlu0 %854
        %856 = vrot.lane.b32.xlu0 %v741, 4
        %v857 = vpop.permute.xlu0 %856
        %858 = vrot.lane.b32.xlu0 %v753, 4
        %v859 = vpop.permute.xlu0 %858
        %860 = vrot.lane.b32.xlu0 %v765, 4
        %v861 = vpop.permute.xlu0 %860
        %862 = vrot.lane.b32.xlu0 %v777, 4
        %v863 = vpop.permute.xlu0 %862
        %864 = vrot.lane.b32.xlu0 %v789, 4
        %v865 = vpop.permute.xlu0 %864
        %866 = vrot.lane.b32.xlu0 %v801, 4
        %v867 = vpop.permute.xlu0 %866
        %868 = vrot.lane.b32.xlu0 %v813, 4
        %v869 = vpop.permute.xlu0 %868
        %870 = vrot.lane.b32.xlu0 %v825, 4
        %v871 = vpop.permute.xlu0 %870
        %872 = vrot.lane.b32.xlu0 %v837, 4
        %v873 = vpop.permute.xlu0 %872
        %vm874 = vcmask 1046528
        %v875 = vrot.slane %v549, 1
        %v876 = vrot.slane %v603, 1
        %v877 = vsel %vm874, %v875, %v876
        %v878 = vrot.slane %v550, 1
        %v879 = vrot.slane %v604, 1
        %v880 = vsel %vm874, %v878, %v879
        %v881 = vrot.slane %v551, 1
        %v882 = vrot.slane %v605, 1
        %v883 = vsel %vm874, %v881, %v882
        %v884 = vrot.slane %v552, 1
        %v885 = vrot.slane %v606, 1
        %v886 = vsel %vm874, %v884, %v885
        %v887 = vrot.slane %v553, 1
        %v888 = vrot.slane %v607, 1
        %v889 = vsel %vm874, %v887, %v888
        %v890 = vrot.slane %v554, 1
        %v891 = vrot.slane %v608, 1
        %v892 = vsel %vm874, %v890, %v891
        %v893 = vrot.slane %v555, 1
        %v894 = vrot.slane %v609, 1
        %v895 = vsel %vm874, %v893, %v894
        %v896 = vrot.slane %v556, 1
        %v897 = vrot.slane %v610, 1
        %v898 = vsel %vm874, %v896, %v897
        %v899 = vrot.slane %v557, 1
        %v900 = vrot.slane %v611, 1
        %v901 = vsel %vm874, %v899, %v900
        %v902 = vrot.slane %v558, 1
        %v903 = vrot.slane %v612, 1
        %v904 = vsel %vm874, %v902, %v903
        %v905 = vrot.slane %v559, 1
        %v906 = vrot.slane %v613, 1
        %v907 = vsel %vm874, %v905, %v906
        %v908 = vrot.slane %v560, 1
        %v909 = vrot.slane %v614, 1
        %v910 = vsel %vm874, %v908, %v909
        %v911 = vrot.slane %v561, 1
        %v912 = vrot.slane %v615, 1
        %v913 = vsel %vm874, %v911, %v912
        %v914 = vrot.slane %v562, 1
        %v915 = vrot.slane %v616, 1
        %v916 = vsel %vm874, %v914, %v915
        %v917 = vrot.slane %v563, 1
        %v918 = vrot.slane %v617, 1
        %v919 = vsel %vm874, %v917, %v918
        %v920 = vrot.slane %v564, 1
        %v921 = vrot.slane %v618, 1
        %v922 = vsel %vm874, %v920, %v921
        %v923 = vrot.slane %v565, 1
        %v924 = vrot.slane %v619, 1
        %v925 = vsel %vm874, %v923, %v924
        %v926 = vrot.slane %v566, 1
        %v927 = vrot.slane %v620, 1
        %v928 = vsel %vm874, %v926, %v927
        %929 = vrot.lane.b32.xlu0 %v877, 8
        %v930 = vpop.permute.xlu0 %929
        %931 = vrot.lane.b32.xlu0 %v880, 8
        %v932 = vpop.permute.xlu0 %931
        %933 = vrot.lane.b32.xlu0 %v883, 8
        %v934 = vpop.permute.xlu0 %933
        %935 = vrot.lane.b32.xlu0 %v886, 8
        %v936 = vpop.permute.xlu0 %935
        %937 = vrot.lane.b32.xlu0 %v889, 8
        %v938 = vpop.permute.xlu0 %937
        %939 = vrot.lane.b32.xlu0 %v892, 8
        %v940 = vpop.permute.xlu0 %939
        %941 = vrot.lane.b32.xlu0 %v895, 8
        %v942 = vpop.permute.xlu0 %941
        %943 = vrot.lane.b32.xlu0 %v898, 8
        %v944 = vpop.permute.xlu0 %943
        %945 = vrot.lane.b32.xlu0 %v901, 8
        %v946 = vpop.permute.xlu0 %945
        %947 = vrot.lane.b32.xlu0 %v904, 8
        %v948 = vpop.permute.xlu0 %947
        %949 = vrot.lane.b32.xlu0 %v907, 8
        %v950 = vpop.permute.xlu0 %949
        %951 = vrot.lane.b32.xlu0 %v910, 8
        %v952 = vpop.permute.xlu0 %951
        %953 = vrot.lane.b32.xlu0 %v913, 8
        %v954 = vpop.permute.xlu0 %953
        %955 = vrot.lane.b32.xlu0 %v916, 8
        %v956 = vpop.permute.xlu0 %955
        %957 = vrot.lane.b32.xlu0 %v919, 8
        %v958 = vpop.permute.xlu0 %957
        %959 = vrot.lane.b32.xlu0 %v922, 8
        %v960 = vpop.permute.xlu0 %959
        %961 = vrot.lane.b32.xlu0 %v925, 8
        %v962 = vpop.permute.xlu0 %961
        %963 = vrot.lane.b32.xlu0 %v928, 8
        %v964 = vpop.permute.xlu0 %963
        %vm965 = vcmask 31744
        %v967 = vsel %vm965, %v549, %v839
        %v969 = vsel %vm965, %v550, %v841
        %v971 = vsel %vm965, %v551, %v843
        %v973 = vsel %vm965, %v552, %v845
        %v975 = vsel %vm965, %v553, %v847
        %v977 = vsel %vm965, %v554, %v849
        %v979 = vsel %vm965, %v555, %v851
        %v981 = vsel %vm965, %v556, %v853
        %v983 = vsel %vm965, %v557, %v855
        %v985 = vsel %vm965, %v558, %v857
        %v987 = vsel %vm965, %v559, %v859
        %v989 = vsel %vm965, %v560, %v861
        %v991 = vsel %vm965, %v561, %v863
        %v993 = vsel %vm965, %v562, %v865
        %v995 = vsel %vm965, %v563, %v867
        %v997 = vsel %vm965, %v564, %v869
        %v999 = vsel %vm965, %v565, %v871
        %v1001 = vsel %vm965, %v566, %v873
        %vm1002 = vcmask 64512
        %v1004 = vsel %vm1002, %v967, %v930
        %v1006 = vsel %vm1002, %v969, %v932
        %v1008 = vsel %vm1002, %v971, %v934
        %v1010 = vsel %vm1002, %v973, %v936
        %v1012 = vsel %vm1002, %v975, %v938
        %v1014 = vsel %vm1002, %v977, %v940
        %v1016 = vsel %vm1002, %v979, %v942
        %v1018 = vsel %vm1002, %v981, %v944
        %v1020 = vsel %vm1002, %v983, %v946
        %v1022 = vsel %vm1002, %v985, %v948
        %v1024 = vsel %vm1002, %v987, %v950
        %v1026 = vsel %vm1002, %v989, %v952
        %v1028 = vsel %vm1002, %v991, %v954
        %v1030 = vsel %vm1002, %v993, %v956
        %v1032 = vsel %vm1002, %v995, %v958
        %v1034 = vsel %vm1002, %v997, %v960
        %v1036 = vsel %vm1002, %v999, %v962
        %v1038 = vsel %vm1002, %v1001, %v964
        %v1039 = vld [vmem:[%s2] sm:$0xf]
        %v1040 = vld [vmem:[%s2 + $0x4] sm:$0x3]
        %v1043 = vunpack.c.l.b16 %v471
        %v1044 = vunpack.c.l.b16 %v472
        %v1045 = vpack.c.b16 %v1044, %v1043
        %v1047 = vunpack.c.l.b16 %v473
        %v1048 = vpack.c.b16 %v1047, %v1047
        %v1050 = vshrl.u32 %v1045, 16
        %v1052 = vshll.u32 %v1045, 16
        %v1054 = vrot.slane %v1052, 1
        %v1055 = vor.u32 %v1050, %v1054
        %v1057 = vshll.u32 %v1048, 16
        %v1059 = vrot.slane %v1057, 1
        %v1060 = vsel %vm621, %v1055, %v1059
        %1061 = vrot.lane.b32.xlu0 %v1060, 4
        %v1062 = vpop.permute.xlu0 %1061
        %v1063 = vrot.slane %v1045, 1
        %v1064 = vrot.slane %v1048, 1
        %v1065 = vsel %vm874, %v1063, %v1064
        %1066 = vrot.lane.b32.xlu0 %v1065, 8
        %v1067 = vpop.permute.xlu0 %1066
        %v1069 = vsel %vm965, %v1045, %v1062
        %v1071 = vsel %vm1002, %v1069, %v1067
        %s1072 = scalar_lea.vmem %s2, 8
        %v1073 = vld [vmem:[%s1072] sm:$0xf]
        %v1074 = vld [vmem:[%s1072 + $0x4] sm:$0x3]
        %v1077 = vunpack.c.l.b16 %v1073
        %v1078 = vunpack.c.l.b16 %v1074
        %v1079 = vpack.c.b16 %v1078, %v1077
        %vm1080 = vcmask 97280
        %v1081 = vsel %vm1080, %v1006, 0
        %v1083 = vsel %vm1080, %v1008, 0
        %v1085 = vsel %vm1080, %v1010, 0
        %v1087 = vsel %vm1080, %v1012, 0
        %v1089 = vsel %vm1080, %v1014, 0
        %v1091 = vsel %vm1080, %v1016, 0
        %v1093 = vsel %vm1080, %v1018, 0
        %v1095 = vsel %vm1080, %v1020, 0
        %v1097 = vsel %vm1080, %v1022, 0
        %v1099 = vsel %vm1080, %v1024, 0
        %v1101 = vsel %vm1080, %v1026, 0
        %v1103 = vsel %vm1080, %v1028, 0
        %v1105 = vsel %vm1080, %v1030, 0
        %v1107 = vsel %vm1080, %v1032, 0
        %v1109 = vsel %vm1080, %v1034, 0
        %v1111 = vsel %vm1080, %v1036, 0
        %v1113 = vsel %vm1080, %v1038, 0
        %v1115 = vsel %vm1080, %v1071, 0
        %vm1117 = vcmask 1045504
        %v1119 = vsel %vm1117, %v1079, 0
        %1121 = vmatprep.subr.bf16.mxu0 0
        %1122 = vmatpush1.bf16.msra.mxu0 0
        %1123 = vmatprep.subr.bf16.mxu0 0
        %1124 = vmatpush1.bf16.msra.mxu0 0
        %1125 = vmatprep.subr.bf16.mxu0 0
        %1126 = vmatpush1.bf16.msra.mxu0 0
        %1127 = vmatprep.subr.bf16.mxu0 0
        %1128 = vmatpush1.bf16.msra.mxu0 0
        %1129 = vmatprep.subr.bf16.mxu0 0
        %1130 = vmatpush1.bf16.msra.mxu0 0
        %1131 = vmatprep.subr.bf16.mxu0 0
        %1132 = vmatpush1.bf16.msra.mxu0 0
        %1133 = vmatprep.subr.bf16.mxu0 0
        %1134 = vmatpush1.bf16.msra.mxu0 0
        %1135 = vmatprep.subr.bf16.mxu0 0
        %1136 = vmatpush1.bf16.msra.mxu0 %v1119
        %1137 = vmatprep.subr.bf16.mxu0 0
        %1138 = vmatpush2.bf16.msra.mxu0 0
        %1139 = vmatprep.subr.bf16.mxu0 0
        %1140 = vmatpush2.bf16.msra.mxu0 0
        %1141 = vmatprep.subr.bf16.mxu0 0
        %1142 = vmatpush2.bf16.msra.mxu0 0
        %1143 = vmatprep.subr.bf16.mxu0 0
        %1144 = vmatpush2.bf16.msra.mxu0 0
        %1145 = vmatprep.subr.bf16.mxu0 0
        %1146 = vmatpush2.bf16.msra.mxu0 0
        %1147 = vmatprep.subr.bf16.mxu0 0
        %1148 = vmatpush2.bf16.msra.mxu0 0
        %1149 = vmatprep.subr.bf16.mxu0 0
        %1150 = vmatpush2.bf16.msra.mxu0 0
        %1151 = vmatprep.subr.bf16.mxu0 0
        %1152 = vmatpush2.bf16.msra.mxu0 0
        %1153 = vmatprep.mubr.bf16.mxu0 0
        %1154 = vmatmul.mubr.bf16.gmra.mxu0 %v1081
        %v1155 = vpop.f32.mrf.mxu0
        %v1156 = vadd.f32 0.0, %v1155
        %v1157 = vpop.f32.mrf.mxu0
        %v1158 = vpop.f32.mrf.mxu0
        %v1159 = vadd.f32 0.0, %v1158
        %v1160 = vpop.f32.mrf.mxu0
        %1161 = vmatprep.mubr.bf16.mxu0 0
        %1162 = vmatmul.mubr.bf16.gmra.mxu0 %v1083
        %v1163 = vpop.f32.mrf.mxu0
        %v1164 = vadd.f32 0.0, %v1163
        %v1165 = vpop.f32.mrf.mxu0
        %v1166 = vpop.f32.mrf.mxu0
        %v1167 = vadd.f32 0.0, %v1166
        %v1168 = vpop.f32.mrf.mxu0
        %1169 = vmatprep.mubr.bf16.mxu0 0
        %1170 = vmatmul.mubr.bf16.gmra.mxu0 %v1085
        %v1171 = vpop.f32.mrf.mxu0
        %v1172 = vadd.f32 0.0, %v1171
        %v1173 = vpop.f32.mrf.mxu0
        %v1174 = vpop.f32.mrf.mxu0
        %v1175 = vadd.f32 0.0, %v1174
        %v1176 = vpop.f32.mrf.mxu0
        %1177 = vmatprep.mubr.bf16.mxu0 0
        %1178 = vmatmul.mubr.bf16.gmra.mxu0 %v1087
        %v1179 = vpop.f32.mrf.mxu0
        %v1180 = vadd.f32 0.0, %v1179
        %v1181 = vpop.f32.mrf.mxu0
        %v1182 = vpop.f32.mrf.mxu0
        %v1183 = vadd.f32 0.0, %v1182
        %v1184 = vpop.f32.mrf.mxu0
        %1185 = vmatprep.mubr.bf16.mxu0 0
        %1186 = vmatmul.mubr.bf16.gmra.mxu0 %v1089
        %v1187 = vpop.f32.mrf.mxu0
        %v1188 = vadd.f32 0.0, %v1187
        %v1189 = vpop.f32.mrf.mxu0
        %v1190 = vpop.f32.mrf.mxu0
        %v1191 = vadd.f32 0.0, %v1190
        %v1192 = vpop.f32.mrf.mxu0
        %1193 = vmatprep.mubr.bf16.mxu0 0
        %1194 = vmatmul.mubr.bf16.gmra.mxu0 %v1091
        %v1195 = vpop.f32.mrf.mxu0
        %v1196 = vadd.f32 0.0, %v1195
        %v1197 = vpop.f32.mrf.mxu0
        %v1198 = vpop.f32.mrf.mxu0
        %v1199 = vadd.f32 0.0, %v1198
        %v1200 = vpop.f32.mrf.mxu0
        %1201 = vmatprep.mubr.bf16.mxu0 0
        %1202 = vmatmul.mubr.bf16.gmra.mxu0 %v1093
        %v1203 = vpop.f32.mrf.mxu0
        %v1204 = vadd.f32 0.0, %v1203
        %v1205 = vpop.f32.mrf.mxu0
        %v1206 = vpop.f32.mrf.mxu0
        %v1207 = vadd.f32 0.0, %v1206
        %v1208 = vpop.f32.mrf.mxu0
        %1209 = vmatprep.mubr.bf16.mxu0 0
        %1210 = vmatmul.mubr.bf16.gmra.mxu0 %v1095
        %v1211 = vpop.f32.mrf.mxu0
        %v1212 = vadd.f32 0.0, %v1211
        %v1213 = vpop.f32.mrf.mxu0
        %v1214 = vpop.f32.mrf.mxu0
        %v1215 = vadd.f32 0.0, %v1214
        %v1216 = vpop.f32.mrf.mxu0
        %1217 = vmatprep.mubr.bf16.mxu0 0
        %1218 = vmatmul.mubr.bf16.gmra.mxu0 %v1097
        %v1219 = vpop.f32.mrf.mxu0
        %v1220 = vadd.f32 0.0, %v1219
        %v1221 = vpop.f32.mrf.mxu0
        %v1222 = vpop.f32.mrf.mxu0
        %v1223 = vadd.f32 0.0, %v1222
        %v1224 = vpop.f32.mrf.mxu0
        %1225 = vmatprep.mubr.bf16.mxu0 0
        %1226 = vmatmul.mubr.bf16.gmra.mxu0 %v1099
        %v1227 = vpop.f32.mrf.mxu0
        %v1228 = vadd.f32 0.0, %v1227
        %v1229 = vpop.f32.mrf.mxu0
        %v1230 = vpop.f32.mrf.mxu0
        %v1231 = vadd.f32 0.0, %v1230
        %v1232 = vpop.f32.mrf.mxu0
        %1233 = vmatprep.mubr.bf16.mxu0 0
        %1234 = vmatmul.mubr.bf16.gmra.mxu0 %v1101
        %v1235 = vpop.f32.mrf.mxu0
        %v1236 = vadd.f32 0.0, %v1235
        %v1237 = vpop.f32.mrf.mxu0
        %v1238 = vpop.f32.mrf.mxu0
        %v1239 = vadd.f32 0.0, %v1238
        %v1240 = vpop.f32.mrf.mxu0
        %1241 = vmatprep.mubr.bf16.mxu0 0
        %1242 = vmatmul.mubr.bf16.gmra.mxu0 %v1103
        %v1243 = vpop.f32.mrf.mxu0
        %v1244 = vadd.f32 0.0, %v1243
        %v1245 = vpop.f32.mrf.mxu0
        %v1246 = vpop.f32.mrf.mxu0
        %v1247 = vadd.f32 0.0, %v1246
        %v1248 = vpop.f32.mrf.mxu0
        %1249 = vmatprep.mubr.bf16.mxu0 0
        %1250 = vmatmul.mubr.bf16.gmra.mxu0 %v1105
        %v1251 = vpop.f32.mrf.mxu0
        %v1252 = vadd.f32 0.0, %v1251
        %v1253 = vpop.f32.mrf.mxu0
        %v1254 = vpop.f32.mrf.mxu0
        %v1255 = vadd.f32 0.0, %v1254
        %v1256 = vpop.f32.mrf.mxu0
        %1257 = vmatprep.mubr.bf16.mxu0 0
        %1258 = vmatmul.mubr.bf16.gmra.mxu0 %v1107
        %v1259 = vpop.f32.mrf.mxu0
        %v1260 = vadd.f32 0.0, %v1259
        %v1261 = vpop.f32.mrf.mxu0
        %v1262 = vpop.f32.mrf.mxu0
        %v1263 = vadd.f32 0.0, %v1262
        %v1264 = vpop.f32.mrf.mxu0
        %1265 = vmatprep.mubr.bf16.mxu0 0
        %1266 = vmatmul.mubr.bf16.gmra.mxu0 %v1109
        %v1267 = vpop.f32.mrf.mxu0
        %v1268 = vadd.f32 0.0, %v1267
        %v1269 = vpop.f32.mrf.mxu0
        %v1270 = vpop.f32.mrf.mxu0
        %v1271 = vadd.f32 0.0, %v1270
        %v1272 = vpop.f32.mrf.mxu0
        %1273 = vmatprep.mubr.bf16.mxu0 0
        %1274 = vmatmul.mubr.bf16.gmra.mxu0 %v1111
        %v1275 = vpop.f32.mrf.mxu0
        %v1276 = vadd.f32 0.0, %v1275
        %v1277 = vpop.f32.mrf.mxu0
        %v1278 = vpop.f32.mrf.mxu0
        %v1279 = vadd.f32 0.0, %v1278
        %v1280 = vpop.f32.mrf.mxu0
        %1281 = vmatprep.mubr.bf16.mxu0 0
        %1282 = vmatmul.mubr.bf16.gmra.mxu0 %v1113
        %v1283 = vpop.f32.mrf.mxu0
        %v1284 = vadd.f32 0.0, %v1283
        %v1285 = vpop.f32.mrf.mxu0
        %v1286 = vpop.f32.mrf.mxu0
        %v1287 = vadd.f32 0.0, %v1286
        %v1288 = vpop.f32.mrf.mxu0
        %1289 = vmatprep.mubr.bf16.mxu0 0
        %1290 = vmatmul.mubr.bf16.gmra.mxu0 %v1115
        %v1291 = vpop.f32.mrf.mxu0
        %v1292 = vadd.f32 0.0, %v1291
        %v1293 = vpop.f32.mrf.mxu0
        %v1294 = vpop.f32.mrf.mxu0
        %v1295 = vadd.f32 0.0, %v1294
        %v1296 = vpop.f32.mrf.mxu0
        %1297 = vdwg.mxu0
        %v1300 = vunpack.c.l.b16 %v1039
        %v1301 = vunpack.c.l.b16 %v1040
        %v1302 = vpack.c.b16 %v1301, %v1300
        %v1303 = vsel %vm1080, %v1004, 0
        %v1306 = vsel %vm1117, %v1302, 0
        %1308 = vmatprep.subr.bf16.mxu0 0
        %1309 = vmatpush1.bf16.msra.mxu0 0
        %1310 = vmatprep.subr.bf16.mxu0 0
        %1311 = vmatpush1.bf16.msra.mxu0 0
        %1312 = vmatprep.subr.bf16.mxu0 0
        %1313 = vmatpush1.bf16.msra.mxu0 0
        %1314 = vmatprep.subr.bf16.mxu0 0
        %1315 = vmatpush1.bf16.msra.mxu0 0
        %1316 = vmatprep.subr.bf16.mxu0 0
        %1317 = vmatpush1.bf16.msra.mxu0 0
        %1318 = vmatprep.subr.bf16.mxu0 0
        %1319 = vmatpush1.bf16.msra.mxu0 0
        %1320 = vmatprep.subr.bf16.mxu0 0
        %1321 = vmatpush1.bf16.msra.mxu0 0
        %1322 = vmatprep.subr.bf16.mxu0 0
        %1323 = vmatpush1.bf16.msra.mxu0 %v1306
        %1324 = vmatprep.subr.bf16.mxu0 0
        %1325 = vmatpush2.bf16.msra.mxu0 0
        %1326 = vmatprep.subr.bf16.mxu0 0
        %1327 = vmatpush2.bf16.msra.mxu0 0
        %1328 = vmatprep.subr.bf16.mxu0 0
        %1329 = vmatpush2.bf16.msra.mxu0 0
        %1330 = vmatprep.subr.bf16.mxu0 0
        %1331 = vmatpush2.bf16.msra.mxu0 0
        %1332 = vmatprep.subr.bf16.mxu0 0
        %1333 = vmatpush2.bf16.msra.mxu0 0
        %1334 = vmatprep.subr.bf16.mxu0 0
        %1335 = vmatpush2.bf16.msra.mxu0 0
        %1336 = vmatprep.subr.bf16.mxu0 0
        %1337 = vmatpush2.bf16.msra.mxu0 0
        %1338 = vmatprep.subr.bf16.mxu0 0
        %1339 = vmatpush2.bf16.msra.mxu0 0
        %1340 = vmatprep.mubr.bf16.mxu0 0
        %1341 = vmatmul.mubr.bf16.gmra.mxu0 %v1303
        %v1342 = vpop.f32.mrf.mxu0
        %v1343 = vadd.f32 %v1156, %v1342
        %v1344 = vpop.f32.mrf.mxu0
        %v1345 = vpop.f32.mrf.mxu0
        %v1346 = vadd.f32 %v1159, %v1345
        %v1347 = vpop.f32.mrf.mxu0
        %1348 = vmatprep.mubr.bf16.mxu0 0
        %1349 = vmatmul.mubr.bf16.gmra.mxu0 %v1081
        %v1350 = vpop.f32.mrf.mxu0
        %v1351 = vadd.f32 %v1164, %v1350
        %v1352 = vpop.f32.mrf.mxu0
        %v1353 = vpop.f32.mrf.mxu0
        %v1354 = vadd.f32 %v1167, %v1353
        %v1355 = vpop.f32.mrf.mxu0
        %1356 = vmatprep.mubr.bf16.mxu0 0
        %1357 = vmatmul.mubr.bf16.gmra.mxu0 %v1083
        %v1358 = vpop.f32.mrf.mxu0
        %v1359 = vadd.f32 %v1172, %v1358
        %v1360 = vpop.f32.mrf.mxu0
        %v1361 = vpop.f32.mrf.mxu0
        %v1362 = vadd.f32 %v1175, %v1361
        %v1363 = vpop.f32.mrf.mxu0
        %1364 = vmatprep.mubr.bf16.mxu0 0
        %1365 = vmatmul.mubr.bf16.gmra.mxu0 %v1085
        %v1366 = vpop.f32.mrf.mxu0
        %v1367 = vadd.f32 %v1180, %v1366
        %v1368 = vpop.f32.mrf.mxu0
        %v1369 = vpop.f32.mrf.mxu0
        %v1370 = vadd.f32 %v1183, %v1369
        %v1371 = vpop.f32.mrf.mxu0
        %1372 = vmatprep.mubr.bf16.mxu0 0
        %1373 = vmatmul.mubr.bf16.gmra.mxu0 %v1087
        %v1374 = vpop.f32.mrf.mxu0
        %v1375 = vadd.f32 %v1188, %v1374
        %v1376 = vpop.f32.mrf.mxu0
        %v1377 = vpop.f32.mrf.mxu0
        %v1378 = vadd.f32 %v1191, %v1377
        %v1379 = vpop.f32.mrf.mxu0
        %1380 = vmatprep.mubr.bf16.mxu0 0
        %1381 = vmatmul.mubr.bf16.gmra.mxu0 %v1089
        %v1382 = vpop.f32.mrf.mxu0
        %v1383 = vadd.f32 %v1196, %v1382
        %v1384 = vpop.f32.mrf.mxu0
        %v1385 = vpop.f32.mrf.mxu0
        %v1386 = vadd.f32 %v1199, %v1385
        %v1387 = vpop.f32.mrf.mxu0
        %1388 = vmatprep.mubr.bf16.mxu0 0
        %1389 = vmatmul.mubr.bf16.gmra.mxu0 %v1091
        %v1390 = vpop.f32.mrf.mxu0
        %v1391 = vadd.f32 %v1204, %v1390
        %v1392 = vpop.f32.mrf.mxu0
        %v1393 = vpop.f32.mrf.mxu0
        %v1394 = vadd.f32 %v1207, %v1393
        %v1395 = vpop.f32.mrf.mxu0
        %1396 = vmatprep.mubr.bf16.mxu0 0
        %1397 = vmatmul.mubr.bf16.gmra.mxu0 %v1093
        %v1398 = vpop.f32.mrf.mxu0
        %v1399 = vadd.f32 %v1212, %v1398
        %v1400 = vpop.f32.mrf.mxu0
        %v1401 = vpop.f32.mrf.mxu0
        %v1402 = vadd.f32 %v1215, %v1401
        %v1403 = vpop.f32.mrf.mxu0
        %1404 = vmatprep.mubr.bf16.mxu0 0
        %1405 = vmatmul.mubr.bf16.gmra.mxu0 %v1095
        %v1406 = vpop.f32.mrf.mxu0
        %v1407 = vadd.f32 %v1220, %v1406
        %v1408 = vpop.f32.mrf.mxu0
        %v1409 = vpop.f32.mrf.mxu0
        %v1410 = vadd.f32 %v1223, %v1409
        %v1411 = vpop.f32.mrf.mxu0
        %1412 = vmatprep.mubr.bf16.mxu0 0
        %1413 = vmatmul.mubr.bf16.gmra.mxu0 %v1097
        %v1414 = vpop.f32.mrf.mxu0
        %v1415 = vadd.f32 %v1228, %v1414
        %v1416 = vpop.f32.mrf.mxu0
        %v1417 = vpop.f32.mrf.mxu0
        %v1418 = vadd.f32 %v1231, %v1417
        %v1419 = vpop.f32.mrf.mxu0
        %1420 = vmatprep.mubr.bf16.mxu0 0
        %1421 = vmatmul.mubr.bf16.gmra.mxu0 %v1099
        %v1422 = vpop.f32.mrf.mxu0
        %v1423 = vadd.f32 %v1236, %v1422
        %v1424 = vpop.f32.mrf.mxu0
        %v1425 = vpop.f32.mrf.mxu0
        %v1426 = vadd.f32 %v1239, %v1425
        %v1427 = vpop.f32.mrf.mxu0
        %1428 = vmatprep.mubr.bf16.mxu0 0
        %1429 = vmatmul.mubr.bf16.gmra.mxu0 %v1101
        %v1430 = vpop.f32.mrf.mxu0
        %v1431 = vadd.f32 %v1244, %v1430
        %v1432 = vpop.f32.mrf.mxu0
        %v1433 = vpop.f32.mrf.mxu0
        %v1434 = vadd.f32 %v1247, %v1433
        %v1435 = vpop.f32.mrf.mxu0
        %1436 = vmatprep.mubr.bf16.mxu0 0
        %1437 = vmatmul.mubr.bf16.gmra.mxu0 %v1103
        %v1438 = vpop.f32.mrf.mxu0
        %v1439 = vadd.f32 %v1252, %v1438
        %v1440 = vpop.f32.mrf.mxu0
        %v1441 = vpop.f32.mrf.mxu0
        %v1442 = vadd.f32 %v1255, %v1441
        %v1443 = vpop.f32.mrf.mxu0
        %1444 = vmatprep.mubr.bf16.mxu0 0
        %1445 = vmatmul.mubr.bf16.gmra.mxu0 %v1105
        %v1446 = vpop.f32.mrf.mxu0
        %v1447 = vadd.f32 %v1260, %v1446
        %v1448 = vpop.f32.mrf.mxu0
        %v1449 = vpop.f32.mrf.mxu0
        %v1450 = vadd.f32 %v1263, %v1449
        %v1451 = vpop.f32.mrf.mxu0
        %1452 = vmatprep.mubr.bf16.mxu0 0
        %1453 = vmatmul.mubr.bf16.gmra.mxu0 %v1107
        %v1454 = vpop.f32.mrf.mxu0
        %v1455 = vadd.f32 %v1268, %v1454
        %v1456 = vpop.f32.mrf.mxu0
        %v1457 = vpop.f32.mrf.mxu0
        %v1458 = vadd.f32 %v1271, %v1457
        %v1459 = vpop.f32.mrf.mxu0
        %1460 = vmatprep.mubr.bf16.mxu0 0
        %1461 = vmatmul.mubr.bf16.gmra.mxu0 %v1109
        %v1462 = vpop.f32.mrf.mxu0
        %v1463 = vadd.f32 %v1276, %v1462
        %v1464 = vpop.f32.mrf.mxu0
        %v1465 = vpop.f32.mrf.mxu0
        %v1466 = vadd.f32 %v1279, %v1465
        %v1467 = vpop.f32.mrf.mxu0
        %1468 = vmatprep.mubr.bf16.mxu0 0
        %1469 = vmatmul.mubr.bf16.gmra.mxu0 %v1111
        %v1470 = vpop.f32.mrf.mxu0
        %v1471 = vadd.f32 %v1284, %v1470
        %v1472 = vpop.f32.mrf.mxu0
        %v1473 = vpop.f32.mrf.mxu0
        %v1474 = vadd.f32 %v1287, %v1473
        %v1475 = vpop.f32.mrf.mxu0
        %1476 = vmatprep.mubr.bf16.mxu0 0
        %1477 = vmatmul.mubr.bf16.gmra.mxu0 %v1113
        %v1478 = vpop.f32.mrf.mxu0
        %v1479 = vadd.f32 %v1292, %v1478
        %v1480 = vpop.f32.mrf.mxu0
        %v1481 = vpop.f32.mrf.mxu0
        %v1482 = vadd.f32 %v1295, %v1481
        %v1483 = vpop.f32.mrf.mxu0
        %1484 = vdwg.mxu0
        %v1487 = vunpack.c.l.b16 %v474
        %v1488 = vunpack.c.l.b16 %v475
        %v1489 = vpack.c.b16 %v1488, %v1487
        %v1491 = vunpack.c.l.b16 %v476
        %v1492 = vpack.c.b16 %v1491, %v1491
        %v1494 = vshrl.u32 %v1489, 16
        %v1496 = vshll.u32 %v1489, 16
        %v1498 = vrot.slane %v1496, 1
        %v1499 = vor.u32 %v1494, %v1498
        %v1501 = vshll.u32 %v1492, 16
        %v1503 = vrot.slane %v1501, 1
        %v1504 = vsel %vm621, %v1499, %v1503
        %1505 = vrot.lane.b32.xlu0 %v1504, 4
        %v1506 = vpop.permute.xlu0 %1505
        %v1507 = vrot.slane %v1489, 1
        %v1508 = vrot.slane %v1492, 1
        %v1509 = vsel %vm874, %v1507, %v1508
        %1510 = vrot.lane.b32.xlu0 %v1509, 8
        %v1511 = vpop.permute.xlu0 %1510
        %v1513 = vsel %vm965, %v1489, %v1506
        %v1515 = vsel %vm1002, %v1513, %v1511
        %s1516 = scalar_lea.vmem %s2, 16
        %v1517 = vld [vmem:[%s1516] sm:$0xf]
        %v1518 = vld [vmem:[%s1516 + $0x4] sm:$0x3]
        %v1521 = vunpack.c.l.b16 %v1517
        %v1522 = vunpack.c.l.b16 %v1518
        %v1523 = vpack.c.b16 %v1522, %v1521
        %v1524 = vsel %vm1080, %v1515, 0
        %v1527 = vsel %vm1117, %v1523, 0
        %1529 = vmatprep.subr.bf16.mxu0 0
        %1530 = vmatpush1.bf16.msra.mxu0 0
        %1531 = vmatprep.subr.bf16.mxu0 0
        %1532 = vmatpush1.bf16.msra.mxu0 0
        %1533 = vmatprep.subr.bf16.mxu0 0
        %1534 = vmatpush1.bf16.msra.mxu0 0
        %1535 = vmatprep.subr.bf16.mxu0 0
        %1536 = vmatpush1.bf16.msra.mxu0 0
        %1537 = vmatprep.subr.bf16.mxu0 0
        %1538 = vmatpush1.bf16.msra.mxu0 0
        %1539 = vmatprep.subr.bf16.mxu0 0
        %1540 = vmatpush1.bf16.msra.mxu0 0
        %1541 = vmatprep.subr.bf16.mxu0 0
        %1542 = vmatpush1.bf16.msra.mxu0 0
        %1543 = vmatprep.subr.bf16.mxu0 0
        %1544 = vmatpush1.bf16.msra.mxu0 %v1527
        %1545 = vmatprep.subr.bf16.mxu0 0
        %1546 = vmatpush2.bf16.msra.mxu0 0
        %1547 = vmatprep.subr.bf16.mxu0 0
        %1548 = vmatpush2.bf16.msra.mxu0 0
        %1549 = vmatprep.subr.bf16.mxu0 0
        %1550 = vmatpush2.bf16.msra.mxu0 0
        %1551 = vmatprep.subr.bf16.mxu0 0
        %1552 = vmatpush2.bf16.msra.mxu0 0
        %1553 = vmatprep.subr.bf16.mxu0 0
        %1554 = vmatpush2.bf16.msra.mxu0 0
        %1555 = vmatprep.subr.bf16.mxu0 0
        %1556 = vmatpush2.bf16.msra.mxu0 0
        %1557 = vmatprep.subr.bf16.mxu0 0
        %1558 = vmatpush2.bf16.msra.mxu0 0
        %1559 = vmatprep.subr.bf16.mxu0 0
        %1560 = vmatpush2.bf16.msra.mxu0 0
        %1561 = vmatprep.mubr.bf16.mxu0 0
        %1562 = vmatmul.mubr.bf16.gmra.mxu0 %v1083
        %v1563 = vpop.f32.mrf.mxu0
        %v1564 = vadd.f32 0.0, %v1563
        %v1565 = vpop.f32.mrf.mxu0
        %v1566 = vpop.f32.mrf.mxu0
        %v1567 = vadd.f32 0.0, %v1566
        %v1568 = vpop.f32.mrf.mxu0
        %1569 = vmatprep.mubr.bf16.mxu0 0
        %1570 = vmatmul.mubr.bf16.gmra.mxu0 %v1085
        %v1571 = vpop.f32.mrf.mxu0
        %v1572 = vadd.f32 0.0, %v1571
        %v1573 = vpop.f32.mrf.mxu0
        %v1574 = vpop.f32.mrf.mxu0
        %v1575 = vadd.f32 0.0, %v1574
        %v1576 = vpop.f32.mrf.mxu0
        %1577 = vmatprep.mubr.bf16.mxu0 0
        %1578 = vmatmul.mubr.bf16.gmra.mxu0 %v1087
        %v1579 = vpop.f32.mrf.mxu0
        %v1580 = vadd.f32 0.0, %v1579
        %v1581 = vpop.f32.mrf.mxu0
        %v1582 = vpop.f32.mrf.mxu0
        %v1583 = vadd.f32 0.0, %v1582
        %v1584 = vpop.f32.mrf.mxu0
        %1585 = vmatprep.mubr.bf16.mxu0 0
        %1586 = vmatmul.mubr.bf16.gmra.mxu0 %v1089
        %v1587 = vpop.f32.mrf.mxu0
        %v1588 = vadd.f32 0.0, %v1587
        %v1589 = vpop.f32.mrf.mxu0
        %v1590 = vpop.f32.mrf.mxu0
        %v1591 = vadd.f32 0.0, %v1590
        %v1592 = vpop.f32.mrf.mxu0
        %1593 = vmatprep.mubr.bf16.mxu0 0
        %1594 = vmatmul.mubr.bf16.gmra.mxu0 %v1091
        %v1595 = vpop.f32.mrf.mxu0
        %v1596 = vadd.f32 0.0, %v1595
        %v1597 = vpop.f32.mrf.mxu0
        %v1598 = vpop.f32.mrf.mxu0
        %v1599 = vadd.f32 0.0, %v1598
        %v1600 = vpop.f32.mrf.mxu0
        %1601 = vmatprep.mubr.bf16.mxu0 0
        %1602 = vmatmul.mubr.bf16.gmra.mxu0 %v1093
        %v1603 = vpop.f32.mrf.mxu0
        %v1604 = vadd.f32 0.0, %v1603
        %v1605 = vpop.f32.mrf.mxu0
        %v1606 = vpop.f32.mrf.mxu0
        %v1607 = vadd.f32 0.0, %v1606
        %v1608 = vpop.f32.mrf.mxu0
        %1609 = vmatprep.mubr.bf16.mxu0 0
        %1610 = vmatmul.mubr.bf16.gmra.mxu0 %v1095
        %v1611 = vpop.f32.mrf.mxu0
        %v1612 = vadd.f32 0.0, %v1611
        %v1613 = vpop.f32.mrf.mxu0
        %v1614 = vpop.f32.mrf.mxu0
        %v1615 = vadd.f32 0.0, %v1614
        %v1616 = vpop.f32.mrf.mxu0
        %1617 = vmatprep.mubr.bf16.mxu0 0
        %1618 = vmatmul.mubr.bf16.gmra.mxu0 %v1097
        %v1619 = vpop.f32.mrf.mxu0
        %v1620 = vadd.f32 0.0, %v1619
        %v1621 = vpop.f32.mrf.mxu0
        %v1622 = vpop.f32.mrf.mxu0
        %v1623 = vadd.f32 0.0, %v1622
        %v1624 = vpop.f32.mrf.mxu0
        %1625 = vmatprep.mubr.bf16.mxu0 0
        %1626 = vmatmul.mubr.bf16.gmra.mxu0 %v1099
        %v1627 = vpop.f32.mrf.mxu0
        %v1628 = vadd.f32 0.0, %v1627
        %v1629 = vpop.f32.mrf.mxu0
        %v1630 = vpop.f32.mrf.mxu0
        %v1631 = vadd.f32 0.0, %v1630
        %v1632 = vpop.f32.mrf.mxu0
        %1633 = vmatprep.mubr.bf16.mxu0 0
        %1634 = vmatmul.mubr.bf16.gmra.mxu0 %v1101
        %v1635 = vpop.f32.mrf.mxu0
        %v1636 = vadd.f32 0.0, %v1635
        %v1637 = vpop.f32.mrf.mxu0
        %v1638 = vpop.f32.mrf.mxu0
        %v1639 = vadd.f32 0.0, %v1638
        %v1640 = vpop.f32.mrf.mxu0
        %1641 = vmatprep.mubr.bf16.mxu0 0
        %1642 = vmatmul.mubr.bf16.gmra.mxu0 %v1103
        %v1643 = vpop.f32.mrf.mxu0
        %v1644 = vadd.f32 0.0, %v1643
        %v1645 = vpop.f32.mrf.mxu0
        %v1646 = vpop.f32.mrf.mxu0
        %v1647 = vadd.f32 0.0, %v1646
        %v1648 = vpop.f32.mrf.mxu0
        %1649 = vmatprep.mubr.bf16.mxu0 0
        %1650 = vmatmul.mubr.bf16.gmra.mxu0 %v1105
        %v1651 = vpop.f32.mrf.mxu0
        %v1652 = vadd.f32 0.0, %v1651
        %v1653 = vpop.f32.mrf.mxu0
        %v1654 = vpop.f32.mrf.mxu0
        %v1655 = vadd.f32 0.0, %v1654
        %v1656 = vpop.f32.mrf.mxu0
        %1657 = vmatprep.mubr.bf16.mxu0 0
        %1658 = vmatmul.mubr.bf16.gmra.mxu0 %v1107
        %v1659 = vpop.f32.mrf.mxu0
        %v1660 = vadd.f32 0.0, %v1659
        %v1661 = vpop.f32.mrf.mxu0
        %v1662 = vpop.f32.mrf.mxu0
        %v1663 = vadd.f32 0.0, %v1662
        %v1664 = vpop.f32.mrf.mxu0
        %1665 = vmatprep.mubr.bf16.mxu0 0
        %1666 = vmatmul.mubr.bf16.gmra.mxu0 %v1109
        %v1667 = vpop.f32.mrf.mxu0
        %v1668 = vadd.f32 0.0, %v1667
        %v1669 = vpop.f32.mrf.mxu0
        %v1670 = vpop.f32.mrf.mxu0
        %v1671 = vadd.f32 0.0, %v1670
        %v1672 = vpop.f32.mrf.mxu0
        %1673 = vmatprep.mubr.bf16.mxu0 0
        %1674 = vmatmul.mubr.bf16.gmra.mxu0 %v1111
        %v1675 = vpop.f32.mrf.mxu0
        %v1676 = vadd.f32 0.0, %v1675
        %v1677 = vpop.f32.mrf.mxu0
        %v1678 = vpop.f32.mrf.mxu0
        %v1679 = vadd.f32 0.0, %v1678
        %v1680 = vpop.f32.mrf.mxu0
        %1681 = vmatprep.mubr.bf16.mxu0 0
        %1682 = vmatmul.mubr.bf16.gmra.mxu0 %v1113
        %v1683 = vpop.f32.mrf.mxu0
        %v1684 = vadd.f32 0.0, %v1683
        %v1685 = vpop.f32.mrf.mxu0
        %v1686 = vpop.f32.mrf.mxu0
        %v1687 = vadd.f32 0.0, %v1686
        %v1688 = vpop.f32.mrf.mxu0
        %1689 = vmatprep.mubr.bf16.mxu0 0
        %1690 = vmatmul.mubr.bf16.gmra.mxu0 %v1115
        %v1691 = vpop.f32.mrf.mxu0
        %v1692 = vadd.f32 0.0, %v1691
        %v1693 = vpop.f32.mrf.mxu0
        %v1694 = vpop.f32.mrf.mxu0
        %v1695 = vadd.f32 0.0, %v1694
        %v1696 = vpop.f32.mrf.mxu0
        %1697 = vmatprep.mubr.bf16.mxu0 0
        %1698 = vmatmul.mubr.bf16.gmra.mxu0 %v1524
        %v1699 = vpop.f32.mrf.mxu0
        %v1700 = vadd.f32 0.0, %v1699
        %v1701 = vpop.f32.mrf.mxu0
        %v1702 = vpop.f32.mrf.mxu0
        %v1703 = vadd.f32 0.0, %v1702
        %v1704 = vpop.f32.mrf.mxu0
        %1705 = vdwg.mxu0
        %v1706 = vadd.f32 %v1343, %v1564
        %v1707 = vadd.f32 %v1346, %v1567
        %v1708 = vadd.f32 %v1351, %v1572
        %v1709 = vadd.f32 %v1354, %v1575
        %v1710 = vadd.f32 %v1359, %v1580
        %v1711 = vadd.f32 %v1362, %v1583
        %v1712 = vadd.f32 %v1367, %v1588
        %v1713 = vadd.f32 %v1370, %v1591
        %v1714 = vadd.f32 %v1375, %v1596
        %v1715 = vadd.f32 %v1378, %v1599
        %v1716 = vadd.f32 %v1383, %v1604
        %v1717 = vadd.f32 %v1386, %v1607
        %v1718 = vadd.f32 %v1391, %v1612
        %v1719 = vadd.f32 %v1394, %v1615
        %v1720 = vadd.f32 %v1399, %v1620
        %v1721 = vadd.f32 %v1402, %v1623
        %v1722 = vadd.f32 %v1407, %v1628
        %v1723 = vadd.f32 %v1410, %v1631
        %v1724 = vadd.f32 %v1415, %v1636
        %v1725 = vadd.f32 %v1418, %v1639
        %v1726 = vadd.f32 %v1423, %v1644
        %v1727 = vadd.f32 %v1426, %v1647
        %v1728 = vadd.f32 %v1431, %v1652
        %v1729 = vadd.f32 %v1434, %v1655
        %v1730 = vadd.f32 %v1439, %v1660
        %v1731 = vadd.f32 %v1442, %v1663
        %v1732 = vadd.f32 %v1447, %v1668
        %v1733 = vadd.f32 %v1450, %v1671
        %v1734 = vadd.f32 %v1455, %v1676
        %v1735 = vadd.f32 %v1458, %v1679
        %v1736 = vadd.f32 %v1463, %v1684
        %v1737 = vadd.f32 %v1466, %v1687
        %v1738 = vadd.f32 %v1471, %v1692
        %v1739 = vadd.f32 %v1474, %v1695
        %v1740 = vadd.f32 %v1479, %v1700
        %v1741 = vadd.f32 %v1482, %v1703
        %v1742 = vld [vmem:[%s3] sm:$0x1]
        %v1744 = vlaneseq
        %v1745 = vshrl.u32 %v1744, 7
        %v1746 = vsub.s32 0, %v1745
        %v1747 = vrot.slane %v1742, %v1746
        %v1749 = vadd.f32 %v1706, %v1747
        %v1750 = vadd.f32 %v1707, %v1747
        %v1751 = vadd.f32 %v1708, %v1747
        %v1752 = vadd.f32 %v1709, %v1747
        %v1753 = vadd.f32 %v1710, %v1747
        %v1754 = vadd.f32 %v1711, %v1747
        %v1755 = vadd.f32 %v1712, %v1747
        %v1756 = vadd.f32 %v1713, %v1747
        %v1757 = vadd.f32 %v1714, %v1747
        %v1758 = vadd.f32 %v1715, %v1747
        %v1759 = vadd.f32 %v1716, %v1747
        %v1760 = vadd.f32 %v1717, %v1747
        %v1761 = vadd.f32 %v1718, %v1747
        %v1762 = vadd.f32 %v1719, %v1747
        %v1763 = vadd.f32 %v1720, %v1747
        %v1764 = vadd.f32 %v1721, %v1747
        %v1765 = vadd.f32 %v1722, %v1747
        %v1766 = vadd.f32 %v1723, %v1747
        %v1767 = vadd.f32 %v1724, %v1747
        %v1768 = vadd.f32 %v1725, %v1747
        %v1769 = vadd.f32 %v1726, %v1747
        %v1770 = vadd.f32 %v1727, %v1747
        %v1771 = vadd.f32 %v1728, %v1747
        %v1772 = vadd.f32 %v1729, %v1747
        %v1773 = vadd.f32 %v1730, %v1747
        %v1774 = vadd.f32 %v1731, %v1747
        %v1775 = vadd.f32 %v1732, %v1747
        %v1776 = vadd.f32 %v1733, %v1747
        %v1777 = vadd.f32 %v1734, %v1747
        %v1778 = vadd.f32 %v1735, %v1747
        %v1779 = vadd.f32 %v1736, %v1747
        %v1780 = vadd.f32 %v1737, %v1747
        %v1781 = vadd.f32 %v1738, %v1747
        %v1782 = vadd.f32 %v1739, %v1747
        %v1783 = vadd.f32 %v1740, %v1747
        %v1784 = vadd.f32 %v1741, %v1747
        %vm1785 = vcmp.ge.f32.partialorder %v1749, 0.0
        %vm1786 = vcmp.ge.f32.partialorder %v1750, 0.0
        %vm1787 = vcmp.ge.f32.partialorder %v1751, 0.0
        %vm1788 = vcmp.ge.f32.partialorder %v1752, 0.0
        %vm1789 = vcmp.ge.f32.partialorder %v1753, 0.0
        %vm1790 = vcmp.ge.f32.partialorder %v1754, 0.0
        %vm1791 = vcmp.ge.f32.partialorder %v1755, 0.0
        %vm1792 = vcmp.ge.f32.partialorder %v1756, 0.0
        %vm1793 = vcmp.ge.f32.partialorder %v1757, 0.0
        %vm1794 = vcmp.ge.f32.partialorder %v1758, 0.0
        %vm1795 = vcmp.ge.f32.partialorder %v1759, 0.0
        %vm1796 = vcmp.ge.f32.partialorder %v1760, 0.0
        %vm1797 = vcmp.ge.f32.partialorder %v1761, 0.0
        %vm1798 = vcmp.ge.f32.partialorder %v1762, 0.0
        %vm1799 = vcmp.ge.f32.partialorder %v1763, 0.0
        %vm1800 = vcmp.ge.f32.partialorder %v1764, 0.0
        %vm1801 = vcmp.ge.f32.partialorder %v1765, 0.0
        %vm1802 = vcmp.ge.f32.partialorder %v1766, 0.0
        %vm1803 = vcmp.ge.f32.partialorder %v1767, 0.0
        %vm1804 = vcmp.ge.f32.partialorder %v1768, 0.0
        %vm1805 = vcmp.ge.f32.partialorder %v1769, 0.0
        %vm1806 = vcmp.ge.f32.partialorder %v1770, 0.0
        %vm1807 = vcmp.ge.f32.partialorder %v1771, 0.0
        %vm1808 = vcmp.ge.f32.partialorder %v1772, 0.0
        %vm1809 = vcmp.ge.f32.partialorder %v1773, 0.0
        %vm1810 = vcmp.ge.f32.partialorder %v1774, 0.0
        %vm1811 = vcmp.ge.f32.partialorder %v1775, 0.0
        %vm1812 = vcmp.ge.f32.partialorder %v1776, 0.0
        %vm1813 = vcmp.ge.f32.partialorder %v1777, 0.0
        %vm1814 = vcmp.ge.f32.partialorder %v1778, 0.0
        %vm1815 = vcmp.ge.f32.partialorder %v1779, 0.0
        %vm1816 = vcmp.ge.f32.partialorder %v1780, 0.0
        %vm1817 = vcmp.ge.f32.partialorder %v1781, 0.0
        %vm1818 = vcmp.ge.f32.partialorder %v1782, 0.0
        %vm1819 = vcmp.ge.f32.partialorder %v1783, 0.0
        %vm1820 = vcmp.ge.f32.partialorder %v1784, 0.0
        %v1821 = vmul.f32 %v1749, 0.1
        %v1822 = vmul.f32 %v1750, 0.1
        %v1823 = vmul.f32 %v1751, 0.1
        %v1824 = vmul.f32 %v1752, 0.1
        %v1825 = vmul.f32 %v1753, 0.1
        %v1826 = vmul.f32 %v1754, 0.1
        %v1827 = vmul.f32 %v1755, 0.1
        %v1828 = vmul.f32 %v1756, 0.1
        %v1829 = vmul.f32 %v1757, 0.1
        %v1830 = vmul.f32 %v1758, 0.1
        %v1831 = vmul.f32 %v1759, 0.1
        %v1832 = vmul.f32 %v1760, 0.1
        %v1833 = vmul.f32 %v1761, 0.1
        %v1834 = vmul.f32 %v1762, 0.1
        %v1835 = vmul.f32 %v1763, 0.1
        %v1836 = vmul.f32 %v1764, 0.1
        %v1837 = vmul.f32 %v1765, 0.1
        %v1838 = vmul.f32 %v1766, 0.1
        %v1839 = vmul.f32 %v1767, 0.1
        %v1840 = vmul.f32 %v1768, 0.1
        %v1841 = vmul.f32 %v1769, 0.1
        %v1842 = vmul.f32 %v1770, 0.1
        %v1843 = vmul.f32 %v1771, 0.1
        %v1844 = vmul.f32 %v1772, 0.1
        %v1845 = vmul.f32 %v1773, 0.1
        %v1846 = vmul.f32 %v1774, 0.1
        %v1847 = vmul.f32 %v1775, 0.1
        %v1848 = vmul.f32 %v1776, 0.1
        %v1849 = vmul.f32 %v1777, 0.1
        %v1850 = vmul.f32 %v1778, 0.1
        %v1851 = vmul.f32 %v1779, 0.1
        %v1852 = vmul.f32 %v1780, 0.1
        %v1853 = vmul.f32 %v1781, 0.1
        %v1854 = vmul.f32 %v1782, 0.1
        %v1855 = vmul.f32 %v1783, 0.1
        %v1856 = vmul.f32 %v1784, 0.1
        %v1857 = vsel %vm1785, %v1749, %v1821
        %v1858 = vsel %vm1786, %v1750, %v1822
        %v1859 = vsel %vm1787, %v1751, %v1823
        %v1860 = vsel %vm1788, %v1752, %v1824
        %v1861 = vsel %vm1789, %v1753, %v1825
        %v1862 = vsel %vm1790, %v1754, %v1826
        %v1863 = vsel %vm1791, %v1755, %v1827
        %v1864 = vsel %vm1792, %v1756, %v1828
        %v1865 = vsel %vm1793, %v1757, %v1829
        %v1866 = vsel %vm1794, %v1758, %v1830
        %v1867 = vsel %vm1795, %v1759, %v1831
        %v1868 = vsel %vm1796, %v1760, %v1832
        %v1869 = vsel %vm1797, %v1761, %v1833
        %v1870 = vsel %vm1798, %v1762, %v1834
        %v1871 = vsel %vm1799, %v1763, %v1835
        %v1872 = vsel %vm1800, %v1764, %v1836
        %v1873 = vsel %vm1801, %v1765, %v1837
        %v1874 = vsel %vm1802, %v1766, %v1838
        %v1875 = vsel %vm1803, %v1767, %v1839
        %v1876 = vsel %vm1804, %v1768, %v1840
        %v1877 = vsel %vm1805, %v1769, %v1841
        %v1878 = vsel %vm1806, %v1770, %v1842
        %v1879 = vsel %vm1807, %v1771, %v1843
        %v1880 = vsel %vm1808, %v1772, %v1844
        %v1881 = vsel %vm1809, %v1773, %v1845
        %v1882 = vsel %vm1810, %v1774, %v1846
        %v1883 = vsel %vm1811, %v1775, %v1847
        %v1884 = vsel %vm1812, %v1776, %v1848
        %v1885 = vsel %vm1813, %v1777, %v1849
        %v1886 = vsel %vm1814, %v1778, %v1850
        %v1887 = vsel %vm1815, %v1779, %v1851
        %v1888 = vsel %vm1816, %v1780, %v1852
        %v1889 = vsel %vm1817, %v1781, %v1853
        %v1890 = vsel %vm1818, %v1782, %v1854
        %v1891 = vsel %vm1819, %v1783, %v1855
        %v1892 = vsel %vm1820, %v1784, %v1856
        %s1893 = smul.u32 %s27, 16
        %s1894 = ssub.s32 %s1893, 1
        %v1895 = vlaneseq
        %v1896 = vshrl.u32 %v1895, 7
        %v1897 = vadd.s32 %v1896, 8
        %v1898 = vadd.s32 %v1896, 16
        %v1899 = vstv %s1894
        %v1900 = vadd.s32 %v1899, %v1896
        %v1901 = vadd.s32 %v1899, %v1897
        %v1902 = vadd.s32 %v1899, %v1898
        %vm1903 = vcmp.ge.s32.totalorder %v1900, 0
        %vm1904 = vcmp.ge.s32.totalorder %v1901, 0
        %vm1905 = vcmp.ge.s32.totalorder %v1902, 0
        %vm1906 = vcmp.lt.s32.totalorder %v1900, 16
        %vm1907 = vcmp.lt.s32.totalorder %v1901, 16
        %vm1908 = vcmp.lt.s32.totalorder %v1902, 16
        %vm1909 = vmand %vm1903, %vm1906
        %vm1910 = vmand %vm1904, %vm1907
        %vm1911 = vmand %vm1905, %vm1908
        %v1912 = vsel %vm1909, 1, 0
        %v1913 = vsel %vm1910, 1, 0
        %v1914 = vsel %vm1911, 1, 0
        %v1915 = vlaneseq
        %v1916 = vshrl.u32 %v1915, 7
        %v1917 = vsub.s32 0, %v1916
        %v1918 = vrot.slane %v1912, %v1917
        %v1919 = vlaneseq
        %v1920 = vshrl.u32 %v1919, 7
        %v1921 = vsub.s32 1, %v1920
        %v1922 = vrot.slane %v1912, %v1921
        %v1923 = vlaneseq
        %v1924 = vshrl.u32 %v1923, 7
        %v1925 = vsub.s32 2, %v1924
        %v1926 = vrot.slane %v1912, %v1925
        %v1927 = vlaneseq
        %v1928 = vshrl.u32 %v1927, 7
        %v1929 = vsub.s32 3, %v1928
        %v1930 = vrot.slane %v1912, %v1929
        %v1931 = vlaneseq
        %v1932 = vshrl.u32 %v1931, 7
        %v1933 = vsub.s32 4, %v1932
        %v1934 = vrot.slane %v1912, %v1933
        %v1935 = vlaneseq
        %v1936 = vshrl.u32 %v1935, 7
        %v1937 = vsub.s32 5, %v1936
        %v1938 = vrot.slane %v1912, %v1937
        %v1939 = vlaneseq
        %v1940 = vshrl.u32 %v1939, 7
        %v1941 = vsub.s32 6, %v1940
        %v1942 = vrot.slane %v1912, %v1941
        %v1943 = vlaneseq
        %v1944 = vshrl.u32 %v1943, 7
        %v1945 = vsub.s32 7, %v1944
        %v1946 = vrot.slane %v1912, %v1945
        %v1947 = vlaneseq
        %v1948 = vshrl.u32 %v1947, 7
        %v1949 = vsub.s32 0, %v1948
        %v1950 = vrot.slane %v1913, %v1949
        %v1951 = vlaneseq
        %v1952 = vshrl.u32 %v1951, 7
        %v1953 = vsub.s32 1, %v1952
        %v1954 = vrot.slane %v1913, %v1953
        %v1955 = vlaneseq
        %v1956 = vshrl.u32 %v1955, 7
        %v1957 = vsub.s32 2, %v1956
        %v1958 = vrot.slane %v1913, %v1957
        %v1959 = vlaneseq
        %v1960 = vshrl.u32 %v1959, 7
        %v1961 = vsub.s32 3, %v1960
        %v1962 = vrot.slane %v1913, %v1961
        %v1963 = vlaneseq
        %v1964 = vshrl.u32 %v1963, 7
        %v1965 = vsub.s32 4, %v1964
        %v1966 = vrot.slane %v1913, %v1965
        %v1967 = vlaneseq
        %v1968 = vshrl.u32 %v1967, 7
        %v1969 = vsub.s32 5, %v1968
        %v1970 = vrot.slane %v1913, %v1969
        %v1971 = vlaneseq
        %v1972 = vshrl.u32 %v1971, 7
        %v1973 = vsub.s32 6, %v1972
        %v1974 = vrot.slane %v1913, %v1973
        %v1975 = vlaneseq
        %v1976 = vshrl.u32 %v1975, 7
        %v1977 = vsub.s32 7, %v1976
        %v1978 = vrot.slane %v1913, %v1977
        %v1979 = vlaneseq
        %v1980 = vshrl.u32 %v1979, 7
        %v1981 = vsub.s32 0, %v1980
        %v1982 = vrot.slane %v1914, %v1981
        %v1983 = vlaneseq
        %v1984 = vshrl.u32 %v1983, 7
        %v1985 = vsub.s32 1, %v1984
        %v1986 = vrot.slane %v1914, %v1985
        %vm1987 = vcmp.ne.s32.totalorder %v1918, 0
        %vm1988 = vcmp.ne.s32.totalorder %v1922, 0
        %vm1989 = vcmp.ne.s32.totalorder %v1926, 0
        %vm1990 = vcmp.ne.s32.totalorder %v1930, 0
        %vm1991 = vcmp.ne.s32.totalorder %v1934, 0
        %vm1992 = vcmp.ne.s32.totalorder %v1938, 0
        %vm1993 = vcmp.ne.s32.totalorder %v1942, 0
        %vm1994 = vcmp.ne.s32.totalorder %v1946, 0
        %vm1995 = vcmp.ne.s32.totalorder %v1950, 0
        %vm1996 = vcmp.ne.s32.totalorder %v1954, 0
        %vm1997 = vcmp.ne.s32.totalorder %v1958, 0
        %vm1998 = vcmp.ne.s32.totalorder %v1962, 0
        %vm1999 = vcmp.ne.s32.totalorder %v1966, 0
        %vm2000 = vcmp.ne.s32.totalorder %v1970, 0
        %vm2001 = vcmp.ne.s32.totalorder %v1974, 0
        %vm2002 = vcmp.ne.s32.totalorder %v1978, 0
        %vm2003 = vcmp.ne.s32.totalorder %v1982, 0
        %vm2004 = vcmp.ne.s32.totalorder %v1986, 0
        %v2005 = vsel %vm1987, 1, 0
        %v2006 = vsel %vm1988, 1, 0
        %v2007 = vsel %vm1989, 1, 0
        %v2008 = vsel %vm1990, 1, 0
        %v2009 = vsel %vm1991, 1, 0
        %v2010 = vsel %vm1992, 1, 0
        %v2011 = vsel %vm1993, 1, 0
        %v2012 = vsel %vm1994, 1, 0
        %v2013 = vsel %vm1995, 1, 0
        %v2014 = vsel %vm1996, 1, 0
        %v2015 = vsel %vm1997, 1, 0
        %v2016 = vsel %vm1998, 1, 0
        %v2017 = vsel %vm1999, 1, 0
        %v2018 = vsel %vm2000, 1, 0
        %v2019 = vsel %vm2001, 1, 0
        %v2020 = vsel %vm2002, 1, 0
        %v2021 = vsel %vm2003, 1, 0
        %v2022 = vsel %vm2004, 1, 0
        %vm2023 = vcmp.eq.s32.totalorder %v2005, 1
        %vm2024 = vcmp.eq.s32.totalorder %v2006, 1
        %vm2025 = vcmp.eq.s32.totalorder %v2007, 1
        %vm2026 = vcmp.eq.s32.totalorder %v2008, 1
        %vm2027 = vcmp.eq.s32.totalorder %v2009, 1
        %vm2028 = vcmp.eq.s32.totalorder %v2010, 1
        %vm2029 = vcmp.eq.s32.totalorder %v2011, 1
        %vm2030 = vcmp.eq.s32.totalorder %v2012, 1
        %vm2031 = vcmp.eq.s32.totalorder %v2013, 1
        %vm2032 = vcmp.eq.s32.totalorder %v2014, 1
        %vm2033 = vcmp.eq.s32.totalorder %v2015, 1
        %vm2034 = vcmp.eq.s32.totalorder %v2016, 1
        %vm2035 = vcmp.eq.s32.totalorder %v2017, 1
        %vm2036 = vcmp.eq.s32.totalorder %v2018, 1
        %vm2037 = vcmp.eq.s32.totalorder %v2019, 1
        %vm2038 = vcmp.eq.s32.totalorder %v2020, 1
        %vm2039 = vcmp.eq.s32.totalorder %v2021, 1
        %vm2040 = vcmp.eq.s32.totalorder %v2022, 1
        %v2041 = vsel %vm2023, %v1857, 0.0
        %v2042 = vsel %vm2023, %v1858, 0.0
        %v2043 = vsel %vm2024, %v1859, 0.0
        %v2044 = vsel %vm2024, %v1860, 0.0
        %v2045 = vsel %vm2025, %v1861, 0.0
        %v2046 = vsel %vm2025, %v1862, 0.0
        %v2047 = vsel %vm2026, %v1863, 0.0
        %v2048 = vsel %vm2026, %v1864, 0.0
        %v2049 = vsel %vm2027, %v1865, 0.0
        %v2050 = vsel %vm2027, %v1866, 0.0
        %v2051 = vsel %vm2028, %v1867, 0.0
        %v2052 = vsel %vm2028, %v1868, 0.0
        %v2053 = vsel %vm2029, %v1869, 0.0
        %v2054 = vsel %vm2029, %v1870, 0.0
        %v2055 = vsel %vm2030, %v1871, 0.0
        %v2056 = vsel %vm2030, %v1872, 0.0
        %v2057 = vsel %vm2031, %v1873, 0.0
        %v2058 = vsel %vm2031, %v1874, 0.0
        %v2059 = vsel %vm2032, %v1875, 0.0
        %v2060 = vsel %vm2032, %v1876, 0.0
        %v2061 = vsel %vm2033, %v1877, 0.0
        %v2062 = vsel %vm2033, %v1878, 0.0
        %v2063 = vsel %vm2034, %v1879, 0.0
        %v2064 = vsel %vm2034, %v1880, 0.0
        %v2065 = vsel %vm2035, %v1881, 0.0
        %v2066 = vsel %vm2035, %v1882, 0.0
        %v2067 = vsel %vm2036, %v1883, 0.0
        %v2068 = vsel %vm2036, %v1884, 0.0
        %v2069 = vsel %vm2037, %v1885, 0.0
        %v2070 = vsel %vm2037, %v1886, 0.0
        %v2071 = vsel %vm2038, %v1887, 0.0
        %v2072 = vsel %vm2038, %v1888, 0.0
        %v2073 = vsel %vm2039, %v1889, 0.0
        %v2074 = vsel %vm2039, %v1890, 0.0
        %v2075 = vsel %vm2040, %v1891, 0.0
        %v2076 = vsel %vm2040, %v1892, 0.0
        %v2077 = vpack.c.bf16 %v2042, %v2041
        %v2078 = vpack.c.bf16 %v2044, %v2043
        %v2079 = vpack.c.bf16 %v2046, %v2045
        %v2080 = vpack.c.bf16 %v2048, %v2047
        %v2081 = vpack.c.bf16 %v2050, %v2049
        %v2082 = vpack.c.bf16 %v2052, %v2051
        %v2083 = vpack.c.bf16 %v2054, %v2053
        %v2084 = vpack.c.bf16 %v2056, %v2055
        %v2085 = vpack.c.bf16 %v2058, %v2057
        %v2086 = vpack.c.bf16 %v2060, %v2059
        %v2087 = vpack.c.bf16 %v2062, %v2061
        %v2088 = vpack.c.bf16 %v2064, %v2063
        %v2089 = vpack.c.bf16 %v2066, %v2065
        %v2090 = vpack.c.bf16 %v2068, %v2067
        %v2091 = vpack.c.bf16 %v2070, %v2069
        %v2092 = vpack.c.bf16 %v2072, %v2071
        %v2093 = vpack.c.bf16 %v2074, %v2073
        %v2094 = vpack.c.bf16 %v2076, %v2075
        %v2096 = vshrl.u32 %v2077, 16
        %v2098 = vrot.slane %v2096, 7
        %v2099 = vshll.u32 %v2077, 16
        %v2101 = vor.u32 %v2098, %v2099
        %v2103 = vshrl.u32 %v2078, 16
        %v2105 = vrot.slane %v2103, 7
        %v2106 = vshll.u32 %v2078, 16
        %v2108 = vor.u32 %v2105, %v2106
        %v2110 = vshrl.u32 %v2079, 16
        %v2112 = vrot.slane %v2110, 7
        %v2113 = vshll.u32 %v2079, 16
        %v2115 = vor.u32 %v2112, %v2113
        %v2117 = vshrl.u32 %v2080, 16
        %v2119 = vrot.slane %v2117, 7
        %v2120 = vshll.u32 %v2080, 16
        %v2122 = vor.u32 %v2119, %v2120
        %v2124 = vshrl.u32 %v2081, 16
        %v2126 = vrot.slane %v2124, 7
        %v2127 = vshll.u32 %v2081, 16
        %v2129 = vor.u32 %v2126, %v2127
        %v2131 = vshrl.u32 %v2082, 16
        %v2133 = vrot.slane %v2131, 7
        %v2134 = vshll.u32 %v2082, 16
        %v2136 = vor.u32 %v2133, %v2134
        %v2138 = vshrl.u32 %v2083, 16
        %v2140 = vrot.slane %v2138, 7
        %v2141 = vshll.u32 %v2083, 16
        %v2143 = vor.u32 %v2140, %v2141
        %v2145 = vshrl.u32 %v2084, 16
        %v2147 = vrot.slane %v2145, 7
        %v2148 = vshll.u32 %v2084, 16
        %v2150 = vor.u32 %v2147, %v2148
        %v2152 = vshrl.u32 %v2085, 16
        %v2154 = vrot.slane %v2152, 7
        %v2155 = vshll.u32 %v2085, 16
        %v2157 = vor.u32 %v2154, %v2155
        %v2159 = vshrl.u32 %v2086, 16
        %v2161 = vrot.slane %v2159, 7
        %v2162 = vshll.u32 %v2086, 16
        %v2164 = vor.u32 %v2161, %v2162
        %v2166 = vshrl.u32 %v2087, 16
        %v2168 = vrot.slane %v2166, 7
        %v2169 = vshll.u32 %v2087, 16
        %v2171 = vor.u32 %v2168, %v2169
        %v2173 = vshrl.u32 %v2088, 16
        %v2175 = vrot.slane %v2173, 7
        %v2176 = vshll.u32 %v2088, 16
        %v2178 = vor.u32 %v2175, %v2176
        %v2180 = vshrl.u32 %v2089, 16
        %v2182 = vrot.slane %v2180, 7
        %v2183 = vshll.u32 %v2089, 16
        %v2185 = vor.u32 %v2182, %v2183
        %v2187 = vshrl.u32 %v2090, 16
        %v2189 = vrot.slane %v2187, 7
        %v2190 = vshll.u32 %v2090, 16
        %v2192 = vor.u32 %v2189, %v2190
        %v2194 = vshrl.u32 %v2091, 16
        %v2196 = vrot.slane %v2194, 7
        %v2197 = vshll.u32 %v2091, 16
        %v2199 = vor.u32 %v2196, %v2197
        %v2201 = vshrl.u32 %v2092, 16
        %v2203 = vrot.slane %v2201, 7
        %v2204 = vshll.u32 %v2092, 16
        %v2206 = vor.u32 %v2203, %v2204
        %v2208 = vshrl.u32 %v2093, 16
        %v2210 = vrot.slane %v2208, 7
        %v2211 = vshll.u32 %v2093, 16
        %v2213 = vor.u32 %v2210, %v2211
        %v2215 = vshrl.u32 %v2094, 16
        %v2217 = vrot.slane %v2215, 7
        %v2218 = vshll.u32 %v2094, 16
        %v2220 = vor.u32 %v2217, %v2218
        %vm2257 = vcmask 1040384
        %vm2258 = vsmask.f32 256
        %vm2259 = vmand %vm2257, %vm2258
        %v2260 = vsel %vm2259, 0, %v2101
        %v2261 = vsel %vm2259, 0, %v2108
        %v2262 = vsel %vm2259, 0, %v2115
        %v2263 = vsel %vm2259, 0, %v2122
        %v2264 = vsel %vm2259, 0, %v2129
        %v2265 = vsel %vm2259, 0, %v2136
        %v2266 = vsel %vm2259, 0, %v2143
        %v2267 = vsel %vm2259, 0, %v2150
        %v2268 = vsel %vm2259, 0, %v2157
        %v2269 = vsel %vm2259, 0, %v2164
        %v2270 = vsel %vm2259, 0, %v2171
        %v2271 = vsel %vm2259, 0, %v2178
        %v2272 = vsel %vm2259, 0, %v2185
        %v2273 = vsel %vm2259, 0, %v2192
        %v2274 = vsel %vm2259, 0, %v2199
        %v2275 = vsel %vm2259, 0, %v2206
        %v2276 = vsel %vm2259, 0, %v2213
        %v2277 = vsel %vm2259, 0, %v2220
        %v2278 = vsel %vm2259, %v2098, 0
        %v2279 = vsel %vm2259, %v2105, 0
        %v2280 = vsel %vm2259, %v2112, 0
        %v2281 = vsel %vm2259, %v2119, 0
        %v2282 = vsel %vm2259, %v2126, 0
        %v2283 = vsel %vm2259, %v2133, 0
        %v2284 = vsel %vm2259, %v2140, 0
        %v2285 = vsel %vm2259, %v2147, 0
        %v2286 = vsel %vm2259, %v2154, 0
        %v2287 = vsel %vm2259, %v2161, 0
        %v2288 = vsel %vm2259, %v2168, 0
        %v2289 = vsel %vm2259, %v2175, 0
        %v2290 = vsel %vm2259, %v2182, 0
        %v2291 = vsel %vm2259, %v2189, 0
        %v2292 = vsel %vm2259, %v2196, 0
        %v2293 = vsel %vm2259, %v2203, 0
        %v2294 = vsel %vm2259, %v2210, 0
        %v2295 = vsel %vm2259, %v2217, 0
        %v2297 = vshrl.u32 %v2260, 16
        %v2299 = vshll.u32 %v2260, 16
        %v2301 = vrot.slane %v2299, 1
        %v2302 = vor.u32 %v2297, %v2301
        %v2304 = vshll.u32 %v2278, 16
        %v2306 = vrot.slane %v2304, 1
        %v2307 = vsel %vm621, %v2302, %v2306
        %v2309 = vshrl.u32 %v2261, 16
        %v2311 = vshll.u32 %v2261, 16
        %v2313 = vrot.slane %v2311, 1
        %v2314 = vor.u32 %v2309, %v2313
        %v2316 = vshll.u32 %v2279, 16
        %v2318 = vrot.slane %v2316, 1
        %v2319 = vsel %vm621, %v2314, %v2318
        %v2321 = vshrl.u32 %v2262, 16
        %v2323 = vshll.u32 %v2262, 16
        %v2325 = vrot.slane %v2323, 1
        %v2326 = vor.u32 %v2321, %v2325
        %v2328 = vshll.u32 %v2280, 16
        %v2330 = vrot.slane %v2328, 1
        %v2331 = vsel %vm621, %v2326, %v2330
        %v2333 = vshrl.u32 %v2263, 16
        %v2335 = vshll.u32 %v2263, 16
        %v2337 = vrot.slane %v2335, 1
        %v2338 = vor.u32 %v2333, %v2337
        %v2340 = vshll.u32 %v2281, 16
        %v2342 = vrot.slane %v2340, 1
        %v2343 = vsel %vm621, %v2338, %v2342
        %v2345 = vshrl.u32 %v2264, 16
        %v2347 = vshll.u32 %v2264, 16
        %v2349 = vrot.slane %v2347, 1
        %v2350 = vor.u32 %v2345, %v2349
        %v2352 = vshll.u32 %v2282, 16
        %v2354 = vrot.slane %v2352, 1
        %v2355 = vsel %vm621, %v2350, %v2354
        %v2357 = vshrl.u32 %v2265, 16
        %v2359 = vshll.u32 %v2265, 16
        %v2361 = vrot.slane %v2359, 1
        %v2362 = vor.u32 %v2357, %v2361
        %v2364 = vshll.u32 %v2283, 16
        %v2366 = vrot.slane %v2364, 1
        %v2367 = vsel %vm621, %v2362, %v2366
        %v2369 = vshrl.u32 %v2266, 16
        %v2371 = vshll.u32 %v2266, 16
        %v2373 = vrot.slane %v2371, 1
        %v2374 = vor.u32 %v2369, %v2373
        %v2376 = vshll.u32 %v2284, 16
        %v2378 = vrot.slane %v2376, 1
        %v2379 = vsel %vm621, %v2374, %v2378
        %v2381 = vshrl.u32 %v2267, 16
        %v2383 = vshll.u32 %v2267, 16
        %v2385 = vrot.slane %v2383, 1
        %v2386 = vor.u32 %v2381, %v2385
        %v2388 = vshll.u32 %v2285, 16
        %v2390 = vrot.slane %v2388, 1
        %v2391 = vsel %vm621, %v2386, %v2390
        %v2393 = vshrl.u32 %v2268, 16
        %v2395 = vshll.u32 %v2268, 16
        %v2397 = vrot.slane %v2395, 1
        %v2398 = vor.u32 %v2393, %v2397
        %v2400 = vshll.u32 %v2286, 16
        %v2402 = vrot.slane %v2400, 1
        %v2403 = vsel %vm621, %v2398, %v2402
        %v2405 = vshrl.u32 %v2269, 16
        %v2407 = vshll.u32 %v2269, 16
        %v2409 = vrot.slane %v2407, 1
        %v2410 = vor.u32 %v2405, %v2409
        %v2412 = vshll.u32 %v2287, 16
        %v2414 = vrot.slane %v2412, 1
        %v2415 = vsel %vm621, %v2410, %v2414
        %v2417 = vshrl.u32 %v2270, 16
        %v2419 = vshll.u32 %v2270, 16
        %v2421 = vrot.slane %v2419, 1
        %v2422 = vor.u32 %v2417, %v2421
        %v2424 = vshll.u32 %v2288, 16
        %v2426 = vrot.slane %v2424, 1
        %v2427 = vsel %vm621, %v2422, %v2426
        %v2429 = vshrl.u32 %v2271, 16
        %v2431 = vshll.u32 %v2271, 16
        %v2433 = vrot.slane %v2431, 1
        %v2434 = vor.u32 %v2429, %v2433
        %v2436 = vshll.u32 %v2289, 16
        %v2438 = vrot.slane %v2436, 1
        %v2439 = vsel %vm621, %v2434, %v2438
        %v2441 = vshrl.u32 %v2272, 16
        %v2443 = vshll.u32 %v2272, 16
        %v2445 = vrot.slane %v2443, 1
        %v2446 = vor.u32 %v2441, %v2445
        %v2448 = vshll.u32 %v2290, 16
        %v2450 = vrot.slane %v2448, 1
        %v2451 = vsel %vm621, %v2446, %v2450
        %v2453 = vshrl.u32 %v2273, 16
        %v2455 = vshll.u32 %v2273, 16
        %v2457 = vrot.slane %v2455, 1
        %v2458 = vor.u32 %v2453, %v2457
        %v2460 = vshll.u32 %v2291, 16
        %v2462 = vrot.slane %v2460, 1
        %v2463 = vsel %vm621, %v2458, %v2462
        %v2465 = vshrl.u32 %v2274, 16
        %v2467 = vshll.u32 %v2274, 16
        %v2469 = vrot.slane %v2467, 1
        %v2470 = vor.u32 %v2465, %v2469
        %v2472 = vshll.u32 %v2292, 16
        %v2474 = vrot.slane %v2472, 1
        %v2475 = vsel %vm621, %v2470, %v2474
        %v2477 = vshrl.u32 %v2275, 16
        %v2479 = vshll.u32 %v2275, 16
        %v2481 = vrot.slane %v2479, 1
        %v2482 = vor.u32 %v2477, %v2481
        %v2484 = vshll.u32 %v2293, 16
        %v2486 = vrot.slane %v2484, 1
        %v2487 = vsel %vm621, %v2482, %v2486
        %v2536 = vrot.slane %v2260, 1
        %v2537 = vrot.slane %v2278, 1
        %v2538 = vsel %vm874, %v2536, %v2537
        %v2539 = vrot.slane %v2261, 1
        %v2540 = vrot.slane %v2279, 1
        %v2541 = vsel %vm874, %v2539, %v2540
        %v2542 = vrot.slane %v2262, 1
        %v2543 = vrot.slane %v2280, 1
        %v2544 = vsel %vm874, %v2542, %v2543
        %v2545 = vrot.slane %v2263, 1
        %v2546 = vrot.slane %v2281, 1
        %v2547 = vsel %vm874, %v2545, %v2546
        %v2548 = vrot.slane %v2264, 1
        %v2549 = vrot.slane %v2282, 1
        %v2550 = vsel %vm874, %v2548, %v2549
        %v2551 = vrot.slane %v2265, 1
        %v2552 = vrot.slane %v2283, 1
        %v2553 = vsel %vm874, %v2551, %v2552
        %v2554 = vrot.slane %v2266, 1
        %v2555 = vrot.slane %v2284, 1
        %v2556 = vsel %vm874, %v2554, %v2555
        %v2557 = vrot.slane %v2267, 1
        %v2558 = vrot.slane %v2285, 1
        %v2559 = vsel %vm874, %v2557, %v2558
        %v2560 = vrot.slane %v2268, 1
        %v2561 = vrot.slane %v2286, 1
        %v2562 = vsel %vm874, %v2560, %v2561
        %v2563 = vrot.slane %v2269, 1
        %v2564 = vrot.slane %v2287, 1
        %v2565 = vsel %vm874, %v2563, %v2564
        %v2566 = vrot.slane %v2270, 1
        %v2567 = vrot.slane %v2288, 1
        %v2568 = vsel %vm874, %v2566, %v2567
        %v2569 = vrot.slane %v2271, 1
        %v2570 = vrot.slane %v2289, 1
        %v2571 = vsel %vm874, %v2569, %v2570
        %v2572 = vrot.slane %v2272, 1
        %v2573 = vrot.slane %v2290, 1
        %v2574 = vsel %vm874, %v2572, %v2573
        %v2575 = vrot.slane %v2273, 1
        %v2576 = vrot.slane %v2291, 1
        %v2577 = vsel %vm874, %v2575, %v2576
        %v2578 = vrot.slane %v2274, 1
        %v2579 = vrot.slane %v2292, 1
        %v2580 = vsel %vm874, %v2578, %v2579
        %v2581 = vrot.slane %v2275, 1
        %v2582 = vrot.slane %v2293, 1
        %v2583 = vsel %vm874, %v2581, %v2582
        %v2600 = vld [vmem:[%s4] sm:$0xf]
        %v2601 = vld [vmem:[%s4 + $0x4] sm:$0xf]
        %v2602 = vld [vmem:[%s4 + $0x8] sm:$0xf]
        %v2603 = vld [vmem:[%s4 + $0xc] sm:$0xf]
        %v2604 = vld [vmem:[%s4 + $0x10] sm:$0xf]
        %v2605 = vld [vmem:[%s4 + $0x14] sm:$0xf]
        %v2606 = vld [vmem:[%s4 + $0x18] sm:$0xf]
        %v2607 = vld [vmem:[%s4 + $0x1c] sm:$0xf]
        %v2608 = vld [vmem:[%s4 + $0x20] sm:$0xf]
        %v2609 = vld [vmem:[%s4 + $0x24] sm:$0xf]
        %v2610 = vld [vmem:[%s4 + $0x28] sm:$0xf]
        %v2611 = vld [vmem:[%s4 + $0x2c] sm:$0xf]
        %v2612 = vld [vmem:[%s4 + $0x30] sm:$0xf]
        %v2613 = vld [vmem:[%s4 + $0x34] sm:$0xf]
        %v2614 = vld [vmem:[%s4 + $0x38] sm:$0xf]
        %v2615 = vld [vmem:[%s4 + $0x3c] sm:$0xf]
        %v2616 = vld [vmem:[%s4 + $0x40] sm:$0xf]
        %v2617 = vld [vmem:[%s4 + $0x44] sm:$0xf]
        %v2618 = vld [vmem:[%s4 + $0x48] sm:$0xf]
        %v2619 = vld [vmem:[%s4 + $0x4c] sm:$0xf]
        %v2620 = vld [vmem:[%s4 + $0x50] sm:$0xf]
        %v2621 = vld [vmem:[%s4 + $0x54] sm:$0xf]
        %v2622 = vld [vmem:[%s4 + $0x58] sm:$0xf]
        %v2623 = vld [vmem:[%s4 + $0x5c] sm:$0xf]
        %v2624 = vld [vmem:[%s4 + $0x60] sm:$0xf]
        %v2625 = vld [vmem:[%s4 + $0x64] sm:$0xf]
        %v2626 = vld [vmem:[%s4 + $0x68] sm:$0xf]
        %v2627 = vld [vmem:[%s4 + $0x6c] sm:$0xf]
        %v2628 = vld [vmem:[%s4 + $0x70] sm:$0xf]
        %v2629 = vld [vmem:[%s4 + $0x74] sm:$0xf]
        %v2630 = vld [vmem:[%s4 + $0x78] sm:$0xf]
        %v2631 = vld [vmem:[%s4 + $0x7c] sm:$0xf]
        %v2632 = vld [vmem:[%s4 + $0x80] sm:$0xf]
        %v2633 = vld [vmem:[%s4 + $0x84] sm:$0xf]
        %v2634 = vld [vmem:[%s4 + $0x88] sm:$0xf]
        %v2635 = vld [vmem:[%s4 + $0x8c] sm:$0xf]
        %v2636 = vld [vmem:[%s4 + $0x90] sm:$0xf]
        %v2637 = vld [vmem:[%s4 + $0x94] sm:$0xf]
        %v2638 = vld [vmem:[%s4 + $0x98] sm:$0xf]
        %v2639 = vld [vmem:[%s4 + $0x9c] sm:$0xf]
        %v2640 = vld [vmem:[%s4 + $0xa0] sm:$0xf]
        %v2641 = vld [vmem:[%s4 + $0xa4] sm:$0xf]
        %v2642 = vld [vmem:[%s4 + $0xa8] sm:$0xf]
        %v2643 = vld [vmem:[%s4 + $0xac] sm:$0xf]
        %v2644 = vld [vmem:[%s4 + $0xb0] sm:$0xf]
        %v2645 = vld [vmem:[%s4 + $0xb4] sm:$0xf]
        %v2646 = vld [vmem:[%s4 + $0xb8] sm:$0xf]
        %v2647 = vld [vmem:[%s4 + $0xbc] sm:$0xf]
        %v2649 = vshrl.u32 %v2276, 16
        %v2651 = vshll.u32 %v2276, 16
        %v2653 = vrot.slane %v2651, 1
        %v2654 = vor.u32 %v2649, %v2653
        %v2656 = vshll.u32 %v2294, 16
        %v2658 = vrot.slane %v2656, 1
        %v2659 = vsel %vm621, %v2654, %v2658
        %v2663 = vrot.slane %v2276, 1
        %v2664 = vrot.slane %v2294, 1
        %v2665 = vsel %vm874, %v2663, %v2664
        %s2667 = scalar_lea.vmem %s4, 192
        %v2668 = vld [vmem:[%s2667] sm:$0xf]
        %v2669 = vld [vmem:[%s2667 + $0x4] sm:$0xf]
        %v2670 = vld [vmem:[%s2667 + $0x8] sm:$0xf]
        %v2671 = vld [vmem:[%s2667 + $0xc] sm:$0xf]
        %v2672 = vld [vmem:[%s2667 + $0x10] sm:$0xf]
        %v2673 = vld [vmem:[%s2667 + $0x14] sm:$0xf]
        %v2674 = vld [vmem:[%s2667 + $0x18] sm:$0xf]
        %v2675 = vld [vmem:[%s2667 + $0x1c] sm:$0xf]
        %v2676 = vld [vmem:[%s2667 + $0x20] sm:$0xf]
        %v2677 = vld [vmem:[%s2667 + $0x24] sm:$0xf]
        %v2678 = vld [vmem:[%s2667 + $0x28] sm:$0xf]
        %v2679 = vld [vmem:[%s2667 + $0x2c] sm:$0xf]
        %v2680 = vld [vmem:[%s2667 + $0x30] sm:$0xf]
        %v2681 = vld [vmem:[%s2667 + $0x34] sm:$0xf]
        %v2682 = vld [vmem:[%s2667 + $0x38] sm:$0xf]
        %v2683 = vld [vmem:[%s2667 + $0x3c] sm:$0xf]
        %v2684 = vld [vmem:[%s2667 + $0x40] sm:$0xf]
        %v2685 = vld [vmem:[%s2667 + $0x44] sm:$0xf]
        %v2686 = vld [vmem:[%s2667 + $0x48] sm:$0xf]
        %v2687 = vld [vmem:[%s2667 + $0x4c] sm:$0xf]
        %v2688 = vld [vmem:[%s2667 + $0x50] sm:$0xf]
        %v2689 = vld [vmem:[%s2667 + $0x54] sm:$0xf]
        %v2690 = vld [vmem:[%s2667 + $0x58] sm:$0xf]
        %v2691 = vld [vmem:[%s2667 + $0x5c] sm:$0xf]
        %v2692 = vld [vmem:[%s2667 + $0x60] sm:$0xf]
        %v2693 = vld [vmem:[%s2667 + $0x64] sm:$0xf]
        %v2694 = vld [vmem:[%s2667 + $0x68] sm:$0xf]
        %v2695 = vld [vmem:[%s2667 + $0x6c] sm:$0xf]
        %v2696 = vld [vmem:[%s2667 + $0x70] sm:$0xf]
        %v2697 = vld [vmem:[%s2667 + $0x74] sm:$0xf]
        %v2698 = vld [vmem:[%s2667 + $0x78] sm:$0xf]
        %v2699 = vld [vmem:[%s2667 + $0x7c] sm:$0xf]
        %v2700 = vld [vmem:[%s2667 + $0x80] sm:$0xf]
        %v2701 = vld [vmem:[%s2667 + $0x84] sm:$0xf]
        %v2702 = vld [vmem:[%s2667 + $0x88] sm:$0xf]
        %v2703 = vld [vmem:[%s2667 + $0x8c] sm:$0xf]
        %v2704 = vld [vmem:[%s2667 + $0x90] sm:$0xf]
        %v2705 = vld [vmem:[%s2667 + $0x94] sm:$0xf]
        %v2706 = vld [vmem:[%s2667 + $0x98] sm:$0xf]
        %v2707 = vld [vmem:[%s2667 + $0x9c] sm:$0xf]
        %v2708 = vld [vmem:[%s2667 + $0xa0] sm:$0xf]
        %v2709 = vld [vmem:[%s2667 + $0xa4] sm:$0xf]
        %v2710 = vld [vmem:[%s2667 + $0xa8] sm:$0xf]
        %v2711 = vld [vmem:[%s2667 + $0xac] sm:$0xf]
        %v2712 = vld [vmem:[%s2667 + $0xb0] sm:$0xf]
        %v2713 = vld [vmem:[%s2667 + $0xb4] sm:$0xf]
        %v2714 = vld [vmem:[%s2667 + $0xb8] sm:$0xf]
        %v2715 = vld [vmem:[%s2667 + $0xbc] sm:$0xf]
        %v2764 = vunpack.c.l.b16 %v2668
        %v2765 = vunpack.c.l.b16 %v2669
        %v2766 = vunpack.c.l.b16 %v2670
        %v2767 = vunpack.c.l.b16 %v2671
        %v2768 = vunpack.c.l.b16 %v2672
        %v2769 = vunpack.c.l.b16 %v2673
        %v2770 = vunpack.c.l.b16 %v2674
        %v2771 = vunpack.c.l.b16 %v2675
        %v2772 = vunpack.c.l.b16 %v2676
        %v2773 = vunpack.c.l.b16 %v2677
        %v2774 = vunpack.c.l.b16 %v2678
        %v2775 = vunpack.c.l.b16 %v2679
        %v2776 = vunpack.c.l.b16 %v2680
        %v2777 = vunpack.c.l.b16 %v2681
        %v2778 = vunpack.c.l.b16 %v2682
        %v2779 = vunpack.c.l.b16 %v2683
        %v2780 = vunpack.c.l.b16 %v2684
        %v2781 = vunpack.c.l.b16 %v2685
        %v2782 = vunpack.c.l.b16 %v2686
        %v2783 = vunpack.c.l.b16 %v2687
        %v2784 = vunpack.c.l.b16 %v2688
        %v2785 = vunpack.c.l.b16 %v2689
        %v2786 = vunpack.c.l.b16 %v2690
        %v2787 = vunpack.c.l.b16 %v2691
        %v2788 = vunpack.c.l.b16 %v2692
        %v2789 = vunpack.c.l.b16 %v2693
        %v2790 = vunpack.c.l.b16 %v2694
        %v2791 = vunpack.c.l.b16 %v2695
        %v2792 = vunpack.c.l.b16 %v2696
        %v2793 = vunpack.c.l.b16 %v2697
        %v2794 = vunpack.c.l.b16 %v2698
        %v2795 = vunpack.c.l.b16 %v2699
        %v2796 = vunpack.c.l.b16 %v2700
        %v2797 = vunpack.c.l.b16 %v2701
        %v2798 = vunpack.c.l.b16 %v2702
        %v2799 = vunpack.c.l.b16 %v2703
        %v2800 = vunpack.c.l.b16 %v2704
        %v2801 = vunpack.c.l.b16 %v2705
        %v2802 = vunpack.c.l.b16 %v2706
        %v2803 = vunpack.c.l.b16 %v2707
        %v2804 = vunpack.c.l.b16 %v2708
        %v2805 = vunpack.c.l.b16 %v2709
        %v2806 = vunpack.c.l.b16 %v2710
        %v2807 = vunpack.c.l.b16 %v2711
        %v2808 = vunpack.c.l.b16 %v2712
        %v2809 = vunpack.c.l.b16 %v2713
        %v2810 = vunpack.c.l.b16 %v2714
        %v2811 = vunpack.c.l.b16 %v2715
        %v2812 = vpack.c.b16 %v2765, %v2764
        %v2813 = vpack.c.b16 %v2767, %v2766
        %v2814 = vpack.c.b16 %v2769, %v2768
        %v2815 = vpack.c.b16 %v2771, %v2770
        %v2816 = vpack.c.b16 %v2773, %v2772
        %v2817 = vpack.c.b16 %v2775, %v2774
        %v2818 = vpack.c.b16 %v2777, %v2776
        %v2819 = vpack.c.b16 %v2779, %v2778
        %v2820 = vpack.c.b16 %v2781, %v2780
        %v2821 = vpack.c.b16 %v2783, %v2782
        %v2822 = vpack.c.b16 %v2785, %v2784
        %v2823 = vpack.c.b16 %v2787, %v2786
        %v2824 = vpack.c.b16 %v2789, %v2788
        %v2825 = vpack.c.b16 %v2791, %v2790
        %v2826 = vpack.c.b16 %v2793, %v2792
        %v2827 = vpack.c.b16 %v2795, %v2794
        %v2828 = vpack.c.b16 %v2797, %v2796
        %v2829 = vpack.c.b16 %v2799, %v2798
        %v2830 = vpack.c.b16 %v2801, %v2800
        %v2831 = vpack.c.b16 %v2803, %v2802
        %v2832 = vpack.c.b16 %v2805, %v2804
        %v2833 = vpack.c.b16 %v2807, %v2806
        %v2834 = vpack.c.b16 %v2809, %v2808
        %v2835 = vpack.c.b16 %v2811, %v2810
        %2860 = vmatprep.subr.bf16.mxu0 0
        %2861 = vmatpush1.bf16.msra.mxu0 %v2819
        %2862 = vmatprep.subr.bf16.mxu0 0
        %2863 = vmatpush1.bf16.msra.mxu0 %v2818
        %2864 = vmatprep.subr.bf16.mxu0 0
        %2865 = vmatpush1.bf16.msra.mxu0 %v2817
        %2866 = vmatprep.subr.bf16.mxu0 0
        %2867 = vmatpush1.bf16.msra.mxu0 %v2816
        %2868 = vmatprep.subr.bf16.mxu0 0
        %2869 = vmatpush1.bf16.msra.mxu0 %v2815
        %2870 = vmatprep.subr.bf16.mxu0 0
        %2871 = vmatpush1.bf16.msra.mxu0 %v2814
        %2872 = vmatprep.subr.bf16.mxu0 0
        %2873 = vmatpush1.bf16.msra.mxu0 %v2813
        %2874 = vmatprep.subr.bf16.mxu0 0
        %2875 = vmatpush1.bf16.msra.mxu0 %v2812
        %2876 = vmatprep.subr.bf16.mxu0 0
        %2877 = vmatpush2.bf16.msra.mxu0 %v2827
        %2878 = vmatprep.subr.bf16.mxu0 0
        %2879 = vmatpush2.bf16.msra.mxu0 %v2826
        %2880 = vmatprep.subr.bf16.mxu0 0
        %2881 = vmatpush2.bf16.msra.mxu0 %v2825
        %2882 = vmatprep.subr.bf16.mxu0 0
        %2883 = vmatpush2.bf16.msra.mxu0 %v2824
        %2884 = vmatprep.subr.bf16.mxu0 0
        %2885 = vmatpush2.bf16.msra.mxu0 %v2823
        %2886 = vmatprep.subr.bf16.mxu0 0
        %2887 = vmatpush2.bf16.msra.mxu0 %v2822
        %2888 = vmatprep.subr.bf16.mxu0 0
        %2889 = vmatpush2.bf16.msra.mxu0 %v2821
        %2890 = vmatprep.subr.bf16.mxu0 0
        %2891 = vmatpush2.bf16.msra.mxu0 %v2820
        %2892 = vmatprep.mubr.bf16.mxu0 %v2319
        %2893 = vmatmul.mubr.bf16.gmra.mxu0 %v2261
        %v2894 = vpop.f32.mrf.mxu0
        %v2895 = vadd.f32 0.0, %v2894
        %v2896 = vpop.f32.mrf.mxu0
        %v2897 = vpop.f32.mrf.mxu0
        %v2898 = vadd.f32 0.0, %v2897
        %v2899 = vpop.f32.mrf.mxu0
        %2900 = vmatprep.mubr.bf16.mxu0 %v2331
        %2901 = vmatmul.mubr.bf16.gmra.mxu0 %v2262
        %v2902 = vpop.f32.mrf.mxu0
        %v2903 = vadd.f32 0.0, %v2902
        %v2904 = vpop.f32.mrf.mxu0
        %v2905 = vpop.f32.mrf.mxu0
        %v2906 = vadd.f32 0.0, %v2905
        %v2907 = vpop.f32.mrf.mxu0
        %2908 = vmatprep.mubr.bf16.mxu0 %v2343
        %2909 = vmatmul.mubr.bf16.gmra.mxu0 %v2263
        %v2910 = vpop.f32.mrf.mxu0
        %v2911 = vadd.f32 0.0, %v2910
        %v2912 = vpop.f32.mrf.mxu0
        %v2913 = vpop.f32.mrf.mxu0
        %v2914 = vadd.f32 0.0, %v2913
        %v2915 = vpop.f32.mrf.mxu0
        %2916 = vmatprep.mubr.bf16.mxu0 %v2355
        %2917 = vmatmul.mubr.bf16.gmra.mxu0 %v2264
        %v2918 = vpop.f32.mrf.mxu0
        %v2919 = vadd.f32 0.0, %v2918
        %v2920 = vpop.f32.mrf.mxu0
        %v2921 = vpop.f32.mrf.mxu0
        %v2922 = vadd.f32 0.0, %v2921
        %v2923 = vpop.f32.mrf.mxu0
        %2924 = vmatprep.mubr.bf16.mxu0 %v2367
        %2925 = vmatmul.mubr.bf16.gmra.mxu0 %v2265
        %v2926 = vpop.f32.mrf.mxu0
        %v2927 = vadd.f32 0.0, %v2926
        %v2928 = vpop.f32.mrf.mxu0
        %v2929 = vpop.f32.mrf.mxu0
        %v2930 = vadd.f32 0.0, %v2929
        %v2931 = vpop.f32.mrf.mxu0
        %2932 = vmatprep.mubr.bf16.mxu0 %v2379
        %2933 = vmatmul.mubr.bf16.gmra.mxu0 %v2266
        %v2934 = vpop.f32.mrf.mxu0
        %v2935 = vadd.f32 0.0, %v2934
        %v2936 = vpop.f32.mrf.mxu0
        %v2937 = vpop.f32.mrf.mxu0
        %v2938 = vadd.f32 0.0, %v2937
        %v2939 = vpop.f32.mrf.mxu0
        %2940 = vmatprep.mubr.bf16.mxu0 %v2391
        %2941 = vmatmul.mubr.bf16.gmra.mxu0 %v2267
        %v2942 = vpop.f32.mrf.mxu0
        %v2943 = vadd.f32 0.0, %v2942
        %v2944 = vpop.f32.mrf.mxu0
        %v2945 = vpop.f32.mrf.mxu0
        %v2946 = vadd.f32 0.0, %v2945
        %v2947 = vpop.f32.mrf.mxu0
        %2948 = vmatprep.mubr.bf16.mxu0 %v2403
        %2949 = vmatmul.mubr.bf16.gmra.mxu0 %v2268
        %v2950 = vpop.f32.mrf.mxu0
        %v2951 = vadd.f32 0.0, %v2950
        %v2952 = vpop.f32.mrf.mxu0
        %v2953 = vpop.f32.mrf.mxu0
        %v2954 = vadd.f32 0.0, %v2953
        %v2955 = vpop.f32.mrf.mxu0
        %2956 = vmatprep.mubr.bf16.mxu0 %v2415
        %2957 = vmatmul.mubr.bf16.gmra.mxu0 %v2269
        %v2958 = vpop.f32.mrf.mxu0
        %v2959 = vadd.f32 0.0, %v2958
        %v2960 = vpop.f32.mrf.mxu0
        %v2961 = vpop.f32.mrf.mxu0
        %v2962 = vadd.f32 0.0, %v2961
        %v2963 = vpop.f32.mrf.mxu0
        %2964 = vmatprep.mubr.bf16.mxu0 %v2427
        %2965 = vmatmul.mubr.bf16.gmra.mxu0 %v2270
        %v2966 = vpop.f32.mrf.mxu0
        %v2967 = vadd.f32 0.0, %v2966
        %v2968 = vpop.f32.mrf.mxu0
        %v2969 = vpop.f32.mrf.mxu0
        %v2970 = vadd.f32 0.0, %v2969
        %v2971 = vpop.f32.mrf.mxu0
        %2972 = vmatprep.mubr.bf16.mxu0 %v2439
        %2973 = vmatmul.mubr.bf16.gmra.mxu0 %v2271
        %v2974 = vpop.f32.mrf.mxu0
        %v2975 = vadd.f32 0.0, %v2974
        %v2976 = vpop.f32.mrf.mxu0
        %v2977 = vpop.f32.mrf.mxu0
        %v2978 = vadd.f32 0.0, %v2977
        %v2979 = vpop.f32.mrf.mxu0
        %2980 = vmatprep.mubr.bf16.mxu0 %v2451
        %2981 = vmatmul.mubr.bf16.gmra.mxu0 %v2272
        %v2982 = vpop.f32.mrf.mxu0
        %v2983 = vadd.f32 0.0, %v2982
        %v2984 = vpop.f32.mrf.mxu0
        %v2985 = vpop.f32.mrf.mxu0
        %v2986 = vadd.f32 0.0, %v2985
        %v2987 = vpop.f32.mrf.mxu0
        %2988 = vmatprep.mubr.bf16.mxu0 %v2463
        %2989 = vmatmul.mubr.bf16.gmra.mxu0 %v2273
        %v2990 = vpop.f32.mrf.mxu0
        %v2991 = vadd.f32 0.0, %v2990
        %v2992 = vpop.f32.mrf.mxu0
        %v2993 = vpop.f32.mrf.mxu0
        %v2994 = vadd.f32 0.0, %v2993
        %v2995 = vpop.f32.mrf.mxu0
        %2996 = vmatprep.mubr.bf16.mxu0 %v2475
        %2997 = vmatmul.mubr.bf16.gmra.mxu0 %v2274
        %v2998 = vpop.f32.mrf.mxu0
        %v2999 = vadd.f32 0.0, %v2998
        %v3000 = vpop.f32.mrf.mxu0
        %v3001 = vpop.f32.mrf.mxu0
        %v3002 = vadd.f32 0.0, %v3001
        %v3003 = vpop.f32.mrf.mxu0
        %3004 = vmatprep.mubr.bf16.mxu0 %v2487
        %3005 = vmatmul.mubr.bf16.gmra.mxu0 %v2275
        %v3006 = vpop.f32.mrf.mxu0
        %v3007 = vadd.f32 0.0, %v3006
        %v3008 = vpop.f32.mrf.mxu0
        %v3009 = vpop.f32.mrf.mxu0
        %v3010 = vadd.f32 0.0, %v3009
        %v3011 = vpop.f32.mrf.mxu0
        %3012 = vmatprep.mubr.bf16.mxu0 %v2659
        %3013 = vmatmul.mubr.bf16.gmra.mxu0 %v2276
        %v3014 = vpop.f32.mrf.mxu0
        %v3015 = vadd.f32 0.0, %v3014
        %v3016 = vpop.f32.mrf.mxu0
        %v3017 = vpop.f32.mrf.mxu0
        %v3018 = vadd.f32 0.0, %v3017
        %v3019 = vpop.f32.mrf.mxu0
        %3020 = vdwg.mxu0
        %3021 = vmatprep.subr.bf16.mxu0 0
        %3022 = vmatpush1.bf16.msra.mxu0 %v2835
        %3023 = vmatprep.subr.bf16.mxu0 0
        %3024 = vmatpush1.bf16.msra.mxu0 %v2834
        %3025 = vmatprep.subr.bf16.mxu0 0
        %3026 = vmatpush1.bf16.msra.mxu0 %v2833
        %3027 = vmatprep.subr.bf16.mxu0 0
        %3028 = vmatpush1.bf16.msra.mxu0 %v2832
        %3029 = vmatprep.subr.bf16.mxu0 0
        %3030 = vmatpush1.bf16.msra.mxu0 %v2831
        %3031 = vmatprep.subr.bf16.mxu0 0
        %3032 = vmatpush1.bf16.msra.mxu0 %v2830
        %3033 = vmatprep.subr.bf16.mxu0 0
        %3034 = vmatpush1.bf16.msra.mxu0 %v2829
        %3035 = vmatprep.subr.bf16.mxu0 0
        %3036 = vmatpush1.bf16.msra.mxu0 %v2828
        %3037 = vmatprep.subr.bf16.mxu0 0
        %3038 = vmatpush2.bf16.msra.mxu0 0
        %3039 = vmatprep.subr.bf16.mxu0 0
        %3040 = vmatpush2.bf16.msra.mxu0 0
        %3041 = vmatprep.subr.bf16.mxu0 0
        %3042 = vmatpush2.bf16.msra.mxu0 0
        %3043 = vmatprep.subr.bf16.mxu0 0
        %3044 = vmatpush2.bf16.msra.mxu0 0
        %3045 = vmatprep.subr.bf16.mxu0 0
        %3046 = vmatpush2.bf16.msra.mxu0 0
        %3047 = vmatprep.subr.bf16.mxu0 0
        %3048 = vmatpush2.bf16.msra.mxu0 0
        %3049 = vmatprep.subr.bf16.mxu0 0
        %3050 = vmatpush2.bf16.msra.mxu0 0
        %3051 = vmatprep.subr.bf16.mxu0 0
        %3052 = vmatpush2.bf16.msra.mxu0 0
        %3053 = vmatprep.mubr.bf16.mxu0 0
        %3054 = vmatmul.mubr.bf16.gmra.mxu0 %v2541
        %v3055 = vpop.f32.mrf.mxu0
        %v3056 = vadd.f32 %v2895, %v3055
        %v3057 = vpop.f32.mrf.mxu0
        %v3058 = vpop.f32.mrf.mxu0
        %v3059 = vadd.f32 %v2898, %v3058
        %v3060 = vpop.f32.mrf.mxu0
        %3061 = vmatprep.mubr.bf16.mxu0 0
        %3062 = vmatmul.mubr.bf16.gmra.mxu0 %v2544
        %v3063 = vpop.f32.mrf.mxu0
        %v3064 = vadd.f32 %v2903, %v3063
        %v3065 = vpop.f32.mrf.mxu0
        %v3066 = vpop.f32.mrf.mxu0
        %v3067 = vadd.f32 %v2906, %v3066
        %v3068 = vpop.f32.mrf.mxu0
        %3069 = vmatprep.mubr.bf16.mxu0 0
        %3070 = vmatmul.mubr.bf16.gmra.mxu0 %v2547
        %v3071 = vpop.f32.mrf.mxu0
        %v3072 = vadd.f32 %v2911, %v3071
        %v3073 = vpop.f32.mrf.mxu0
        %v3074 = vpop.f32.mrf.mxu0
        %v3075 = vadd.f32 %v2914, %v3074
        %v3076 = vpop.f32.mrf.mxu0
        %3077 = vmatprep.mubr.bf16.mxu0 0
        %3078 = vmatmul.mubr.bf16.gmra.mxu0 %v2550
        %v3079 = vpop.f32.mrf.mxu0
        %v3080 = vadd.f32 %v2919, %v3079
        %v3081 = vpop.f32.mrf.mxu0
        %v3082 = vpop.f32.mrf.mxu0
        %v3083 = vadd.f32 %v2922, %v3082
        %v3084 = vpop.f32.mrf.mxu0
        %3085 = vmatprep.mubr.bf16.mxu0 0
        %3086 = vmatmul.mubr.bf16.gmra.mxu0 %v2553
        %v3087 = vpop.f32.mrf.mxu0
        %v3088 = vadd.f32 %v2927, %v3087
        %v3089 = vpop.f32.mrf.mxu0
        %v3090 = vpop.f32.mrf.mxu0
        %v3091 = vadd.f32 %v2930, %v3090
        %v3092 = vpop.f32.mrf.mxu0
        %3093 = vmatprep.mubr.bf16.mxu0 0
        %3094 = vmatmul.mubr.bf16.gmra.mxu0 %v2556
        %v3095 = vpop.f32.mrf.mxu0
        %v3096 = vadd.f32 %v2935, %v3095
        %v3097 = vpop.f32.mrf.mxu0
        %v3098 = vpop.f32.mrf.mxu0
        %v3099 = vadd.f32 %v2938, %v3098
        %v3100 = vpop.f32.mrf.mxu0
        %3101 = vmatprep.mubr.bf16.mxu0 0
        %3102 = vmatmul.mubr.bf16.gmra.mxu0 %v2559
        %v3103 = vpop.f32.mrf.mxu0
        %v3104 = vadd.f32 %v2943, %v3103
        %v3105 = vpop.f32.mrf.mxu0
        %v3106 = vpop.f32.mrf.mxu0
        %v3107 = vadd.f32 %v2946, %v3106
        %v3108 = vpop.f32.mrf.mxu0
        %3109 = vmatprep.mubr.bf16.mxu0 0
        %3110 = vmatmul.mubr.bf16.gmra.mxu0 %v2562
        %v3111 = vpop.f32.mrf.mxu0
        %v3112 = vadd.f32 %v2951, %v3111
        %v3113 = vpop.f32.mrf.mxu0
        %v3114 = vpop.f32.mrf.mxu0
        %v3115 = vadd.f32 %v2954, %v3114
        %v3116 = vpop.f32.mrf.mxu0
        %3117 = vmatprep.mubr.bf16.mxu0 0
        %3118 = vmatmul.mubr.bf16.gmra.mxu0 %v2565
        %v3119 = vpop.f32.mrf.mxu0
        %v3120 = vadd.f32 %v2959, %v3119
        %v3121 = vpop.f32.mrf.mxu0
        %v3122 = vpop.f32.mrf.mxu0
        %v3123 = vadd.f32 %v2962, %v3122
        %v3124 = vpop.f32.mrf.mxu0
        %3125 = vmatprep.mubr.bf16.mxu0 0
        %3126 = vmatmul.mubr.bf16.gmra.mxu0 %v2568
        %v3127 = vpop.f32.mrf.mxu0
        %v3128 = vadd.f32 %v2967, %v3127
        %v3129 = vpop.f32.mrf.mxu0
        %v3130 = vpop.f32.mrf.mxu0
        %v3131 = vadd.f32 %v2970, %v3130
        %v3132 = vpop.f32.mrf.mxu0
        %3133 = vmatprep.mubr.bf16.mxu0 0
        %3134 = vmatmul.mubr.bf16.gmra.mxu0 %v2571
        %v3135 = vpop.f32.mrf.mxu0
        %v3136 = vadd.f32 %v2975, %v3135
        %v3137 = vpop.f32.mrf.mxu0
        %v3138 = vpop.f32.mrf.mxu0
        %v3139 = vadd.f32 %v2978, %v3138
        %v3140 = vpop.f32.mrf.mxu0
        %3141 = vmatprep.mubr.bf16.mxu0 0
        %3142 = vmatmul.mubr.bf16.gmra.mxu0 %v2574
        %v3143 = vpop.f32.mrf.mxu0
        %v3144 = vadd.f32 %v2983, %v3143
        %v3145 = vpop.f32.mrf.mxu0
        %v3146 = vpop.f32.mrf.mxu0
        %v3147 = vadd.f32 %v2986, %v3146
        %v3148 = vpop.f32.mrf.mxu0
        %3149 = vmatprep.mubr.bf16.mxu0 0
        %3150 = vmatmul.mubr.bf16.gmra.mxu0 %v2577
        %v3151 = vpop.f32.mrf.mxu0
        %v3152 = vadd.f32 %v2991, %v3151
        %v3153 = vpop.f32.mrf.mxu0
        %v3154 = vpop.f32.mrf.mxu0
        %v3155 = vadd.f32 %v2994, %v3154
        %v3156 = vpop.f32.mrf.mxu0
        %3157 = vmatprep.mubr.bf16.mxu0 0
        %3158 = vmatmul.mubr.bf16.gmra.mxu0 %v2580
        %v3159 = vpop.f32.mrf.mxu0
        %v3160 = vadd.f32 %v2999, %v3159
        %v3161 = vpop.f32.mrf.mxu0
        %v3162 = vpop.f32.mrf.mxu0
        %v3163 = vadd.f32 %v3002, %v3162
        %v3164 = vpop.f32.mrf.mxu0
        %3165 = vmatprep.mubr.bf16.mxu0 0
        %3166 = vmatmul.mubr.bf16.gmra.mxu0 %v2583
        %v3167 = vpop.f32.mrf.mxu0
        %v3168 = vadd.f32 %v3007, %v3167
        %v3169 = vpop.f32.mrf.mxu0
        %v3170 = vpop.f32.mrf.mxu0
        %v3171 = vadd.f32 %v3010, %v3170
        %v3172 = vpop.f32.mrf.mxu0
        %3173 = vmatprep.mubr.bf16.mxu0 0
        %3174 = vmatmul.mubr.bf16.gmra.mxu0 %v2665
        %v3175 = vpop.f32.mrf.mxu0
        %v3176 = vadd.f32 %v3015, %v3175
        %v3177 = vpop.f32.mrf.mxu0
        %v3178 = vpop.f32.mrf.mxu0
        %v3179 = vadd.f32 %v3018, %v3178
        %v3180 = vpop.f32.mrf.mxu0
        %3181 = vdwg.mxu0
        %v3230 = vunpack.c.l.b16 %v2600
        %v3231 = vunpack.c.l.b16 %v2601
        %v3232 = vunpack.c.l.b16 %v2602
        %v3233 = vunpack.c.l.b16 %v2603
        %v3234 = vunpack.c.l.b16 %v2604
        %v3235 = vunpack.c.l.b16 %v2605
        %v3236 = vunpack.c.l.b16 %v2606
        %v3237 = vunpack.c.l.b16 %v2607
        %v3238 = vunpack.c.l.b16 %v2608
        %v3239 = vunpack.c.l.b16 %v2609
        %v3240 = vunpack.c.l.b16 %v2610
        %v3241 = vunpack.c.l.b16 %v2611
        %v3242 = vunpack.c.l.b16 %v2612
        %v3243 = vunpack.c.l.b16 %v2613
        %v3244 = vunpack.c.l.b16 %v2614
        %v3245 = vunpack.c.l.b16 %v2615
        %v3246 = vunpack.c.l.b16 %v2616
        %v3247 = vunpack.c.l.b16 %v2617
        %v3248 = vunpack.c.l.b16 %v2618
        %v3249 = vunpack.c.l.b16 %v2619
        %v3250 = vunpack.c.l.b16 %v2620
        %v3251 = vunpack.c.l.b16 %v2621
        %v3252 = vunpack.c.l.b16 %v2622
        %v3253 = vunpack.c.l.b16 %v2623
        %v3254 = vunpack.c.l.b16 %v2624
        %v3255 = vunpack.c.l.b16 %v2625
        %v3256 = vunpack.c.l.b16 %v2626
        %v3257 = vunpack.c.l.b16 %v2627
        %v3258 = vunpack.c.l.b16 %v2628
        %v3259 = vunpack.c.l.b16 %v2629
        %v3260 = vunpack.c.l.b16 %v2630
        %v3261 = vunpack.c.l.b16 %v2631
        %v3262 = vunpack.c.l.b16 %v2632
        %v3263 = vunpack.c.l.b16 %v2633
        %v3264 = vunpack.c.l.b16 %v2634
        %v3265 = vunpack.c.l.b16 %v2635
        %v3266 = vunpack.c.l.b16 %v2636
        %v3267 = vunpack.c.l.b16 %v2637
        %v3268 = vunpack.c.l.b16 %v2638
        %v3269 = vunpack.c.l.b16 %v2639
        %v3270 = vunpack.c.l.b16 %v2640
        %v3271 = vunpack.c.l.b16 %v2641
        %v3272 = vunpack.c.l.b16 %v2642
        %v3273 = vunpack.c.l.b16 %v2643
        %v3274 = vunpack.c.l.b16 %v2644
        %v3275 = vunpack.c.l.b16 %v2645
        %v3276 = vunpack.c.l.b16 %v2646
        %v3277 = vunpack.c.l.b16 %v2647
        %v3278 = vpack.c.b16 %v3231, %v3230
        %v3279 = vpack.c.b16 %v3233, %v3232
        %v3280 = vpack.c.b16 %v3235, %v3234
        %v3281 = vpack.c.b16 %v3237, %v3236
        %v3282 = vpack.c.b16 %v3239, %v3238
        %v3283 = vpack.c.b16 %v3241, %v3240
        %v3284 = vpack.c.b16 %v3243, %v3242
        %v3285 = vpack.c.b16 %v3245, %v3244
        %v3286 = vpack.c.b16 %v3247, %v3246
        %v3287 = vpack.c.b16 %v3249, %v3248
        %v3288 = vpack.c.b16 %v3251, %v3250
        %v3289 = vpack.c.b16 %v3253, %v3252
        %v3290 = vpack.c.b16 %v3255, %v3254
        %v3291 = vpack.c.b16 %v3257, %v3256
        %v3292 = vpack.c.b16 %v3259, %v3258
        %v3293 = vpack.c.b16 %v3261, %v3260
        %v3294 = vpack.c.b16 %v3263, %v3262
        %v3295 = vpack.c.b16 %v3265, %v3264
        %v3296 = vpack.c.b16 %v3267, %v3266
        %v3297 = vpack.c.b16 %v3269, %v3268
        %v3298 = vpack.c.b16 %v3271, %v3270
        %v3299 = vpack.c.b16 %v3273, %v3272
        %v3300 = vpack.c.b16 %v3275, %v3274
        %v3301 = vpack.c.b16 %v3277, %v3276
        %3326 = vmatprep.subr.bf16.mxu0 0
        %3327 = vmatpush1.bf16.msra.mxu0 %v3285
        %3328 = vmatprep.subr.bf16.mxu0 0
        %3329 = vmatpush1.bf16.msra.mxu0 %v3284
        %3330 = vmatprep.subr.bf16.mxu0 0
        %3331 = vmatpush1.bf16.msra.mxu0 %v3283
        %3332 = vmatprep.subr.bf16.mxu0 0
        %3333 = vmatpush1.bf16.msra.mxu0 %v3282
        %3334 = vmatprep.subr.bf16.mxu0 0
        %3335 = vmatpush1.bf16.msra.mxu0 %v3281
        %3336 = vmatprep.subr.bf16.mxu0 0
        %3337 = vmatpush1.bf16.msra.mxu0 %v3280
        %3338 = vmatprep.subr.bf16.mxu0 0
        %3339 = vmatpush1.bf16.msra.mxu0 %v3279
        %3340 = vmatprep.subr.bf16.mxu0 0
        %3341 = vmatpush1.bf16.msra.mxu0 %v3278
        %3342 = vmatprep.subr.bf16.mxu0 0
        %3343 = vmatpush2.bf16.msra.mxu0 %v3293
        %3344 = vmatprep.subr.bf16.mxu0 0
        %3345 = vmatpush2.bf16.msra.mxu0 %v3292
        %3346 = vmatprep.subr.bf16.mxu0 0
        %3347 = vmatpush2.bf16.msra.mxu0 %v3291
        %3348 = vmatprep.subr.bf16.mxu0 0
        %3349 = vmatpush2.bf16.msra.mxu0 %v3290
        %3350 = vmatprep.subr.bf16.mxu0 0
        %3351 = vmatpush2.bf16.msra.mxu0 %v3289
        %3352 = vmatprep.subr.bf16.mxu0 0
        %3353 = vmatpush2.bf16.msra.mxu0 %v3288
        %3354 = vmatprep.subr.bf16.mxu0 0
        %3355 = vmatpush2.bf16.msra.mxu0 %v3287
        %3356 = vmatprep.subr.bf16.mxu0 0
        %3357 = vmatpush2.bf16.msra.mxu0 %v3286
        %3358 = vmatprep.mubr.bf16.mxu0 %v2307
        %3359 = vmatmul.mubr.bf16.gmra.mxu0 %v2260
        %v3360 = vpop.f32.mrf.mxu0
        %v3361 = vadd.f32 %v3056, %v3360
        %v3362 = vpop.f32.mrf.mxu0
        %v3363 = vpop.f32.mrf.mxu0
        %v3364 = vadd.f32 %v3059, %v3363
        %v3365 = vpop.f32.mrf.mxu0
        %3366 = vmatprep.mubr.bf16.mxu0 %v2319
        %3367 = vmatmul.mubr.bf16.gmra.mxu0 %v2261
        %v3368 = vpop.f32.mrf.mxu0
        %v3369 = vadd.f32 %v3064, %v3368
        %v3370 = vpop.f32.mrf.mxu0
        %v3371 = vpop.f32.mrf.mxu0
        %v3372 = vadd.f32 %v3067, %v3371
        %v3373 = vpop.f32.mrf.mxu0
        %3374 = vmatprep.mubr.bf16.mxu0 %v2331
        %3375 = vmatmul.mubr.bf16.gmra.mxu0 %v2262
        %v3376 = vpop.f32.mrf.mxu0
        %v3377 = vadd.f32 %v3072, %v3376
        %v3378 = vpop.f32.mrf.mxu0
        %v3379 = vpop.f32.mrf.mxu0
        %v3380 = vadd.f32 %v3075, %v3379
        %v3381 = vpop.f32.mrf.mxu0
        %3382 = vmatprep.mubr.bf16.mxu0 %v2343
        %3383 = vmatmul.mubr.bf16.gmra.mxu0 %v2263
        %v3384 = vpop.f32.mrf.mxu0
        %v3385 = vadd.f32 %v3080, %v3384
        %v3386 = vpop.f32.mrf.mxu0
        %v3387 = vpop.f32.mrf.mxu0
        %v3388 = vadd.f32 %v3083, %v3387
        %v3389 = vpop.f32.mrf.mxu0
        %3390 = vmatprep.mubr.bf16.mxu0 %v2355
        %3391 = vmatmul.mubr.bf16.gmra.mxu0 %v2264
        %v3392 = vpop.f32.mrf.mxu0
        %v3393 = vadd.f32 %v3088, %v3392
        %v3394 = vpop.f32.mrf.mxu0
        %v3395 = vpop.f32.mrf.mxu0
        %v3396 = vadd.f32 %v3091, %v3395
        %v3397 = vpop.f32.mrf.mxu0
        %3398 = vmatprep.mubr.bf16.mxu0 %v2367
        %3399 = vmatmul.mubr.bf16.gmra.mxu0 %v2265
        %v3400 = vpop.f32.mrf.mxu0
        %v3401 = vadd.f32 %v3096, %v3400
        %v3402 = vpop.f32.mrf.mxu0
        %v3403 = vpop.f32.mrf.mxu0
        %v3404 = vadd.f32 %v3099, %v3403
        %v3405 = vpop.f32.mrf.mxu0
        %3406 = vmatprep.mubr.bf16.mxu0 %v2379
        %3407 = vmatmul.mubr.bf16.gmra.mxu0 %v2266
        %v3408 = vpop.f32.mrf.mxu0
        %v3409 = vadd.f32 %v3104, %v3408
        %v3410 = vpop.f32.mrf.mxu0
        %v3411 = vpop.f32.mrf.mxu0
        %v3412 = vadd.f32 %v3107, %v3411
        %v3413 = vpop.f32.mrf.mxu0
        %3414 = vmatprep.mubr.bf16.mxu0 %v2391
        %3415 = vmatmul.mubr.bf16.gmra.mxu0 %v2267
        %v3416 = vpop.f32.mrf.mxu0
        %v3417 = vadd.f32 %v3112, %v3416
        %v3418 = vpop.f32.mrf.mxu0
        %v3419 = vpop.f32.mrf.mxu0
        %v3420 = vadd.f32 %v3115, %v3419
        %v3421 = vpop.f32.mrf.mxu0
        %3422 = vmatprep.mubr.bf16.mxu0 %v2403
        %3423 = vmatmul.mubr.bf16.gmra.mxu0 %v2268
        %v3424 = vpop.f32.mrf.mxu0
        %v3425 = vadd.f32 %v3120, %v3424
        %v3426 = vpop.f32.mrf.mxu0
        %v3427 = vpop.f32.mrf.mxu0
        %v3428 = vadd.f32 %v3123, %v3427
        %v3429 = vpop.f32.mrf.mxu0
        %3430 = vmatprep.mubr.bf16.mxu0 %v2415
        %3431 = vmatmul.mubr.bf16.gmra.mxu0 %v2269
        %v3432 = vpop.f32.mrf.mxu0
        %v3433 = vadd.f32 %v3128, %v3432
        %v3434 = vpop.f32.mrf.mxu0
        %v3435 = vpop.f32.mrf.mxu0
        %v3436 = vadd.f32 %v3131, %v3435
        %v3437 = vpop.f32.mrf.mxu0
        %3438 = vmatprep.mubr.bf16.mxu0 %v2427
        %3439 = vmatmul.mubr.bf16.gmra.mxu0 %v2270
        %v3440 = vpop.f32.mrf.mxu0
        %v3441 = vadd.f32 %v3136, %v3440
        %v3442 = vpop.f32.mrf.mxu0
        %v3443 = vpop.f32.mrf.mxu0
        %v3444 = vadd.f32 %v3139, %v3443
        %v3445 = vpop.f32.mrf.mxu0
        %3446 = vmatprep.mubr.bf16.mxu0 %v2439
        %3447 = vmatmul.mubr.bf16.gmra.mxu0 %v2271
        %v3448 = vpop.f32.mrf.mxu0
        %v3449 = vadd.f32 %v3144, %v3448
        %v3450 = vpop.f32.mrf.mxu0
        %v3451 = vpop.f32.mrf.mxu0
        %v3452 = vadd.f32 %v3147, %v3451
        %v3453 = vpop.f32.mrf.mxu0
        %3454 = vmatprep.mubr.bf16.mxu0 %v2451
        %3455 = vmatmul.mubr.bf16.gmra.mxu0 %v2272
        %v3456 = vpop.f32.mrf.mxu0
        %v3457 = vadd.f32 %v3152, %v3456
        %v3458 = vpop.f32.mrf.mxu0
        %v3459 = vpop.f32.mrf.mxu0
        %v3460 = vadd.f32 %v3155, %v3459
        %v3461 = vpop.f32.mrf.mxu0
        %3462 = vmatprep.mubr.bf16.mxu0 %v2463
        %3463 = vmatmul.mubr.bf16.gmra.mxu0 %v2273
        %v3464 = vpop.f32.mrf.mxu0
        %v3465 = vadd.f32 %v3160, %v3464
        %v3466 = vpop.f32.mrf.mxu0
        %v3467 = vpop.f32.mrf.mxu0
        %v3468 = vadd.f32 %v3163, %v3467
        %v3469 = vpop.f32.mrf.mxu0
        %3470 = vmatprep.mubr.bf16.mxu0 %v2475
        %3471 = vmatmul.mubr.bf16.gmra.mxu0 %v2274
        %v3472 = vpop.f32.mrf.mxu0
        %v3473 = vadd.f32 %v3168, %v3472
        %v3474 = vpop.f32.mrf.mxu0
        %v3475 = vpop.f32.mrf.mxu0
        %v3476 = vadd.f32 %v3171, %v3475
        %v3477 = vpop.f32.mrf.mxu0
        %3478 = vmatprep.mubr.bf16.mxu0 %v2487
        %3479 = vmatmul.mubr.bf16.gmra.mxu0 %v2275
        %v3480 = vpop.f32.mrf.mxu0
        %v3481 = vadd.f32 %v3176, %v3480
        %v3482 = vpop.f32.mrf.mxu0
        %v3483 = vpop.f32.mrf.mxu0
        %v3484 = vadd.f32 %v3179, %v3483
        %v3485 = vpop.f32.mrf.mxu0
        %3486 = vdwg.mxu0
        %3487 = vmatprep.subr.bf16.mxu0 0
        %3488 = vmatpush1.bf16.msra.mxu0 %v3301
        %3489 = vmatprep.subr.bf16.mxu0 0
        %3490 = vmatpush1.bf16.msra.mxu0 %v3300
        %3491 = vmatprep.subr.bf16.mxu0 0
        %3492 = vmatpush1.bf16.msra.mxu0 %v3299
        %3493 = vmatprep.subr.bf16.mxu0 0
        %3494 = vmatpush1.bf16.msra.mxu0 %v3298
        %3495 = vmatprep.subr.bf16.mxu0 0
        %3496 = vmatpush1.bf16.msra.mxu0 %v3297
        %3497 = vmatprep.subr.bf16.mxu0 0
        %3498 = vmatpush1.bf16.msra.mxu0 %v3296
        %3499 = vmatprep.subr.bf16.mxu0 0
        %3500 = vmatpush1.bf16.msra.mxu0 %v3295
        %3501 = vmatprep.subr.bf16.mxu0 0
        %3502 = vmatpush1.bf16.msra.mxu0 %v3294
        %3503 = vmatprep.subr.bf16.mxu0 0
        %3504 = vmatpush2.bf16.msra.mxu0 0
        %3505 = vmatprep.subr.bf16.mxu0 0
        %3506 = vmatpush2.bf16.msra.mxu0 0
        %3507 = vmatprep.subr.bf16.mxu0 0
        %3508 = vmatpush2.bf16.msra.mxu0 0
        %3509 = vmatprep.subr.bf16.mxu0 0
        %3510 = vmatpush2.bf16.msra.mxu0 0
        %3511 = vmatprep.subr.bf16.mxu0 0
        %3512 = vmatpush2.bf16.msra.mxu0 0
        %3513 = vmatprep.subr.bf16.mxu0 0
        %3514 = vmatpush2.bf16.msra.mxu0 0
        %3515 = vmatprep.subr.bf16.mxu0 0
        %3516 = vmatpush2.bf16.msra.mxu0 0
        %3517 = vmatprep.subr.bf16.mxu0 0
        %3518 = vmatpush2.bf16.msra.mxu0 0
        %3519 = vmatprep.mubr.bf16.mxu0 0
        %3520 = vmatmul.mubr.bf16.gmra.mxu0 %v2538
        %v3521 = vpop.f32.mrf.mxu0
        %v3522 = vadd.f32 %v3361, %v3521
        %v3523 = vpop.f32.mrf.mxu0
        %v3524 = vpop.f32.mrf.mxu0
        %v3525 = vadd.f32 %v3364, %v3524
        %v3526 = vpop.f32.mrf.mxu0
        %3527 = vmatprep.mubr.bf16.mxu0 0
        %3528 = vmatmul.mubr.bf16.gmra.mxu0 %v2541
        %v3529 = vpop.f32.mrf.mxu0
        %v3530 = vadd.f32 %v3369, %v3529
        %v3531 = vpop.f32.mrf.mxu0
        %v3532 = vpop.f32.mrf.mxu0
        %v3533 = vadd.f32 %v3372, %v3532
        %v3534 = vpop.f32.mrf.mxu0
        %3535 = vmatprep.mubr.bf16.mxu0 0
        %3536 = vmatmul.mubr.bf16.gmra.mxu0 %v2544
        %v3537 = vpop.f32.mrf.mxu0
        %v3538 = vadd.f32 %v3377, %v3537
        %v3539 = vpop.f32.mrf.mxu0
        %v3540 = vpop.f32.mrf.mxu0
        %v3541 = vadd.f32 %v3380, %v3540
        %v3542 = vpop.f32.mrf.mxu0
        %3543 = vmatprep.mubr.bf16.mxu0 0
        %3544 = vmatmul.mubr.bf16.gmra.mxu0 %v2547
        %v3545 = vpop.f32.mrf.mxu0
        %v3546 = vadd.f32 %v3385, %v3545
        %v3547 = vpop.f32.mrf.mxu0
        %v3548 = vpop.f32.mrf.mxu0
        %v3549 = vadd.f32 %v3388, %v3548
        %v3550 = vpop.f32.mrf.mxu0
        %3551 = vmatprep.mubr.bf16.mxu0 0
        %3552 = vmatmul.mubr.bf16.gmra.mxu0 %v2550
        %v3553 = vpop.f32.mrf.mxu0
        %v3554 = vadd.f32 %v3393, %v3553
        %v3555 = vpop.f32.mrf.mxu0
        %v3556 = vpop.f32.mrf.mxu0
        %v3557 = vadd.f32 %v3396, %v3556
        %v3558 = vpop.f32.mrf.mxu0
        %3559 = vmatprep.mubr.bf16.mxu0 0
        %3560 = vmatmul.mubr.bf16.gmra.mxu0 %v2553
        %v3561 = vpop.f32.mrf.mxu0
        %v3562 = vadd.f32 %v3401, %v3561
        %v3563 = vpop.f32.mrf.mxu0
        %v3564 = vpop.f32.mrf.mxu0
        %v3565 = vadd.f32 %v3404, %v3564
        %v3566 = vpop.f32.mrf.mxu0
        %3567 = vmatprep.mubr.bf16.mxu0 0
        %3568 = vmatmul.mubr.bf16.gmra.mxu0 %v2556
        %v3569 = vpop.f32.mrf.mxu0
        %v3570 = vadd.f32 %v3409, %v3569
        %v3571 = vpop.f32.mrf.mxu0
        %v3572 = vpop.f32.mrf.mxu0
        %v3573 = vadd.f32 %v3412, %v3572
        %v3574 = vpop.f32.mrf.mxu0
        %3575 = vmatprep.mubr.bf16.mxu0 0
        %3576 = vmatmul.mubr.bf16.gmra.mxu0 %v2559
        %v3577 = vpop.f32.mrf.mxu0
        %v3578 = vadd.f32 %v3417, %v3577
        %v3579 = vpop.f32.mrf.mxu0
        %v3580 = vpop.f32.mrf.mxu0
        %v3581 = vadd.f32 %v3420, %v3580
        %v3582 = vpop.f32.mrf.mxu0
        %3583 = vmatprep.mubr.bf16.mxu0 0
        %3584 = vmatmul.mubr.bf16.gmra.mxu0 %v2562
        %v3585 = vpop.f32.mrf.mxu0
        %v3586 = vadd.f32 %v3425, %v3585
        %v3587 = vpop.f32.mrf.mxu0
        %v3588 = vpop.f32.mrf.mxu0
        %v3589 = vadd.f32 %v3428, %v3588
        %v3590 = vpop.f32.mrf.mxu0
        %3591 = vmatprep.mubr.bf16.mxu0 0
        %3592 = vmatmul.mubr.bf16.gmra.mxu0 %v2565
        %v3593 = vpop.f32.mrf.mxu0
        %v3594 = vadd.f32 %v3433, %v3593
        %v3595 = vpop.f32.mrf.mxu0
        %v3596 = vpop.f32.mrf.mxu0
        %v3597 = vadd.f32 %v3436, %v3596
        %v3598 = vpop.f32.mrf.mxu0
        %3599 = vmatprep.mubr.bf16.mxu0 0
        %3600 = vmatmul.mubr.bf16.gmra.mxu0 %v2568
        %v3601 = vpop.f32.mrf.mxu0
        %v3602 = vadd.f32 %v3441, %v3601
        %v3603 = vpop.f32.mrf.mxu0
        %v3604 = vpop.f32.mrf.mxu0
        %v3605 = vadd.f32 %v3444, %v3604
        %v3606 = vpop.f32.mrf.mxu0
        %3607 = vmatprep.mubr.bf16.mxu0 0
        %3608 = vmatmul.mubr.bf16.gmra.mxu0 %v2571
        %v3609 = vpop.f32.mrf.mxu0
        %v3610 = vadd.f32 %v3449, %v3609
        %v3611 = vpop.f32.mrf.mxu0
        %v3612 = vpop.f32.mrf.mxu0
        %v3613 = vadd.f32 %v3452, %v3612
        %v3614 = vpop.f32.mrf.mxu0
        %3615 = vmatprep.mubr.bf16.mxu0 0
        %3616 = vmatmul.mubr.bf16.gmra.mxu0 %v2574
        %v3617 = vpop.f32.mrf.mxu0
        %v3618 = vadd.f32 %v3457, %v3617
        %v3619 = vpop.f32.mrf.mxu0
        %v3620 = vpop.f32.mrf.mxu0
        %v3621 = vadd.f32 %v3460, %v3620
        %v3622 = vpop.f32.mrf.mxu0
        %3623 = vmatprep.mubr.bf16.mxu0 0
        %3624 = vmatmul.mubr.bf16.gmra.mxu0 %v2577
        %v3625 = vpop.f32.mrf.mxu0
        %v3626 = vadd.f32 %v3465, %v3625
        %v3627 = vpop.f32.mrf.mxu0
        %v3628 = vpop.f32.mrf.mxu0
        %v3629 = vadd.f32 %v3468, %v3628
        %v3630 = vpop.f32.mrf.mxu0
        %3631 = vmatprep.mubr.bf16.mxu0 0
        %3632 = vmatmul.mubr.bf16.gmra.mxu0 %v2580
        %v3633 = vpop.f32.mrf.mxu0
        %v3634 = vadd.f32 %v3473, %v3633
        %v3635 = vpop.f32.mrf.mxu0
        %v3636 = vpop.f32.mrf.mxu0
        %v3637 = vadd.f32 %v3476, %v3636
        %v3638 = vpop.f32.mrf.mxu0
        %3639 = vmatprep.mubr.bf16.mxu0 0
        %3640 = vmatmul.mubr.bf16.gmra.mxu0 %v2583
        %v3641 = vpop.f32.mrf.mxu0
        %v3642 = vadd.f32 %v3481, %v3641
        %v3643 = vpop.f32.mrf.mxu0
        %v3644 = vpop.f32.mrf.mxu0
        %v3645 = vadd.f32 %v3484, %v3644
        %v3646 = vpop.f32.mrf.mxu0
        %3647 = vdwg.mxu0
        %v3649 = vshrl.u32 %v2277, 16
        %v3651 = vshll.u32 %v2277, 16
        %v3653 = vrot.slane %v3651, 1
        %v3654 = vor.u32 %v3649, %v3653
        %v3656 = vshll.u32 %v2295, 16
        %v3658 = vrot.slane %v3656, 1
        %v3659 = vsel %vm621, %v3654, %v3658
        %v3663 = vrot.slane %v2277, 1
        %v3664 = vrot.slane %v2295, 1
        %v3665 = vsel %vm874, %v3663, %v3664
        %s3667 = scalar_lea.vmem %s4, 384
        %v3668 = vld [vmem:[%s3667] sm:$0xf]
        %v3669 = vld [vmem:[%s3667 + $0x4] sm:$0xf]
        %v3670 = vld [vmem:[%s3667 + $0x8] sm:$0xf]
        %v3671 = vld [vmem:[%s3667 + $0xc] sm:$0xf]
        %v3672 = vld [vmem:[%s3667 + $0x10] sm:$0xf]
        %v3673 = vld [vmem:[%s3667 + $0x14] sm:$0xf]
        %v3674 = vld [vmem:[%s3667 + $0x18] sm:$0xf]
        %v3675 = vld [vmem:[%s3667 + $0x1c] sm:$0xf]
        %v3676 = vld [vmem:[%s3667 + $0x20] sm:$0xf]
        %v3677 = vld [vmem:[%s3667 + $0x24] sm:$0xf]
        %v3678 = vld [vmem:[%s3667 + $0x28] sm:$0xf]
        %v3679 = vld [vmem:[%s3667 + $0x2c] sm:$0xf]
        %v3680 = vld [vmem:[%s3667 + $0x30] sm:$0xf]
        %v3681 = vld [vmem:[%s3667 + $0x34] sm:$0xf]
        %v3682 = vld [vmem:[%s3667 + $0x38] sm:$0xf]
        %v3683 = vld [vmem:[%s3667 + $0x3c] sm:$0xf]
        %v3684 = vld [vmem:[%s3667 + $0x40] sm:$0xf]
        %v3685 = vld [vmem:[%s3667 + $0x44] sm:$0xf]
        %v3686 = vld [vmem:[%s3667 + $0x48] sm:$0xf]
        %v3687 = vld [vmem:[%s3667 + $0x4c] sm:$0xf]
        %v3688 = vld [vmem:[%s3667 + $0x50] sm:$0xf]
        %v3689 = vld [vmem:[%s3667 + $0x54] sm:$0xf]
        %v3690 = vld [vmem:[%s3667 + $0x58] sm:$0xf]
        %v3691 = vld [vmem:[%s3667 + $0x5c] sm:$0xf]
        %v3692 = vld [vmem:[%s3667 + $0x60] sm:$0xf]
        %v3693 = vld [vmem:[%s3667 + $0x64] sm:$0xf]
        %v3694 = vld [vmem:[%s3667 + $0x68] sm:$0xf]
        %v3695 = vld [vmem:[%s3667 + $0x6c] sm:$0xf]
        %v3696 = vld [vmem:[%s3667 + $0x70] sm:$0xf]
        %v3697 = vld [vmem:[%s3667 + $0x74] sm:$0xf]
        %v3698 = vld [vmem:[%s3667 + $0x78] sm:$0xf]
        %v3699 = vld [vmem:[%s3667 + $0x7c] sm:$0xf]
        %v3700 = vld [vmem:[%s3667 + $0x80] sm:$0xf]
        %v3701 = vld [vmem:[%s3667 + $0x84] sm:$0xf]
        %v3702 = vld [vmem:[%s3667 + $0x88] sm:$0xf]
        %v3703 = vld [vmem:[%s3667 + $0x8c] sm:$0xf]
        %v3704 = vld [vmem:[%s3667 + $0x90] sm:$0xf]
        %v3705 = vld [vmem:[%s3667 + $0x94] sm:$0xf]
        %v3706 = vld [vmem:[%s3667 + $0x98] sm:$0xf]
        %v3707 = vld [vmem:[%s3667 + $0x9c] sm:$0xf]
        %v3708 = vld [vmem:[%s3667 + $0xa0] sm:$0xf]
        %v3709 = vld [vmem:[%s3667 + $0xa4] sm:$0xf]
        %v3710 = vld [vmem:[%s3667 + $0xa8] sm:$0xf]
        %v3711 = vld [vmem:[%s3667 + $0xac] sm:$0xf]
        %v3712 = vld [vmem:[%s3667 + $0xb0] sm:$0xf]
        %v3713 = vld [vmem:[%s3667 + $0xb4] sm:$0xf]
        %v3714 = vld [vmem:[%s3667 + $0xb8] sm:$0xf]
        %v3715 = vld [vmem:[%s3667 + $0xbc] sm:$0xf]
        %v3764 = vunpack.c.l.b16 %v3668
        %v3765 = vunpack.c.l.b16 %v3669
        %v3766 = vunpack.c.l.b16 %v3670
        %v3767 = vunpack.c.l.b16 %v3671
        %v3768 = vunpack.c.l.b16 %v3672
        %v3769 = vunpack.c.l.b16 %v3673
        %v3770 = vunpack.c.l.b16 %v3674
        %v3771 = vunpack.c.l.b16 %v3675
        %v3772 = vunpack.c.l.b16 %v3676
        %v3773 = vunpack.c.l.b16 %v3677
        %v3774 = vunpack.c.l.b16 %v3678
        %v3775 = vunpack.c.l.b16 %v3679
        %v3776 = vunpack.c.l.b16 %v3680
        %v3777 = vunpack.c.l.b16 %v3681
        %v3778 = vunpack.c.l.b16 %v3682
        %v3779 = vunpack.c.l.b16 %v3683
        %v3780 = vunpack.c.l.b16 %v3684
        %v3781 = vunpack.c.l.b16 %v3685
        %v3782 = vunpack.c.l.b16 %v3686
        %v3783 = vunpack.c.l.b16 %v3687
        %v3784 = vunpack.c.l.b16 %v3688
        %v3785 = vunpack.c.l.b16 %v3689
        %v3786 = vunpack.c.l.b16 %v3690
        %v3787 = vunpack.c.l.b16 %v3691
        %v3788 = vunpack.c.l.b16 %v3692
        %v3789 = vunpack.c.l.b16 %v3693
        %v3790 = vunpack.c.l.b16 %v3694
        %v3791 = vunpack.c.l.b16 %v3695
        %v3792 = vunpack.c.l.b16 %v3696
        %v3793 = vunpack.c.l.b16 %v3697
        %v3794 = vunpack.c.l.b16 %v3698
        %v3795 = vunpack.c.l.b16 %v3699
        %v3796 = vunpack.c.l.b16 %v3700
        %v3797 = vunpack.c.l.b16 %v3701
        %v3798 = vunpack.c.l.b16 %v3702
        %v3799 = vunpack.c.l.b16 %v3703
        %v3800 = vunpack.c.l.b16 %v3704
        %v3801 = vunpack.c.l.b16 %v3705
        %v3802 = vunpack.c.l.b16 %v3706
        %v3803 = vunpack.c.l.b16 %v3707
        %v3804 = vunpack.c.l.b16 %v3708
        %v3805 = vunpack.c.l.b16 %v3709
        %v3806 = vunpack.c.l.b16 %v3710
        %v3807 = vunpack.c.l.b16 %v3711
        %v3808 = vunpack.c.l.b16 %v3712
        %v3809 = vunpack.c.l.b16 %v3713
        %v3810 = vunpack.c.l.b16 %v3714
        %v3811 = vunpack.c.l.b16 %v3715
        %v3812 = vpack.c.b16 %v3765, %v3764
        %v3813 = vpack.c.b16 %v3767, %v3766
        %v3814 = vpack.c.b16 %v3769, %v3768
        %v3815 = vpack.c.b16 %v3771, %v3770
        %v3816 = vpack.c.b16 %v3773, %v3772
        %v3817 = vpack.c.b16 %v3775, %v3774
        %v3818 = vpack.c.b16 %v3777, %v3776
        %v3819 = vpack.c.b16 %v3779, %v3778
        %v3820 = vpack.c.b16 %v3781, %v3780
        %v3821 = vpack.c.b16 %v3783, %v3782
        %v3822 = vpack.c.b16 %v3785, %v3784
        %v3823 = vpack.c.b16 %v3787, %v3786
        %v3824 = vpack.c.b16 %v3789, %v3788
        %v3825 = vpack.c.b16 %v3791, %v3790
        %v3826 = vpack.c.b16 %v3793, %v3792
        %v3827 = vpack.c.b16 %v3795, %v3794
        %v3828 = vpack.c.b16 %v3797, %v3796
        %v3829 = vpack.c.b16 %v3799, %v3798
        %v3830 = vpack.c.b16 %v3801, %v3800
        %v3831 = vpack.c.b16 %v3803, %v3802
        %v3832 = vpack.c.b16 %v3805, %v3804
        %v3833 = vpack.c.b16 %v3807, %v3806
        %v3834 = vpack.c.b16 %v3809, %v3808
        %v3835 = vpack.c.b16 %v3811, %v3810
        %3860 = vmatprep.subr.bf16.mxu0 0
        %3861 = vmatpush1.bf16.msra.mxu0 %v3819
        %3862 = vmatprep.subr.bf16.mxu0 0
        %3863 = vmatpush1.bf16.msra.mxu0 %v3818
        %3864 = vmatprep.subr.bf16.mxu0 0
        %3865 = vmatpush1.bf16.msra.mxu0 %v3817
        %3866 = vmatprep.subr.bf16.mxu0 0
        %3867 = vmatpush1.bf16.msra.mxu0 %v3816
        %3868 = vmatprep.subr.bf16.mxu0 0
        %3869 = vmatpush1.bf16.msra.mxu0 %v3815
        %3870 = vmatprep.subr.bf16.mxu0 0
        %3871 = vmatpush1.bf16.msra.mxu0 %v3814
        %3872 = vmatprep.subr.bf16.mxu0 0
        %3873 = vmatpush1.bf16.msra.mxu0 %v3813
        %3874 = vmatprep.subr.bf16.mxu0 0
        %3875 = vmatpush1.bf16.msra.mxu0 %v3812
        %3876 = vmatprep.subr.bf16.mxu0 0
        %3877 = vmatpush2.bf16.msra.mxu0 %v3827
        %3878 = vmatprep.subr.bf16.mxu0 0
        %3879 = vmatpush2.bf16.msra.mxu0 %v3826
        %3880 = vmatprep.subr.bf16.mxu0 0
        %3881 = vmatpush2.bf16.msra.mxu0 %v3825
        %3882 = vmatprep.subr.bf16.mxu0 0
        %3883 = vmatpush2.bf16.msra.mxu0 %v3824
        %3884 = vmatprep.subr.bf16.mxu0 0
        %3885 = vmatpush2.bf16.msra.mxu0 %v3823
        %3886 = vmatprep.subr.bf16.mxu0 0
        %3887 = vmatpush2.bf16.msra.mxu0 %v3822
        %3888 = vmatprep.subr.bf16.mxu0 0
        %3889 = vmatpush2.bf16.msra.mxu0 %v3821
        %3890 = vmatprep.subr.bf16.mxu0 0
        %3891 = vmatpush2.bf16.msra.mxu0 %v3820
        %3892 = vmatprep.mubr.bf16.mxu0 %v2331
        %3893 = vmatmul.mubr.bf16.gmra.mxu0 %v2262
        %v3894 = vpop.f32.mrf.mxu0
        %v3895 = vadd.f32 0.0, %v3894
        %v3896 = vpop.f32.mrf.mxu0
        %v3897 = vpop.f32.mrf.mxu0
        %v3898 = vadd.f32 0.0, %v3897
        %v3899 = vpop.f32.mrf.mxu0
        %3900 = vmatprep.mubr.bf16.mxu0 %v2343
        %3901 = vmatmul.mubr.bf16.gmra.mxu0 %v2263
        %v3902 = vpop.f32.mrf.mxu0
        %v3903 = vadd.f32 0.0, %v3902
        %v3904 = vpop.f32.mrf.mxu0
        %v3905 = vpop.f32.mrf.mxu0
        %v3906 = vadd.f32 0.0, %v3905
        %v3907 = vpop.f32.mrf.mxu0
        %3908 = vmatprep.mubr.bf16.mxu0 %v2355
        %3909 = vmatmul.mubr.bf16.gmra.mxu0 %v2264
        %v3910 = vpop.f32.mrf.mxu0
        %v3911 = vadd.f32 0.0, %v3910
        %v3912 = vpop.f32.mrf.mxu0
        %v3913 = vpop.f32.mrf.mxu0
        %v3914 = vadd.f32 0.0, %v3913
        %v3915 = vpop.f32.mrf.mxu0
        %3916 = vmatprep.mubr.bf16.mxu0 %v2367
        %3917 = vmatmul.mubr.bf16.gmra.mxu0 %v2265
        %v3918 = vpop.f32.mrf.mxu0
        %v3919 = vadd.f32 0.0, %v3918
        %v3920 = vpop.f32.mrf.mxu0
        %v3921 = vpop.f32.mrf.mxu0
        %v3922 = vadd.f32 0.0, %v3921
        %v3923 = vpop.f32.mrf.mxu0
        %3924 = vmatprep.mubr.bf16.mxu0 %v2379
        %3925 = vmatmul.mubr.bf16.gmra.mxu0 %v2266
        %v3926 = vpop.f32.mrf.mxu0
        %v3927 = vadd.f32 0.0, %v3926
        %v3928 = vpop.f32.mrf.mxu0
        %v3929 = vpop.f32.mrf.mxu0
        %v3930 = vadd.f32 0.0, %v3929
        %v3931 = vpop.f32.mrf.mxu0
        %3932 = vmatprep.mubr.bf16.mxu0 %v2391
        %3933 = vmatmul.mubr.bf16.gmra.mxu0 %v2267
        %v3934 = vpop.f32.mrf.mxu0
        %v3935 = vadd.f32 0.0, %v3934
        %v3936 = vpop.f32.mrf.mxu0
        %v3937 = vpop.f32.mrf.mxu0
        %v3938 = vadd.f32 0.0, %v3937
        %v3939 = vpop.f32.mrf.mxu0
        %3940 = vmatprep.mubr.bf16.mxu0 %v2403
        %3941 = vmatmul.mubr.bf16.gmra.mxu0 %v2268
        %v3942 = vpop.f32.mrf.mxu0
        %v3943 = vadd.f32 0.0, %v3942
        %v3944 = vpop.f32.mrf.mxu0
        %v3945 = vpop.f32.mrf.mxu0
        %v3946 = vadd.f32 0.0, %v3945
        %v3947 = vpop.f32.mrf.mxu0
        %3948 = vmatprep.mubr.bf16.mxu0 %v2415
        %3949 = vmatmul.mubr.bf16.gmra.mxu0 %v2269
        %v3950 = vpop.f32.mrf.mxu0
        %v3951 = vadd.f32 0.0, %v3950
        %v3952 = vpop.f32.mrf.mxu0
        %v3953 = vpop.f32.mrf.mxu0
        %v3954 = vadd.f32 0.0, %v3953
        %v3955 = vpop.f32.mrf.mxu0
        %3956 = vmatprep.mubr.bf16.mxu0 %v2427
        %3957 = vmatmul.mubr.bf16.gmra.mxu0 %v2270
        %v3958 = vpop.f32.mrf.mxu0
        %v3959 = vadd.f32 0.0, %v3958
        %v3960 = vpop.f32.mrf.mxu0
        %v3961 = vpop.f32.mrf.mxu0
        %v3962 = vadd.f32 0.0, %v3961
        %v3963 = vpop.f32.mrf.mxu0
        %3964 = vmatprep.mubr.bf16.mxu0 %v2439
        %3965 = vmatmul.mubr.bf16.gmra.mxu0 %v2271
        %v3966 = vpop.f32.mrf.mxu0
        %v3967 = vadd.f32 0.0, %v3966
        %v3968 = vpop.f32.mrf.mxu0
        %v3969 = vpop.f32.mrf.mxu0
        %v3970 = vadd.f32 0.0, %v3969
        %v3971 = vpop.f32.mrf.mxu0
        %3972 = vmatprep.mubr.bf16.mxu0 %v2451
        %3973 = vmatmul.mubr.bf16.gmra.mxu0 %v2272
        %v3974 = vpop.f32.mrf.mxu0
        %v3975 = vadd.f32 0.0, %v3974
        %v3976 = vpop.f32.mrf.mxu0
        %v3977 = vpop.f32.mrf.mxu0
        %v3978 = vadd.f32 0.0, %v3977
        %v3979 = vpop.f32.mrf.mxu0
        %3980 = vmatprep.mubr.bf16.mxu0 %v2463
        %3981 = vmatmul.mubr.bf16.gmra.mxu0 %v2273
        %v3982 = vpop.f32.mrf.mxu0
        %v3983 = vadd.f32 0.0, %v3982
        %v3984 = vpop.f32.mrf.mxu0
        %v3985 = vpop.f32.mrf.mxu0
        %v3986 = vadd.f32 0.0, %v3985
        %v3987 = vpop.f32.mrf.mxu0
        %3988 = vmatprep.mubr.bf16.mxu0 %v2475
        %3989 = vmatmul.mubr.bf16.gmra.mxu0 %v2274
        %v3990 = vpop.f32.mrf.mxu0
        %v3991 = vadd.f32 0.0, %v3990
        %v3992 = vpop.f32.mrf.mxu0
        %v3993 = vpop.f32.mrf.mxu0
        %v3994 = vadd.f32 0.0, %v3993
        %v3995 = vpop.f32.mrf.mxu0
        %3996 = vmatprep.mubr.bf16.mxu0 %v2487
        %3997 = vmatmul.mubr.bf16.gmra.mxu0 %v2275
        %v3998 = vpop.f32.mrf.mxu0
        %v3999 = vadd.f32 0.0, %v3998
        %v4000 = vpop.f32.mrf.mxu0
        %v4001 = vpop.f32.mrf.mxu0
        %v4002 = vadd.f32 0.0, %v4001
        %v4003 = vpop.f32.mrf.mxu0
        %4004 = vmatprep.mubr.bf16.mxu0 %v2659
        %4005 = vmatmul.mubr.bf16.gmra.mxu0 %v2276
        %v4006 = vpop.f32.mrf.mxu0
        %v4007 = vadd.f32 0.0, %v4006
        %v4008 = vpop.f32.mrf.mxu0
        %v4009 = vpop.f32.mrf.mxu0
        %v4010 = vadd.f32 0.0, %v4009
        %v4011 = vpop.f32.mrf.mxu0
        %4012 = vmatprep.mubr.bf16.mxu0 %v3659
        %4013 = vmatmul.mubr.bf16.gmra.mxu0 %v2277
        %v4014 = vpop.f32.mrf.mxu0
        %v4015 = vadd.f32 0.0, %v4014
        %v4016 = vpop.f32.mrf.mxu0
        %v4017 = vpop.f32.mrf.mxu0
        %v4018 = vadd.f32 0.0, %v4017
        %v4019 = vpop.f32.mrf.mxu0
        %4020 = vdwg.mxu0
        %4021 = vmatprep.subr.bf16.mxu0 0
        %4022 = vmatpush1.bf16.msra.mxu0 %v3835
        %4023 = vmatprep.subr.bf16.mxu0 0
        %4024 = vmatpush1.bf16.msra.mxu0 %v3834
        %4025 = vmatprep.subr.bf16.mxu0 0
        %4026 = vmatpush1.bf16.msra.mxu0 %v3833
        %4027 = vmatprep.subr.bf16.mxu0 0
        %4028 = vmatpush1.bf16.msra.mxu0 %v3832
        %4029 = vmatprep.subr.bf16.mxu0 0
        %4030 = vmatpush1.bf16.msra.mxu0 %v3831
        %4031 = vmatprep.subr.bf16.mxu0 0
        %4032 = vmatpush1.bf16.msra.mxu0 %v3830
        %4033 = vmatprep.subr.bf16.mxu0 0
        %4034 = vmatpush1.bf16.msra.mxu0 %v3829
        %4035 = vmatprep.subr.bf16.mxu0 0
        %4036 = vmatpush1.bf16.msra.mxu0 %v3828
        %4037 = vmatprep.subr.bf16.mxu0 0
        %4038 = vmatpush2.bf16.msra.mxu0 0
        %4039 = vmatprep.subr.bf16.mxu0 0
        %4040 = vmatpush2.bf16.msra.mxu0 0
        %4041 = vmatprep.subr.bf16.mxu0 0
        %4042 = vmatpush2.bf16.msra.mxu0 0
        %4043 = vmatprep.subr.bf16.mxu0 0
        %4044 = vmatpush2.bf16.msra.mxu0 0
        %4045 = vmatprep.subr.bf16.mxu0 0
        %4046 = vmatpush2.bf16.msra.mxu0 0
        %4047 = vmatprep.subr.bf16.mxu0 0
        %4048 = vmatpush2.bf16.msra.mxu0 0
        %4049 = vmatprep.subr.bf16.mxu0 0
        %4050 = vmatpush2.bf16.msra.mxu0 0
        %4051 = vmatprep.subr.bf16.mxu0 0
        %4052 = vmatpush2.bf16.msra.mxu0 0
        %4053 = vmatprep.mubr.bf16.mxu0 0
        %4054 = vmatmul.mubr.bf16.gmra.mxu0 %v2544
        %v4055 = vpop.f32.mrf.mxu0
        %v4056 = vadd.f32 %v3895, %v4055
        %v4057 = vpop.f32.mrf.mxu0
        %v4058 = vpop.f32.mrf.mxu0
        %v4059 = vadd.f32 %v3898, %v4058
        %v4060 = vpop.f32.mrf.mxu0
        %4061 = vmatprep.mubr.bf16.mxu0 0
        %4062 = vmatmul.mubr.bf16.gmra.mxu0 %v2547
        %v4063 = vpop.f32.mrf.mxu0
        %v4064 = vadd.f32 %v3903, %v4063
        %v4065 = vpop.f32.mrf.mxu0
        %v4066 = vpop.f32.mrf.mxu0
        %v4067 = vadd.f32 %v3906, %v4066
        %v4068 = vpop.f32.mrf.mxu0
        %4069 = vmatprep.mubr.bf16.mxu0 0
        %4070 = vmatmul.mubr.bf16.gmra.mxu0 %v2550
        %v4071 = vpop.f32.mrf.mxu0
        %v4072 = vadd.f32 %v3911, %v4071
        %v4073 = vpop.f32.mrf.mxu0
        %v4074 = vpop.f32.mrf.mxu0
        %v4075 = vadd.f32 %v3914, %v4074
        %v4076 = vpop.f32.mrf.mxu0
        %4077 = vmatprep.mubr.bf16.mxu0 0
        %4078 = vmatmul.mubr.bf16.gmra.mxu0 %v2553
        %v4079 = vpop.f32.mrf.mxu0
        %v4080 = vadd.f32 %v3919, %v4079
        %v4081 = vpop.f32.mrf.mxu0
        %v4082 = vpop.f32.mrf.mxu0
        %v4083 = vadd.f32 %v3922, %v4082
        %v4084 = vpop.f32.mrf.mxu0
        %4085 = vmatprep.mubr.bf16.mxu0 0
        %4086 = vmatmul.mubr.bf16.gmra.mxu0 %v2556
        %v4087 = vpop.f32.mrf.mxu0
        %v4088 = vadd.f32 %v3927, %v4087
        %v4089 = vpop.f32.mrf.mxu0
        %v4090 = vpop.f32.mrf.mxu0
        %v4091 = vadd.f32 %v3930, %v4090
        %v4092 = vpop.f32.mrf.mxu0
        %4093 = vmatprep.mubr.bf16.mxu0 0
        %4094 = vmatmul.mubr.bf16.gmra.mxu0 %v2559
        %v4095 = vpop.f32.mrf.mxu0
        %v4096 = vadd.f32 %v3935, %v4095
        %v4097 = vpop.f32.mrf.mxu0
        %v4098 = vpop.f32.mrf.mxu0
        %v4099 = vadd.f32 %v3938, %v4098
        %v4100 = vpop.f32.mrf.mxu0
        %4101 = vmatprep.mubr.bf16.mxu0 0
        %4102 = vmatmul.mubr.bf16.gmra.mxu0 %v2562
        %v4103 = vpop.f32.mrf.mxu0
        %v4104 = vadd.f32 %v3943, %v4103
        %v4105 = vpop.f32.mrf.mxu0
        %v4106 = vpop.f32.mrf.mxu0
        %v4107 = vadd.f32 %v3946, %v4106
        %v4108 = vpop.f32.mrf.mxu0
        %4109 = vmatprep.mubr.bf16.mxu0 0
        %4110 = vmatmul.mubr.bf16.gmra.mxu0 %v2565
        %v4111 = vpop.f32.mrf.mxu0
        %v4112 = vadd.f32 %v3951, %v4111
        %v4113 = vpop.f32.mrf.mxu0
        %v4114 = vpop.f32.mrf.mxu0
        %v4115 = vadd.f32 %v3954, %v4114
        %v4116 = vpop.f32.mrf.mxu0
        %4117 = vmatprep.mubr.bf16.mxu0 0
        %4118 = vmatmul.mubr.bf16.gmra.mxu0 %v2568
        %v4119 = vpop.f32.mrf.mxu0
        %v4120 = vadd.f32 %v3959, %v4119
        %v4121 = vpop.f32.mrf.mxu0
        %v4122 = vpop.f32.mrf.mxu0
        %v4123 = vadd.f32 %v3962, %v4122
        %v4124 = vpop.f32.mrf.mxu0
        %4125 = vmatprep.mubr.bf16.mxu0 0
        %4126 = vmatmul.mubr.bf16.gmra.mxu0 %v2571
        %v4127 = vpop.f32.mrf.mxu0
        %v4128 = vadd.f32 %v3967, %v4127
        %v4129 = vpop.f32.mrf.mxu0
        %v4130 = vpop.f32.mrf.mxu0
        %v4131 = vadd.f32 %v3970, %v4130
        %v4132 = vpop.f32.mrf.mxu0
        %4133 = vmatprep.mubr.bf16.mxu0 0
        %4134 = vmatmul.mubr.bf16.gmra.mxu0 %v2574
        %v4135 = vpop.f32.mrf.mxu0
        %v4136 = vadd.f32 %v3975, %v4135
        %v4137 = vpop.f32.mrf.mxu0
        %v4138 = vpop.f32.mrf.mxu0
        %v4139 = vadd.f32 %v3978, %v4138
        %v4140 = vpop.f32.mrf.mxu0
        %4141 = vmatprep.mubr.bf16.mxu0 0
        %4142 = vmatmul.mubr.bf16.gmra.mxu0 %v2577
        %v4143 = vpop.f32.mrf.mxu0
        %v4144 = vadd.f32 %v3983, %v4143
        %v4145 = vpop.f32.mrf.mxu0
        %v4146 = vpop.f32.mrf.mxu0
        %v4147 = vadd.f32 %v3986, %v4146
        %v4148 = vpop.f32.mrf.mxu0
        %4149 = vmatprep.mubr.bf16.mxu0 0
        %4150 = vmatmul.mubr.bf16.gmra.mxu0 %v2580
        %v4151 = vpop.f32.mrf.mxu0
        %v4152 = vadd.f32 %v3991, %v4151
        %v4153 = vpop.f32.mrf.mxu0
        %v4154 = vpop.f32.mrf.mxu0
        %v4155 = vadd.f32 %v3994, %v4154
        %v4156 = vpop.f32.mrf.mxu0
        %4157 = vmatprep.mubr.bf16.mxu0 0
        %4158 = vmatmul.mubr.bf16.gmra.mxu0 %v2583
        %v4159 = vpop.f32.mrf.mxu0
        %v4160 = vadd.f32 %v3999, %v4159
        %v4161 = vpop.f32.mrf.mxu0
        %v4162 = vpop.f32.mrf.mxu0
        %v4163 = vadd.f32 %v4002, %v4162
        %v4164 = vpop.f32.mrf.mxu0
        %4165 = vmatprep.mubr.bf16.mxu0 0
        %4166 = vmatmul.mubr.bf16.gmra.mxu0 %v2665
        %v4167 = vpop.f32.mrf.mxu0
        %v4168 = vadd.f32 %v4007, %v4167
        %v4169 = vpop.f32.mrf.mxu0
        %v4170 = vpop.f32.mrf.mxu0
        %v4171 = vadd.f32 %v4010, %v4170
        %v4172 = vpop.f32.mrf.mxu0
        %4173 = vmatprep.mubr.bf16.mxu0 0
        %4174 = vmatmul.mubr.bf16.gmra.mxu0 %v3665
        %v4175 = vpop.f32.mrf.mxu0
        %v4176 = vadd.f32 %v4015, %v4175
        %v4177 = vpop.f32.mrf.mxu0
        %v4178 = vpop.f32.mrf.mxu0
        %v4179 = vadd.f32 %v4018, %v4178
        %v4180 = vpop.f32.mrf.mxu0
        %4181 = vdwg.mxu0
        %v4182 = vadd.f32 %v3522, %v4056
        %v4183 = vadd.f32 %v3525, %v4059
        %v4184 = vadd.f32 %v3530, %v4064
        %v4185 = vadd.f32 %v3533, %v4067
        %v4186 = vadd.f32 %v3538, %v4072
        %v4187 = vadd.f32 %v3541, %v4075
        %v4188 = vadd.f32 %v3546, %v4080
        %v4189 = vadd.f32 %v3549, %v4083
        %v4190 = vadd.f32 %v3554, %v4088
        %v4191 = vadd.f32 %v3557, %v4091
        %v4192 = vadd.f32 %v3562, %v4096
        %v4193 = vadd.f32 %v3565, %v4099
        %v4194 = vadd.f32 %v3570, %v4104
        %v4195 = vadd.f32 %v3573, %v4107
        %v4196 = vadd.f32 %v3578, %v4112
        %v4197 = vadd.f32 %v3581, %v4115
        %v4198 = vadd.f32 %v3586, %v4120
        %v4199 = vadd.f32 %v3589, %v4123
        %v4200 = vadd.f32 %v3594, %v4128
        %v4201 = vadd.f32 %v3597, %v4131
        %v4202 = vadd.f32 %v3602, %v4136
        %v4203 = vadd.f32 %v3605, %v4139
        %v4204 = vadd.f32 %v3610, %v4144
        %v4205 = vadd.f32 %v3613, %v4147
        %v4206 = vadd.f32 %v3618, %v4152
        %v4207 = vadd.f32 %v3621, %v4155
        %v4208 = vadd.f32 %v3626, %v4160
        %v4209 = vadd.f32 %v3629, %v4163
        %v4210 = vadd.f32 %v3634, %v4168
        %v4211 = vadd.f32 %v3637, %v4171
        %v4212 = vadd.f32 %v3642, %v4176
        %v4213 = vadd.f32 %v3645, %v4179
        %v4214 = vld [vmem:[%s5] sm:$0x1]
        %v4216 = vlaneseq
        %v4217 = vshrl.u32 %v4216, 7
        %v4218 = vsub.s32 0, %v4217
        %v4219 = vrot.slane %v4214, %v4218
        %v4221 = vadd.f32 %v4182, %v4219
        %v4222 = vadd.f32 %v4183, %v4219
        %v4223 = vadd.f32 %v4184, %v4219
        %v4224 = vadd.f32 %v4185, %v4219
        %v4225 = vadd.f32 %v4186, %v4219
        %v4226 = vadd.f32 %v4187, %v4219
        %v4227 = vadd.f32 %v4188, %v4219
        %v4228 = vadd.f32 %v4189, %v4219
        %v4229 = vadd.f32 %v4190, %v4219
        %v4230 = vadd.f32 %v4191, %v4219
        %v4231 = vadd.f32 %v4192, %v4219
        %v4232 = vadd.f32 %v4193, %v4219
        %v4233 = vadd.f32 %v4194, %v4219
        %v4234 = vadd.f32 %v4195, %v4219
        %v4235 = vadd.f32 %v4196, %v4219
        %v4236 = vadd.f32 %v4197, %v4219
        %v4237 = vadd.f32 %v4198, %v4219
        %v4238 = vadd.f32 %v4199, %v4219
        %v4239 = vadd.f32 %v4200, %v4219
        %v4240 = vadd.f32 %v4201, %v4219
        %v4241 = vadd.f32 %v4202, %v4219
        %v4242 = vadd.f32 %v4203, %v4219
        %v4243 = vadd.f32 %v4204, %v4219
        %v4244 = vadd.f32 %v4205, %v4219
        %v4245 = vadd.f32 %v4206, %v4219
        %v4246 = vadd.f32 %v4207, %v4219
        %v4247 = vadd.f32 %v4208, %v4219
        %v4248 = vadd.f32 %v4209, %v4219
        %v4249 = vadd.f32 %v4210, %v4219
        %v4250 = vadd.f32 %v4211, %v4219
        %v4251 = vadd.f32 %v4212, %v4219
        %v4252 = vadd.f32 %v4213, %v4219
        %vm4253 = vcmp.ge.f32.partialorder %v4221, 0.0
        %vm4254 = vcmp.ge.f32.partialorder %v4222, 0.0
        %vm4255 = vcmp.ge.f32.partialorder %v4223, 0.0
        %vm4256 = vcmp.ge.f32.partialorder %v4224, 0.0
        %vm4257 = vcmp.ge.f32.partialorder %v4225, 0.0
        %vm4258 = vcmp.ge.f32.partialorder %v4226, 0.0
        %vm4259 = vcmp.ge.f32.partialorder %v4227, 0.0
        %vm4260 = vcmp.ge.f32.partialorder %v4228, 0.0
        %vm4261 = vcmp.ge.f32.partialorder %v4229, 0.0
        %vm4262 = vcmp.ge.f32.partialorder %v4230, 0.0
        %vm4263 = vcmp.ge.f32.partialorder %v4231, 0.0
        %vm4264 = vcmp.ge.f32.partialorder %v4232, 0.0
        %vm4265 = vcmp.ge.f32.partialorder %v4233, 0.0
        %vm4266 = vcmp.ge.f32.partialorder %v4234, 0.0
        %vm4267 = vcmp.ge.f32.partialorder %v4235, 0.0
        %vm4268 = vcmp.ge.f32.partialorder %v4236, 0.0
        %vm4269 = vcmp.ge.f32.partialorder %v4237, 0.0
        %vm4270 = vcmp.ge.f32.partialorder %v4238, 0.0
        %vm4271 = vcmp.ge.f32.partialorder %v4239, 0.0
        %vm4272 = vcmp.ge.f32.partialorder %v4240, 0.0
        %vm4273 = vcmp.ge.f32.partialorder %v4241, 0.0
        %vm4274 = vcmp.ge.f32.partialorder %v4242, 0.0
        %vm4275 = vcmp.ge.f32.partialorder %v4243, 0.0
        %vm4276 = vcmp.ge.f32.partialorder %v4244, 0.0
        %vm4277 = vcmp.ge.f32.partialorder %v4245, 0.0
        %vm4278 = vcmp.ge.f32.partialorder %v4246, 0.0
        %vm4279 = vcmp.ge.f32.partialorder %v4247, 0.0
        %vm4280 = vcmp.ge.f32.partialorder %v4248, 0.0
        %vm4281 = vcmp.ge.f32.partialorder %v4249, 0.0
        %vm4282 = vcmp.ge.f32.partialorder %v4250, 0.0
        %vm4283 = vcmp.ge.f32.partialorder %v4251, 0.0
        %vm4284 = vcmp.ge.f32.partialorder %v4252, 0.0
        %v4285 = vmul.f32 %v4221, 0.1
        %v4286 = vmul.f32 %v4222, 0.1
        %v4287 = vmul.f32 %v4223, 0.1
        %v4288 = vmul.f32 %v4224, 0.1
        %v4289 = vmul.f32 %v4225, 0.1
        %v4290 = vmul.f32 %v4226, 0.1
        %v4291 = vmul.f32 %v4227, 0.1
        %v4292 = vmul.f32 %v4228, 0.1
        %v4293 = vmul.f32 %v4229, 0.1
        %v4294 = vmul.f32 %v4230, 0.1
        %v4295 = vmul.f32 %v4231, 0.1
        %v4296 = vmul.f32 %v4232, 0.1
        %v4297 = vmul.f32 %v4233, 0.1
        %v4298 = vmul.f32 %v4234, 0.1
        %v4299 = vmul.f32 %v4235, 0.1
        %v4300 = vmul.f32 %v4236, 0.1
        %v4301 = vmul.f32 %v4237, 0.1
        %v4302 = vmul.f32 %v4238, 0.1
        %v4303 = vmul.f32 %v4239, 0.1
        %v4304 = vmul.f32 %v4240, 0.1
        %v4305 = vmul.f32 %v4241, 0.1
        %v4306 = vmul.f32 %v4242, 0.1
        %v4307 = vmul.f32 %v4243, 0.1
        %v4308 = vmul.f32 %v4244, 0.1
        %v4309 = vmul.f32 %v4245, 0.1
        %v4310 = vmul.f32 %v4246, 0.1
        %v4311 = vmul.f32 %v4247, 0.1
        %v4312 = vmul.f32 %v4248, 0.1
        %v4313 = vmul.f32 %v4249, 0.1
        %v4314 = vmul.f32 %v4250, 0.1
        %v4315 = vmul.f32 %v4251, 0.1
        %v4316 = vmul.f32 %v4252, 0.1
        %v4317 = vsel %vm4253, %v4221, %v4285
        %v4318 = vsel %vm4254, %v4222, %v4286
        %v4319 = vsel %vm4255, %v4223, %v4287
        %v4320 = vsel %vm4256, %v4224, %v4288
        %v4321 = vsel %vm4257, %v4225, %v4289
        %v4322 = vsel %vm4258, %v4226, %v4290
        %v4323 = vsel %vm4259, %v4227, %v4291
        %v4324 = vsel %vm4260, %v4228, %v4292
        %v4325 = vsel %vm4261, %v4229, %v4293
        %v4326 = vsel %vm4262, %v4230, %v4294
        %v4327 = vsel %vm4263, %v4231, %v4295
        %v4328 = vsel %vm4264, %v4232, %v4296
        %v4329 = vsel %vm4265, %v4233, %v4297
        %v4330 = vsel %vm4266, %v4234, %v4298
        %v4331 = vsel %vm4267, %v4235, %v4299
        %v4332 = vsel %vm4268, %v4236, %v4300
        %v4333 = vsel %vm4269, %v4237, %v4301
        %v4334 = vsel %vm4270, %v4238, %v4302
        %v4335 = vsel %vm4271, %v4239, %v4303
        %v4336 = vsel %vm4272, %v4240, %v4304
        %v4337 = vsel %vm4273, %v4241, %v4305
        %v4338 = vsel %vm4274, %v4242, %v4306
        %v4339 = vsel %vm4275, %v4243, %v4307
        %v4340 = vsel %vm4276, %v4244, %v4308
        %v4341 = vsel %vm4277, %v4245, %v4309
        %v4342 = vsel %vm4278, %v4246, %v4310
        %v4343 = vsel %vm4279, %v4247, %v4311
        %v4344 = vsel %vm4280, %v4248, %v4312
        %v4345 = vsel %vm4281, %v4249, %v4313
        %v4346 = vsel %vm4282, %v4250, %v4314
        %v4347 = vsel %vm4283, %v4251, %v4315
        %v4348 = vsel %vm4284, %v4252, %v4316
        %vm4349 = vsmask.f32 3328
        %vm4350 = vsmask.f32 7440
        %vm4351 = vmor %vm4349, %vm4350
        %v4353 = vshrl.u32 %v423, 16
        %v4355 = vrot.slane %v4353, 4
        %v4356 = vshll.u32 %v423, 16
        %v4358 = vrot.slane %v4356, 5
        %v4359 = vor.u32 %v4355, %v4358
        %v4360 = vrot.slane %v4359, 4
        %v4362 = vshll.u32 %v424, 16
        %v4364 = vrot.slane %v4362, 5
        %v4365 = vsel %vm4351, %v4360, %v4364
        %v4366 = vshrl.u32 %v424, 16
        %v4368 = vrot.slane %v4366, 4
        %v4369 = vor.u32 %v4368, %v4364
        %v4370 = vrot.slane %v4369, 4
        %v4372 = vshll.u32 %v425, 16
        %v4374 = vrot.slane %v4372, 5
        %v4375 = vsel %vm4351, %v4370, %v4374
        %v4377 = vshrl.u32 %v426, 16
        %v4379 = vrot.slane %v4377, 4
        %v4380 = vshll.u32 %v426, 16
        %v4382 = vrot.slane %v4380, 5
        %v4383 = vor.u32 %v4379, %v4382
        %v4384 = vrot.slane %v4383, 4
        %v4386 = vshll.u32 %v427, 16
        %v4388 = vrot.slane %v4386, 5
        %v4389 = vsel %vm4351, %v4384, %v4388
        %v4390 = vshrl.u32 %v427, 16
        %v4392 = vrot.slane %v4390, 4
        %v4393 = vor.u32 %v4392, %v4388
        %v4394 = vrot.slane %v4393, 4
        %v4396 = vshll.u32 %v428, 16
        %v4398 = vrot.slane %v4396, 5
        %v4399 = vsel %vm4351, %v4394, %v4398
        %v4401 = vshrl.u32 %v429, 16
        %v4403 = vrot.slane %v4401, 4
        %v4404 = vshll.u32 %v429, 16
        %v4406 = vrot.slane %v4404, 5
        %v4407 = vor.u32 %v4403, %v4406
        %v4408 = vrot.slane %v4407, 4
        %v4410 = vshll.u32 %v430, 16
        %v4412 = vrot.slane %v4410, 5
        %v4413 = vsel %vm4351, %v4408, %v4412
        %v4414 = vshrl.u32 %v430, 16
        %v4416 = vrot.slane %v4414, 4
        %v4417 = vor.u32 %v4416, %v4412
        %v4418 = vrot.slane %v4417, 4
        %v4420 = vshll.u32 %v431, 16
        %v4422 = vrot.slane %v4420, 5
        %v4423 = vsel %vm4351, %v4418, %v4422
        %v4425 = vshrl.u32 %v432, 16
        %v4427 = vrot.slane %v4425, 4
        %v4428 = vshll.u32 %v432, 16
        %v4430 = vrot.slane %v4428, 5
        %v4431 = vor.u32 %v4427, %v4430
        %v4432 = vrot.slane %v4431, 4
        %v4434 = vshll.u32 %v433, 16
        %v4436 = vrot.slane %v4434, 5
        %v4437 = vsel %vm4351, %v4432, %v4436
        %v4438 = vshrl.u32 %v433, 16
        %v4440 = vrot.slane %v4438, 4
        %v4441 = vor.u32 %v4440, %v4436
        %v4442 = vrot.slane %v4441, 4
        %v4444 = vshll.u32 %v434, 16
        %v4446 = vrot.slane %v4444, 5
        %v4447 = vsel %vm4351, %v4442, %v4446
        %v4449 = vshrl.u32 %v435, 16
        %v4451 = vrot.slane %v4449, 4
        %v4452 = vshll.u32 %v435, 16
        %v4454 = vrot.slane %v4452, 5
        %v4455 = vor.u32 %v4451, %v4454
        %v4456 = vrot.slane %v4455, 4
        %v4458 = vshll.u32 %v436, 16
        %v4460 = vrot.slane %v4458, 5
        %v4461 = vsel %vm4351, %v4456, %v4460
        %v4462 = vshrl.u32 %v436, 16
        %v4464 = vrot.slane %v4462, 4
        %v4465 = vor.u32 %v4464, %v4460
        %v4466 = vrot.slane %v4465, 4
        %v4468 = vshll.u32 %v437, 16
        %v4470 = vrot.slane %v4468, 5
        %v4471 = vsel %vm4351, %v4466, %v4470
        %v4473 = vshrl.u32 %v438, 16
        %v4475 = vrot.slane %v4473, 4
        %v4476 = vshll.u32 %v438, 16
        %v4478 = vrot.slane %v4476, 5
        %v4479 = vor.u32 %v4475, %v4478
        %v4480 = vrot.slane %v4479, 4
        %v4482 = vshll.u32 %v439, 16
        %v4484 = vrot.slane %v4482, 5
        %v4485 = vsel %vm4351, %v4480, %v4484
        %v4486 = vshrl.u32 %v439, 16
        %v4488 = vrot.slane %v4486, 4
        %v4489 = vor.u32 %v4488, %v4484
        %v4490 = vrot.slane %v4489, 4
        %v4492 = vshll.u32 %v440, 16
        %v4494 = vrot.slane %v4492, 5
        %v4495 = vsel %vm4351, %v4490, %v4494
        %v4497 = vshrl.u32 %v441, 16
        %v4499 = vrot.slane %v4497, 4
        %v4500 = vshll.u32 %v441, 16
        %v4502 = vrot.slane %v4500, 5
        %v4503 = vor.u32 %v4499, %v4502
        %v4504 = vrot.slane %v4503, 4
        %v4506 = vshll.u32 %v442, 16
        %v4508 = vrot.slane %v4506, 5
        %v4509 = vsel %vm4351, %v4504, %v4508
        %v4510 = vshrl.u32 %v442, 16
        %v4512 = vrot.slane %v4510, 4
        %v4513 = vor.u32 %v4512, %v4508
        %v4514 = vrot.slane %v4513, 4
        %v4516 = vshll.u32 %v443, 16
        %v4518 = vrot.slane %v4516, 5
        %v4519 = vsel %vm4351, %v4514, %v4518
        %v4521 = vshrl.u32 %v444, 16
        %v4523 = vrot.slane %v4521, 4
        %v4524 = vshll.u32 %v444, 16
        %v4526 = vrot.slane %v4524, 5
        %v4527 = vor.u32 %v4523, %v4526
        %v4528 = vrot.slane %v4527, 4
        %v4530 = vshll.u32 %v445, 16
        %v4532 = vrot.slane %v4530, 5
        %v4533 = vsel %vm4351, %v4528, %v4532
        %v4534 = vshrl.u32 %v445, 16
        %v4536 = vrot.slane %v4534, 4
        %v4537 = vor.u32 %v4536, %v4532
        %v4538 = vrot.slane %v4537, 4
        %v4540 = vshll.u32 %v446, 16
        %v4542 = vrot.slane %v4540, 5
        %v4543 = vsel %vm4351, %v4538, %v4542
        %v4545 = vshrl.u32 %v447, 16
        %v4547 = vrot.slane %v4545, 4
        %v4548 = vshll.u32 %v447, 16
        %v4550 = vrot.slane %v4548, 5
        %v4551 = vor.u32 %v4547, %v4550
        %v4552 = vrot.slane %v4551, 4
        %v4554 = vshll.u32 %v448, 16
        %v4556 = vrot.slane %v4554, 5
        %v4557 = vsel %vm4351, %v4552, %v4556
        %v4558 = vshrl.u32 %v448, 16
        %v4560 = vrot.slane %v4558, 4
        %v4561 = vor.u32 %v4560, %v4556
        %v4562 = vrot.slane %v4561, 4
        %v4564 = vshll.u32 %v449, 16
        %v4566 = vrot.slane %v4564, 5
        %v4567 = vsel %vm4351, %v4562, %v4566
        %v4569 = vshrl.u32 %v450, 16
        %v4571 = vrot.slane %v4569, 4
        %v4572 = vshll.u32 %v450, 16
        %v4574 = vrot.slane %v4572, 5
        %v4575 = vor.u32 %v4571, %v4574
        %v4576 = vrot.slane %v4575, 4
        %v4578 = vshll.u32 %v451, 16
        %v4580 = vrot.slane %v4578, 5
        %v4581 = vsel %vm4351, %v4576, %v4580
        %v4582 = vshrl.u32 %v451, 16
        %v4584 = vrot.slane %v4582, 4
        %v4585 = vor.u32 %v4584, %v4580
        %v4586 = vrot.slane %v4585, 4
        %v4588 = vshll.u32 %v452, 16
        %v4590 = vrot.slane %v4588, 5
        %v4591 = vsel %vm4351, %v4586, %v4590
        %v4593 = vshrl.u32 %v453, 16
        %v4595 = vrot.slane %v4593, 4
        %v4596 = vshll.u32 %v453, 16
        %v4598 = vrot.slane %v4596, 5
        %v4599 = vor.u32 %v4595, %v4598
        %v4600 = vrot.slane %v4599, 4
        %v4602 = vshll.u32 %v454, 16
        %v4604 = vrot.slane %v4602, 5
        %v4605 = vsel %vm4351, %v4600, %v4604
        %v4606 = vshrl.u32 %v454, 16
        %v4608 = vrot.slane %v4606, 4
        %v4609 = vor.u32 %v4608, %v4604
        %v4610 = vrot.slane %v4609, 4
        %v4612 = vshll.u32 %v455, 16
        %v4614 = vrot.slane %v4612, 5
        %v4615 = vsel %vm4351, %v4610, %v4614
        %v4617 = vshrl.u32 %v456, 16
        %v4619 = vrot.slane %v4617, 4
        %v4620 = vshll.u32 %v456, 16
        %v4622 = vrot.slane %v4620, 5
        %v4623 = vor.u32 %v4619, %v4622
        %v4624 = vrot.slane %v4623, 4
        %v4626 = vshll.u32 %v457, 16
        %v4628 = vrot.slane %v4626, 5
        %v4629 = vsel %vm4351, %v4624, %v4628
        %v4630 = vshrl.u32 %v457, 16
        %v4632 = vrot.slane %v4630, 4
        %v4633 = vor.u32 %v4632, %v4628
        %v4634 = vrot.slane %v4633, 4
        %v4636 = vshll.u32 %v458, 16
        %v4638 = vrot.slane %v4636, 5
        %v4639 = vsel %vm4351, %v4634, %v4638
        %v4641 = vshrl.u32 %v459, 16
        %v4643 = vrot.slane %v4641, 4
        %v4644 = vshll.u32 %v459, 16
        %v4646 = vrot.slane %v4644, 5
        %v4647 = vor.u32 %v4643, %v4646
        %v4648 = vrot.slane %v4647, 4
        %v4650 = vshll.u32 %v460, 16
        %v4652 = vrot.slane %v4650, 5
        %v4653 = vsel %vm4351, %v4648, %v4652
        %v4654 = vshrl.u32 %v460, 16
        %v4656 = vrot.slane %v4654, 4
        %v4657 = vor.u32 %v4656, %v4652
        %v4658 = vrot.slane %v4657, 4
        %v4660 = vshll.u32 %v461, 16
        %v4662 = vrot.slane %v4660, 5
        %v4663 = vsel %vm4351, %v4658, %v4662
        %v4665 = vshrl.u32 %v462, 16
        %v4667 = vrot.slane %v4665, 4
        %v4668 = vshll.u32 %v462, 16
        %v4670 = vrot.slane %v4668, 5
        %v4671 = vor.u32 %v4667, %v4670
        %v4672 = vrot.slane %v4671, 4
        %v4674 = vshll.u32 %v463, 16
        %v4676 = vrot.slane %v4674, 5
        %v4677 = vsel %vm4351, %v4672, %v4676
        %v4678 = vshrl.u32 %v463, 16
        %v4680 = vrot.slane %v4678, 4
        %v4681 = vor.u32 %v4680, %v4676
        %v4682 = vrot.slane %v4681, 4
        %v4684 = vshll.u32 %v464, 16
        %v4686 = vrot.slane %v4684, 5
        %v4687 = vsel %vm4351, %v4682, %v4686
        %v4689 = vshrl.u32 %v465, 16
        %v4691 = vrot.slane %v4689, 4
        %v4692 = vshll.u32 %v465, 16
        %v4694 = vrot.slane %v4692, 5
        %v4695 = vor.u32 %v4691, %v4694
        %v4696 = vrot.slane %v4695, 4
        %v4698 = vshll.u32 %v466, 16
        %v4700 = vrot.slane %v4698, 5
        %v4701 = vsel %vm4351, %v4696, %v4700
        %v4702 = vshrl.u32 %v466, 16
        %v4704 = vrot.slane %v4702, 4
        %v4705 = vor.u32 %v4704, %v4700
        %v4706 = vrot.slane %v4705, 4
        %v4708 = vshll.u32 %v467, 16
        %v4710 = vrot.slane %v4708, 5
        %v4711 = vsel %vm4351, %v4706, %v4710
        %v4713 = vshrl.u32 %v468, 16
        %v4715 = vrot.slane %v4713, 4
        %v4716 = vshll.u32 %v468, 16
        %v4718 = vrot.slane %v4716, 5
        %v4719 = vor.u32 %v4715, %v4718
        %v4720 = vrot.slane %v4719, 4
        %v4722 = vshll.u32 %v469, 16
        %v4724 = vrot.slane %v4722, 5
        %v4725 = vsel %vm4351, %v4720, %v4724
        %v4726 = vshrl.u32 %v469, 16
        %v4728 = vrot.slane %v4726, 4
        %v4729 = vor.u32 %v4728, %v4724
        %v4730 = vrot.slane %v4729, 4
        %v4732 = vshll.u32 %v470, 16
        %v4734 = vrot.slane %v4732, 5
        %v4735 = vsel %vm4351, %v4730, %v4734
        %v4736 = vld [vmem:[%s6] sm:$0x3]
        %v4737 = vld [vmem:[%s7] sm:$0x1]
        %v4739 = vlaneseq
        %v4740 = vshrl.u32 %v4739, 7
        %v4741 = vsub.s32 0, %v4740
        %v4742 = vrot.slane %v4737, %v4741
        %v4744 = vunpack.c.l.b16 %v4365
        %v4745 = vunpack.c.l.b16 %v4375
        %v4746 = vunpack.c.l.b16 %v4389
        %v4747 = vunpack.c.l.b16 %v4399
        %v4748 = vunpack.c.l.b16 %v4413
        %v4749 = vunpack.c.l.b16 %v4423
        %v4750 = vunpack.c.l.b16 %v4437
        %v4751 = vunpack.c.l.b16 %v4447
        %v4752 = vunpack.c.l.b16 %v4461
        %v4753 = vunpack.c.l.b16 %v4471
        %v4754 = vunpack.c.l.b16 %v4485
        %v4755 = vunpack.c.l.b16 %v4495
        %v4756 = vunpack.c.l.b16 %v4509
        %v4757 = vunpack.c.l.b16 %v4519
        %v4758 = vunpack.c.l.b16 %v4533
        %v4759 = vunpack.c.l.b16 %v4543
        %v4760 = vunpack.c.l.b16 %v4557
        %v4761 = vunpack.c.l.b16 %v4567
        %v4762 = vunpack.c.l.b16 %v4581
        %v4763 = vunpack.c.l.b16 %v4591
        %v4764 = vunpack.c.l.b16 %v4605
        %v4765 = vunpack.c.l.b16 %v4615
        %v4766 = vunpack.c.l.b16 %v4629
        %v4767 = vunpack.c.l.b16 %v4639
        %v4768 = vunpack.c.l.b16 %v4653
        %v4769 = vunpack.c.l.b16 %v4663
        %v4770 = vunpack.c.l.b16 %v4677
        %v4771 = vunpack.c.l.b16 %v4687
        %v4772 = vunpack.c.l.b16 %v4701
        %v4773 = vunpack.c.l.b16 %v4711
        %v4774 = vunpack.c.l.b16 %v4725
        %v4775 = vunpack.c.l.b16 %v4735
        %v4776 = vpack.c.b16 %v4745, %v4744
        %v4777 = vpack.c.b16 %v4747, %v4746
        %v4778 = vpack.c.b16 %v4749, %v4748
        %v4779 = vpack.c.b16 %v4751, %v4750
        %v4780 = vpack.c.b16 %v4753, %v4752
        %v4781 = vpack.c.b16 %v4755, %v4754
        %v4782 = vpack.c.b16 %v4757, %v4756
        %v4783 = vpack.c.b16 %v4759, %v4758
        %v4784 = vpack.c.b16 %v4761, %v4760
        %v4785 = vpack.c.b16 %v4763, %v4762
        %v4786 = vpack.c.b16 %v4765, %v4764
        %v4787 = vpack.c.b16 %v4767, %v4766
        %v4788 = vpack.c.b16 %v4769, %v4768
        %v4789 = vpack.c.b16 %v4771, %v4770
        %v4790 = vpack.c.b16 %v4773, %v4772
        %v4791 = vpack.c.b16 %v4775, %v4774
        %v4793 = vsel %vm965, %v4776, 0
        %v4796 = vsel %vm965, %v4777, 0
        %v4799 = vsel %vm965, %v4778, 0
        %v4802 = vsel %vm965, %v4779, 0
        %v4805 = vsel %vm965, %v4780, 0
        %v4808 = vsel %vm965, %v4781, 0
        %v4811 = vsel %vm965, %v4782, 0
        %v4814 = vsel %vm965, %v4783, 0
        %v4817 = vsel %vm965, %v4784, 0
        %v4820 = vsel %vm965, %v4785, 0
        %v4823 = vsel %vm965, %v4786, 0
        %v4826 = vsel %vm965, %v4787, 0
        %v4829 = vsel %vm965, %v4788, 0
        %v4832 = vsel %vm965, %v4789, 0
        %v4835 = vsel %vm965, %v4790, 0
        %v4838 = vsel %vm965, %v4791, 0
        %vm4840 = vcmask 1041408
        %v4842 = vsel %vm4840, %v4736, 0
        %4844 = vmatprep.subr.bf16.mxu0 0
        %4845 = vmatpush1.bf16.msra.mxu0 0
        %4846 = vmatprep.subr.bf16.mxu0 0
        %4847 = vmatpush1.bf16.msra.mxu0 0
        %4848 = vmatprep.subr.bf16.mxu0 0
        %4849 = vmatpush1.bf16.msra.mxu0 0
        %4850 = vmatprep.subr.bf16.mxu0 0
        %4851 = vmatpush1.bf16.msra.mxu0 0
        %4852 = vmatprep.subr.bf16.mxu0 0
        %4853 = vmatpush1.bf16.msra.mxu0 0
        %4854 = vmatprep.subr.bf16.mxu0 0
        %4855 = vmatpush1.bf16.msra.mxu0 0
        %4856 = vmatprep.subr.bf16.mxu0 0
        %4857 = vmatpush1.bf16.msra.mxu0 0
        %4858 = vmatprep.subr.bf16.mxu0 0
        %4859 = vmatpush1.bf16.msra.mxu0 %v4842
        %4860 = vmatprep.subr.bf16.mxu0 0
        %4861 = vmatpush2.bf16.msra.mxu0 0
        %4862 = vmatprep.subr.bf16.mxu0 0
        %4863 = vmatpush2.bf16.msra.mxu0 0
        %4864 = vmatprep.subr.bf16.mxu0 0
        %4865 = vmatpush2.bf16.msra.mxu0 0
        %4866 = vmatprep.subr.bf16.mxu0 0
        %4867 = vmatpush2.bf16.msra.mxu0 0
        %4868 = vmatprep.subr.bf16.mxu0 0
        %4869 = vmatpush2.bf16.msra.mxu0 0
        %4870 = vmatprep.subr.bf16.mxu0 0
        %4871 = vmatpush2.bf16.msra.mxu0 0
        %4872 = vmatprep.subr.bf16.mxu0 0
        %4873 = vmatpush2.bf16.msra.mxu0 0
        %4874 = vmatprep.subr.bf16.mxu0 0
        %4875 = vmatpush2.bf16.msra.mxu0 0
        %4876 = vmatprep.mubr.bf16.mxu0 0
        %4877 = vmatmul.mubr.bf16.gmra.mxu0 %v4793
        %v4878 = vpop.f32.mrf.mxu0
        %v4879 = vadd.f32 %v4742, %v4878
        %v4880 = vpop.f32.mrf.mxu0
        %v4881 = vpop.f32.mrf.mxu0
        %v4882 = vadd.f32 %v4742, %v4881
        %v4883 = vpop.f32.mrf.mxu0
        %4884 = vmatprep.mubr.bf16.mxu0 0
        %4885 = vmatmul.mubr.bf16.gmra.mxu0 %v4796
        %v4886 = vpop.f32.mrf.mxu0
        %v4887 = vadd.f32 %v4742, %v4886
        %v4888 = vpop.f32.mrf.mxu0
        %v4889 = vpop.f32.mrf.mxu0
        %v4890 = vadd.f32 %v4742, %v4889
        %v4891 = vpop.f32.mrf.mxu0
        %4892 = vmatprep.mubr.bf16.mxu0 0
        %4893 = vmatmul.mubr.bf16.gmra.mxu0 %v4799
        %v4894 = vpop.f32.mrf.mxu0
        %v4895 = vadd.f32 %v4742, %v4894
        %v4896 = vpop.f32.mrf.mxu0
        %v4897 = vpop.f32.mrf.mxu0
        %v4898 = vadd.f32 %v4742, %v4897
        %v4899 = vpop.f32.mrf.mxu0
        %4900 = vmatprep.mubr.bf16.mxu0 0
        %4901 = vmatmul.mubr.bf16.gmra.mxu0 %v4802
        %v4902 = vpop.f32.mrf.mxu0
        %v4903 = vadd.f32 %v4742, %v4902
        %v4904 = vpop.f32.mrf.mxu0
        %v4905 = vpop.f32.mrf.mxu0
        %v4906 = vadd.f32 %v4742, %v4905
        %v4907 = vpop.f32.mrf.mxu0
        %4908 = vmatprep.mubr.bf16.mxu0 0
        %4909 = vmatmul.mubr.bf16.gmra.mxu0 %v4805
        %v4910 = vpop.f32.mrf.mxu0
        %v4911 = vadd.f32 %v4742, %v4910
        %v4912 = vpop.f32.mrf.mxu0
        %v4913 = vpop.f32.mrf.mxu0
        %v4914 = vadd.f32 %v4742, %v4913
        %v4915 = vpop.f32.mrf.mxu0
        %4916 = vmatprep.mubr.bf16.mxu0 0
        %4917 = vmatmul.mubr.bf16.gmra.mxu0 %v4808
        %v4918 = vpop.f32.mrf.mxu0
        %v4919 = vadd.f32 %v4742, %v4918
        %v4920 = vpop.f32.mrf.mxu0
        %v4921 = vpop.f32.mrf.mxu0
        %v4922 = vadd.f32 %v4742, %v4921
        %v4923 = vpop.f32.mrf.mxu0
        %4924 = vmatprep.mubr.bf16.mxu0 0
        %4925 = vmatmul.mubr.bf16.gmra.mxu0 %v4811
        %v4926 = vpop.f32.mrf.mxu0
        %v4927 = vadd.f32 %v4742, %v4926
        %v4928 = vpop.f32.mrf.mxu0
        %v4929 = vpop.f32.mrf.mxu0
        %v4930 = vadd.f32 %v4742, %v4929
        %v4931 = vpop.f32.mrf.mxu0
        %4932 = vmatprep.mubr.bf16.mxu0 0
        %4933 = vmatmul.mubr.bf16.gmra.mxu0 %v4814
        %v4934 = vpop.f32.mrf.mxu0
        %v4935 = vadd.f32 %v4742, %v4934
        %v4936 = vpop.f32.mrf.mxu0
        %v4937 = vpop.f32.mrf.mxu0
        %v4938 = vadd.f32 %v4742, %v4937
        %v4939 = vpop.f32.mrf.mxu0
        %4940 = vmatprep.mubr.bf16.mxu0 0
        %4941 = vmatmul.mubr.bf16.gmra.mxu0 %v4817
        %v4942 = vpop.f32.mrf.mxu0
        %v4943 = vadd.f32 %v4742, %v4942
        %v4944 = vpop.f32.mrf.mxu0
        %v4945 = vpop.f32.mrf.mxu0
        %v4946 = vadd.f32 %v4742, %v4945
        %v4947 = vpop.f32.mrf.mxu0
        %4948 = vmatprep.mubr.bf16.mxu0 0
        %4949 = vmatmul.mubr.bf16.gmra.mxu0 %v4820
        %v4950 = vpop.f32.mrf.mxu0
        %v4951 = vadd.f32 %v4742, %v4950
        %v4952 = vpop.f32.mrf.mxu0
        %v4953 = vpop.f32.mrf.mxu0
        %v4954 = vadd.f32 %v4742, %v4953
        %v4955 = vpop.f32.mrf.mxu0
        %4956 = vmatprep.mubr.bf16.mxu0 0
        %4957 = vmatmul.mubr.bf16.gmra.mxu0 %v4823
        %v4958 = vpop.f32.mrf.mxu0
        %v4959 = vadd.f32 %v4742, %v4958
        %v4960 = vpop.f32.mrf.mxu0
        %v4961 = vpop.f32.mrf.mxu0
        %v4962 = vadd.f32 %v4742, %v4961
        %v4963 = vpop.f32.mrf.mxu0
        %4964 = vmatprep.mubr.bf16.mxu0 0
        %4965 = vmatmul.mubr.bf16.gmra.mxu0 %v4826
        %v4966 = vpop.f32.mrf.mxu0
        %v4967 = vadd.f32 %v4742, %v4966
        %v4968 = vpop.f32.mrf.mxu0
        %v4969 = vpop.f32.mrf.mxu0
        %v4970 = vadd.f32 %v4742, %v4969
        %v4971 = vpop.f32.mrf.mxu0
        %4972 = vmatprep.mubr.bf16.mxu0 0
        %4973 = vmatmul.mubr.bf16.gmra.mxu0 %v4829
        %v4974 = vpop.f32.mrf.mxu0
        %v4975 = vadd.f32 %v4742, %v4974
        %v4976 = vpop.f32.mrf.mxu0
        %v4977 = vpop.f32.mrf.mxu0
        %v4978 = vadd.f32 %v4742, %v4977
        %v4979 = vpop.f32.mrf.mxu0
        %4980 = vmatprep.mubr.bf16.mxu0 0
        %4981 = vmatmul.mubr.bf16.gmra.mxu0 %v4832
        %v4982 = vpop.f32.mrf.mxu0
        %v4983 = vadd.f32 %v4742, %v4982
        %v4984 = vpop.f32.mrf.mxu0
        %v4985 = vpop.f32.mrf.mxu0
        %v4986 = vadd.f32 %v4742, %v4985
        %v4987 = vpop.f32.mrf.mxu0
        %4988 = vmatprep.mubr.bf16.mxu0 0
        %4989 = vmatmul.mubr.bf16.gmra.mxu0 %v4835
        %v4990 = vpop.f32.mrf.mxu0
        %v4991 = vadd.f32 %v4742, %v4990
        %v4992 = vpop.f32.mrf.mxu0
        %v4993 = vpop.f32.mrf.mxu0
        %v4994 = vadd.f32 %v4742, %v4993
        %v4995 = vpop.f32.mrf.mxu0
        %4996 = vmatprep.mubr.bf16.mxu0 0
        %4997 = vmatmul.mubr.bf16.gmra.mxu0 %v4838
        %v4998 = vpop.f32.mrf.mxu0
        %v4999 = vadd.f32 %v4742, %v4998
        %v5000 = vpop.f32.mrf.mxu0
        %v5001 = vpop.f32.mrf.mxu0
        %v5002 = vadd.f32 %v4742, %v5001
        %v5003 = vpop.f32.mrf.mxu0
        %5004 = vdwg.mxu0
        %vm5005 = vcmp.ge.f32.partialorder %v4879, 0.0
        %vm5006 = vcmp.ge.f32.partialorder %v4882, 0.0
        %vm5007 = vcmp.ge.f32.partialorder %v4887, 0.0
        %vm5008 = vcmp.ge.f32.partialorder %v4890, 0.0
        %vm5009 = vcmp.ge.f32.partialorder %v4895, 0.0
        %vm5010 = vcmp.ge.f32.partialorder %v4898, 0.0
        %vm5011 = vcmp.ge.f32.partialorder %v4903, 0.0
        %vm5012 = vcmp.ge.f32.partialorder %v4906, 0.0
        %vm5013 = vcmp.ge.f32.partialorder %v4911, 0.0
        %vm5014 = vcmp.ge.f32.partialorder %v4914, 0.0
        %vm5015 = vcmp.ge.f32.partialorder %v4919, 0.0
        %vm5016 = vcmp.ge.f32.partialorder %v4922, 0.0
        %vm5017 = vcmp.ge.f32.partialorder %v4927, 0.0
        %vm5018 = vcmp.ge.f32.partialorder %v4930, 0.0
        %vm5019 = vcmp.ge.f32.partialorder %v4935, 0.0
        %vm5020 = vcmp.ge.f32.partialorder %v4938, 0.0
        %vm5021 = vcmp.ge.f32.partialorder %v4943, 0.0
        %vm5022 = vcmp.ge.f32.partialorder %v4946, 0.0
        %vm5023 = vcmp.ge.f32.partialorder %v4951, 0.0
        %vm5024 = vcmp.ge.f32.partialorder %v4954, 0.0
        %vm5025 = vcmp.ge.f32.partialorder %v4959, 0.0
        %vm5026 = vcmp.ge.f32.partialorder %v4962, 0.0
        %vm5027 = vcmp.ge.f32.partialorder %v4967, 0.0
        %vm5028 = vcmp.ge.f32.partialorder %v4970, 0.0
        %vm5029 = vcmp.ge.f32.partialorder %v4975, 0.0
        %vm5030 = vcmp.ge.f32.partialorder %v4978, 0.0
        %vm5031 = vcmp.ge.f32.partialorder %v4983, 0.0
        %vm5032 = vcmp.ge.f32.partialorder %v4986, 0.0
        %vm5033 = vcmp.ge.f32.partialorder %v4991, 0.0
        %vm5034 = vcmp.ge.f32.partialorder %v4994, 0.0
        %vm5035 = vcmp.ge.f32.partialorder %v4999, 0.0
        %vm5036 = vcmp.ge.f32.partialorder %v5002, 0.0
        %v5037 = vmul.f32 %v4879, 0.1
        %v5038 = vmul.f32 %v4882, 0.1
        %v5039 = vmul.f32 %v4887, 0.1
        %v5040 = vmul.f32 %v4890, 0.1
        %v5041 = vmul.f32 %v4895, 0.1
        %v5042 = vmul.f32 %v4898, 0.1
        %v5043 = vmul.f32 %v4903, 0.1
        %v5044 = vmul.f32 %v4906, 0.1
        %v5045 = vmul.f32 %v4911, 0.1
        %v5046 = vmul.f32 %v4914, 0.1
        %v5047 = vmul.f32 %v4919, 0.1
        %v5048 = vmul.f32 %v4922, 0.1
        %v5049 = vmul.f32 %v4927, 0.1
        %v5050 = vmul.f32 %v4930, 0.1
        %v5051 = vmul.f32 %v4935, 0.1
        %v5052 = vmul.f32 %v4938, 0.1
        %v5053 = vmul.f32 %v4943, 0.1
        %v5054 = vmul.f32 %v4946, 0.1
        %v5055 = vmul.f32 %v4951, 0.1
        %v5056 = vmul.f32 %v4954, 0.1
        %v5057 = vmul.f32 %v4959, 0.1
        %v5058 = vmul.f32 %v4962, 0.1
        %v5059 = vmul.f32 %v4967, 0.1
        %v5060 = vmul.f32 %v4970, 0.1
        %v5061 = vmul.f32 %v4975, 0.1
        %v5062 = vmul.f32 %v4978, 0.1
        %v5063 = vmul.f32 %v4983, 0.1
        %v5064 = vmul.f32 %v4986, 0.1
        %v5065 = vmul.f32 %v4991, 0.1
        %v5066 = vmul.f32 %v4994, 0.1
        %v5067 = vmul.f32 %v4999, 0.1
        %v5068 = vmul.f32 %v5002, 0.1
        %v5069 = vsel %vm5005, %v4879, %v5037
        %v5070 = vsel %vm5006, %v4882, %v5038
        %v5071 = vsel %vm5007, %v4887, %v5039
        %v5072 = vsel %vm5008, %v4890, %v5040
        %v5073 = vsel %vm5009, %v4895, %v5041
        %v5074 = vsel %vm5010, %v4898, %v5042
        %v5075 = vsel %vm5011, %v4903, %v5043
        %v5076 = vsel %vm5012, %v4906, %v5044
        %v5077 = vsel %vm5013, %v4911, %v5045
        %v5078 = vsel %vm5014, %v4914, %v5046
        %v5079 = vsel %vm5015, %v4919, %v5047
        %v5080 = vsel %vm5016, %v4922, %v5048
        %v5081 = vsel %vm5017, %v4927, %v5049
        %v5082 = vsel %vm5018, %v4930, %v5050
        %v5083 = vsel %vm5019, %v4935, %v5051
        %v5084 = vsel %vm5020, %v4938, %v5052
        %v5085 = vsel %vm5021, %v4943, %v5053
        %v5086 = vsel %vm5022, %v4946, %v5054
        %v5087 = vsel %vm5023, %v4951, %v5055
        %v5088 = vsel %vm5024, %v4954, %v5056
        %v5089 = vsel %vm5025, %v4959, %v5057
        %v5090 = vsel %vm5026, %v4962, %v5058
        %v5091 = vsel %vm5027, %v4967, %v5059
        %v5092 = vsel %vm5028, %v4970, %v5060
        %v5093 = vsel %vm5029, %v4975, %v5061
        %v5094 = vsel %vm5030, %v4978, %v5062
        %v5095 = vsel %vm5031, %v4983, %v5063
        %v5096 = vsel %vm5032, %v4986, %v5064
        %v5097 = vsel %vm5033, %v4991, %v5065
        %v5098 = vsel %vm5034, %v4994, %v5066
        %v5099 = vsel %vm5035, %v4999, %v5067
        %v5100 = vsel %vm5036, %v5002, %v5068
        %v5101 = vadd.f32 %v4317, %v5069
        %v5102 = vadd.f32 %v4318, %v5070
        %v5103 = vadd.f32 %v4319, %v5071
        %v5104 = vadd.f32 %v4320, %v5072
        %v5105 = vadd.f32 %v4321, %v5073
        %v5106 = vadd.f32 %v4322, %v5074
        %v5107 = vadd.f32 %v4323, %v5075
        %v5108 = vadd.f32 %v4324, %v5076
        %v5109 = vadd.f32 %v4325, %v5077
        %v5110 = vadd.f32 %v4326, %v5078
        %v5111 = vadd.f32 %v4327, %v5079
        %v5112 = vadd.f32 %v4328, %v5080
        %v5113 = vadd.f32 %v4329, %v5081
        %v5114 = vadd.f32 %v4330, %v5082
        %v5115 = vadd.f32 %v4331, %v5083
        %v5116 = vadd.f32 %v4332, %v5084
        %v5117 = vadd.f32 %v4333, %v5085
        %v5118 = vadd.f32 %v4334, %v5086
        %v5119 = vadd.f32 %v4335, %v5087
        %v5120 = vadd.f32 %v4336, %v5088
        %v5121 = vadd.f32 %v4337, %v5089
        %v5122 = vadd.f32 %v4338, %v5090
        %v5123 = vadd.f32 %v4339, %v5091
        %v5124 = vadd.f32 %v4340, %v5092
        %v5125 = vadd.f32 %v4341, %v5093
        %v5126 = vadd.f32 %v4342, %v5094
        %v5127 = vadd.f32 %v4343, %v5095
        %v5128 = vadd.f32 %v4344, %v5096
        %v5129 = vadd.f32 %v4345, %v5097
        %v5130 = vadd.f32 %v4346, %v5098
        %v5131 = vadd.f32 %v4347, %v5099
        %v5132 = vadd.f32 %v4348, %v5100
        %5133 = vst [vmem:[%s378] sm:$0xff] %v5101
        %5134 = vst [vmem:[%s378 + $0x8] sm:$0xff] %v5102
        %5135 = vst [vmem:[%s378 + $0x10] sm:$0xff] %v5103
        %5136 = vst [vmem:[%s378 + $0x18] sm:$0xff] %v5104
        %5137 = vst [vmem:[%s378 + $0x20] sm:$0xff] %v5105
        %5138 = vst [vmem:[%s378 + $0x28] sm:$0xff] %v5106
        %5139 = vst [vmem:[%s378 + $0x30] sm:$0xff] %v5107
        %5140 = vst [vmem:[%s378 + $0x38] sm:$0xff] %v5108
        %5141 = vst [vmem:[%s378 + $0x40] sm:$0xff] %v5109
        %5142 = vst [vmem:[%s378 + $0x48] sm:$0xff] %v5110
        %5143 = vst [vmem:[%s378 + $0x50] sm:$0xff] %v5111
        %5144 = vst [vmem:[%s378 + $0x58] sm:$0xff] %v5112
        %5145 = vst [vmem:[%s378 + $0x60] sm:$0xff] %v5113
        %5146 = vst [vmem:[%s378 + $0x68] sm:$0xff] %v5114
        %5147 = vst [vmem:[%s378 + $0x70] sm:$0xff] %v5115
        %5148 = vst [vmem:[%s378 + $0x78] sm:$0xff] %v5116
        %5149 = vst [vmem:[%s378 + $0x80] sm:$0xff] %v5117
        %5150 = vst [vmem:[%s378 + $0x88] sm:$0xff] %v5118
        %5151 = vst [vmem:[%s378 + $0x90] sm:$0xff] %v5119
        %5152 = vst [vmem:[%s378 + $0x98] sm:$0xff] %v5120
        %5153 = vst [vmem:[%s378 + $0xa0] sm:$0xff] %v5121
        %5154 = vst [vmem:[%s378 + $0xa8] sm:$0xff] %v5122
        %5155 = vst [vmem:[%s378 + $0xb0] sm:$0xff] %v5123
        %5156 = vst [vmem:[%s378 + $0xb8] sm:$0xff] %v5124
        %5157 = vst [vmem:[%s378 + $0xc0] sm:$0xff] %v5125
        %5158 = vst [vmem:[%s378 + $0xc8] sm:$0xff] %v5126
        %5159 = vst [vmem:[%s378 + $0xd0] sm:$0xff] %v5127
        %5160 = vst [vmem:[%s378 + $0xd8] sm:$0xff] %v5128
        %5161 = vst [vmem:[%s378 + $0xe0] sm:$0xff] %v5129
        %5162 = vst [vmem:[%s378 + $0xe8] sm:$0xff] %v5130
        %5163 = vst [vmem:[%s378 + $0xf0] sm:$0xff] %v5131
        %5164 = vst [vmem:[%s378 + $0xf8] sm:$0xff] %v5132
        %s5165 = sand.u32 %s230, 1
        %s5166 = scalar_lea.sflag [#allocation3], %s5165
        %s5167 = sand.u32 %s230, 1
        %s5168 = smul.addr %s5167, 256
        %s5169 = scalar_lea.vmem [#allocation2], %s5168
        // Predicated region
        $region53: #{tpu_custom_call.1} parent=51 // pred_check
          %p5170 = pneg %p240
        $region54: #{tpu_custom_call.1} parent=51 // pred_check_branch
          %5172 = sbr.rel (%p5170) target = $region56
        $region55: #{tpu_custom_call.1} parent=51 // pred_region
          %s5173 = smul.u32 16, %s27
          %s5175 = ssub.s32 4096, 4096
          %5176 = vsyncadd %s5166, %s5175
          %s5177 = smul.addr %s5173, 2
          %s5178 = smul.addr %s26, 32
          %s5179 = sadd.s32 %s5177, %s5178
          %s5180 = smul.addr %s5179, 128
          %s5181 = scalar_lea.hbm %s8, %s5180
          %s5182 = sshll.u32 %s5169, 4
          %s5183 = int_to_ptr.vmem [resolvable:$true] %s5182
          %5188 = dma.vmem_to_hbm [thread:$0]  %s5183, 4096, %s5181, %s5166, 128, 128, 8
        $region56: #{tpu_custom_call.1} parent=51 // pred_fallthru
          _
      $region52: #{tpu_custom_call.1} parent=5 // pred_fallthru
        _
      %p5189 = scmp.le.s32.totalorder 2, %s17
      // Predicated region
      $region57: #{tpu_custom_call.1} parent=5 // pred_check
        %p5190 = pneg %p5189
      $region58: #{tpu_custom_call.1} parent=5 // pred_check_branch
        %5192 = sbr.rel (%p5190) target = $region60
      $region59: #{tpu_custom_call.1} parent=5 // pred_region
        %s5193 = ssub.s32 %s17, 2
        // Predicated region
        $region61: #{tpu_custom_call.1} parent=59 // pred_check
          %p5194 = pneg %p246
        $region62: #{tpu_custom_call.1} parent=59 // pred_check_branch
          %5196 = sbr.rel (%p5194) target = $region64
        $region63: #{tpu_custom_call.1} parent=59 // pred_region
          %s5197 = sand.u32 %s231, 1
          %s5198 = scalar_lea.sflag [#allocation3], %s5197
          %s5199 = sand.u32 %s231, 1
          %s5200 = smul.addr %s5199, 256
          %s5201 = scalar_lea.vmem [#allocation2], %s5200
          %5202 = dma.done %s5198, 4096
        $region64: #{tpu_custom_call.1} parent=59 // pred_fallthru
          _
      $region60: #{tpu_custom_call.1} parent=5 // pred_fallthru
        _
    $region6: #{tpu_custom_call.1} parent=1 // loop_footer
      %s21 = sadd.s32 1, %s17
    $region7: #{tpu_custom_call.1} parent=1 // loop_footer_branch
      %16 = sbr.rel target = $region3
    $region8: #{tpu_custom_call.1} parent=1 // loop_exit
      _
    %5203 = vsyncpa [#allocation3], 1
    %s5204 = scalar_lea.sflag [#allocation3], 1
    %5205 = vsyncpa %s5204, 1

</llo_original>
